<compile_context>
chip_gen: v7x
topology: tpu7x:2x2x1
jax: 0.10.0
libtpu: 0.0.40
codegen_flags: <defaults>
</compile_context>

<pallas_src>
import jax
import jax.numpy as jnp
from jax.experimental import pallas as pl
from jax.experimental.pallas import tpu as pltpu


def _dd_kernel(x_ref, w1_ref, b1_ref, w2_ref, b2_ref, o_ref):
    # fc1 on the MXU, f32 accumulation.
    h = jnp.dot(x_ref[...], w1_ref[...], preferred_element_type=jnp.float32)
    h = jnp.maximum(h + b1_ref[...], 0.0)          # (TB, 128), VPU
    # fc2: N=1 matmul replaced with VPU multiply + XLU lane reduction.
    z = jnp.sum(h * w2_ref[...], axis=-1)          # (TB,)
    z = z + b2_ref[0]                              # scalar bias from SMEM
    # Lane-dense store: one (1, TB) row per grid step.
    o_ref[...] = jax.nn.sigmoid(z)[None, :].astype(o_ref.dtype)


def domain_discriminator_forward(x, w1, b1, w2, b2, *, tb=512):
    """x: (B, D). w1: (D, 128), b1: (128,), w2: (128, 1), b2: (1,). Returns (B, 1)."""
    B, D = x.shape
    H = w1.shape[1]
    assert tb % 128 == 0, "TB must be a multiple of 128 for lane-dense output"

    # Pad batch up to a multiple of the tile size (padded rows dropped at the end).
    G = pl.cdiv(B, tb)
    Bp = G * tb
    if Bp != B:
        x = jnp.pad(x, ((0, Bp - B), (0, 0)))

    b1_row = b1.reshape(1, H).astype(jnp.float32)
    w2_row = w2.reshape(1, H).astype(jnp.float32)
    b2_s = b2.reshape(1).astype(jnp.float32)

    itemsize = jnp.dtype(x.dtype).itemsize
    cost = pl.CostEstimate(
        flops=2 * Bp * D * H + 3 * Bp * H,
        transcendentals=Bp,  # sigmoid
        bytes_accessed=Bp * D * itemsize + (D * H + 2 * H + 1) * 4 + Bp * 4,
    )

    out_slab = pl.pallas_call(
        _dd_kernel,
        out_shape=jax.ShapeDtypeStruct((G, tb), jnp.float32),
        grid=(G,),
        in_specs=[
            pl.BlockSpec((tb, D), lambda i: (i, 0)),        # x tile, pipelined
            pl.BlockSpec((D, H), lambda i: (0, 0)),         # w1 resident in VMEM
            pl.BlockSpec((1, H), lambda i: (0, 0)),         # b1 resident in VMEM
            pl.BlockSpec((1, H), lambda i: (0, 0)),         # w2 row resident in VMEM
            pl.BlockSpec(memory_space=pltpu.MemorySpace.SMEM),  # b2 scalar
        ],
        out_specs=pl.BlockSpec((1, tb), lambda i: (i, 0)),  # lane-dense output row
        compiler_params=pltpu.CompilerParams(
            dimension_semantics=("parallel",),
        ),
        cost_estimate=cost,
    )(x, w1, b1_row, w2_row, b2_s)

    # (G, TB) slab -> flat padded batch -> drop padding -> (B, 1)
    return out_slab.reshape(Bp)[:B].reshape(B, 1)


def init_params(key, input_dim=128, hidden=128):
    """Mirror torch.nn.Linear init U(-1/sqrt(fan_in), 1/sqrt(fan_in)).

    Weights are stored already transposed: (in, out), so forward is x @ W + b.
    """
    k1, k2, k3, k4 = jax.random.split(key, 4)
    bound1 = 1.0 / jnp.sqrt(input_dim)
    bound2 = 1.0 / jnp.sqrt(hidden)
    w1 = jax.random.uniform(k1, (input_dim, hidden), jnp.float32, -bound1, bound1)
    b1 = jax.random.uniform(k2, (hidden,), jnp.float32, -bound1, bound1)
    w2 = jax.random.uniform(k3, (hidden, 1), jnp.float32, -bound2, bound2)
    b2 = jax.random.uniform(k4, (1,), jnp.float32, -bound2, bound2)
    return w1, b1, w2, b2


def _reference(x, w1, b1, w2, b2):
    return jax.nn.sigmoid(jnp.maximum(x @ w1 + b1, 0.0) @ w2 + b2)


if __name__ == "__main__":
    key = jax.random.PRNGKey(0)
    k_x, k_p, k_x2 = jax.random.split(key, 3)

    input_dim, hidden = 128, 128
    w1, b1, w2, b2 = init_params(k_p, input_dim=input_dim, hidden=hidden)

    # Small batch (exercises the padding path: 8 -> 512).
    batch = 8
    x = jax.random.normal(k_x, (batch, input_dim), jnp.float32)
    out = jax.block_until_ready(domain_discriminator_forward(x, w1, b1, w2, b2, tb=512))
    ref = _reference(x, w1, b1, w2, b2)
    assert out.shape == (batch, 1)
    assert jnp.allclose(out, ref, atol=1e-5, rtol=1e-5)

    # Multi-tile grid with a remainder (600 rows, TB=256 -> 3 grid steps, padded to 768).
    batch2 = 600
    x2 = jax.random.normal(k_x2, (batch2, input_dim), jnp.float32)
    out2 = jax.block_until_ready(domain_discriminator_forward(x2, w1, b1, w2, b2, tb=256))
    ref2 = _reference(x2, w1, b1, w2, b2)
    assert out2.shape == (batch2, 1)
    assert jnp.allclose(out2, ref2, atol=1e-5, rtol=1e-5)

    print("KERNEL_OK")
</pallas_src>

<mosaic_0001>
module attributes {stable_mosaic.version = 11 : i64} {
  func.func @_dd_kernel(%arg0: i32, %arg1: memref<512x128xf32, #tpu.memory_space<vmem>>, %arg2: memref<128x128xf32, #tpu.memory_space<vmem>>, %arg3: memref<1x128xf32, #tpu.memory_space<vmem>>, %arg4: memref<1x128xf32, #tpu.memory_space<vmem>>, %arg5: memref<1xf32, #tpu.memory_space<smem>>, %arg6: memref<1x512xf32, #tpu.memory_space<vmem>>) attributes {dimension_semantics = [#tpu.dimension_semantics<parallel>], iteration_bounds = array<i64: 1>, scalar_prefetch = 0 : i64, scratch_operands = 0 : i64, tpu.core_type = #tpu.core_type<tc>, window_params = [{transform_indices = @transform_0, window_bounds = array<i64: 512, 128>}, {pipeline_mode = #tpu.pipeline_mode<synchronous>, transform_indices = @transform_1, window_bounds = array<i64: 128, 128>}, {pipeline_mode = #tpu.pipeline_mode<synchronous>, transform_indices = @transform_2, window_bounds = array<i64: 1, 128>}, {pipeline_mode = #tpu.pipeline_mode<synchronous>, transform_indices = @transform_3, window_bounds = array<i64: 1, 128>}, {transform_indices = @transform_4, window_bounds = array<i64: 1>}, {transform_indices = @transform_5, window_bounds = array<i64: 1, 512>}]} {
    %c0 = arith.constant 0 : index
    %c0_0 = arith.constant 0 : index
    %0 = vector.load %arg1[%c0, %c0_0] : memref<512x128xf32, #tpu.memory_space<vmem>>, vector<512x128xf32>
    %c0_1 = arith.constant 0 : index
    %c0_2 = arith.constant 0 : index
    %1 = vector.load %arg2[%c0_1, %c0_2] : memref<128x128xf32, #tpu.memory_space<vmem>>, vector<128x128xf32>
    %cst = arith.constant dense<0.000000e+00> : vector<512x128xf32>
    %2 = tpu.matmul %0, %1, %cst {dimension_numbers = #tpu.dot_dimension_numbers<[1], [0], [0], [1], [0, 0, 1, 1], [], []>} : vector<512x128xf32>, vector<128x128xf32>, vector<512x128xf32> -> vector<512x128xf32>
    %c0_3 = arith.constant 0 : index
    %c0_4 = arith.constant 0 : index
    %3 = vector.load %arg3[%c0_3, %c0_4] : memref<1x128xf32, #tpu.memory_space<vmem>>, vector<1x128xf32>
    %4 = vector.broadcast %3 : vector<1x128xf32> to vector<512x128xf32>
    %5 = arith.addf %2, %4 : vector<512x128xf32>
    %cst_5 = arith.constant 0.000000e+00 : f32
    %6 = vector.broadcast %cst_5 : f32 to vector<512x128xf32>
    %7 = arith.maximumf %5, %6 : vector<512x128xf32>
    %c0_6 = arith.constant 0 : index
    %c0_7 = arith.constant 0 : index
    %8 = vector.load %arg4[%c0_6, %c0_7] : memref<1x128xf32, #tpu.memory_space<vmem>>, vector<1x128xf32>
    %9 = vector.broadcast %8 : vector<1x128xf32> to vector<512x128xf32>
    %10 = arith.mulf %7, %9 : vector<512x128xf32>
    %cst_8 = arith.constant dense<0.000000e+00> : vector<512xf32>
    %11 = vector.multi_reduction <add>, %10, %cst_8 [1] : vector<512x128xf32> to vector<512xf32>
    %c0_9 = arith.constant 0 : index
    %12 = memref.load %arg5[%c0_9] : memref<1xf32, #tpu.memory_space<smem>>
    %13 = vector.broadcast %12 : f32 to vector<512xf32>
    %14 = arith.addf %11, %13 : vector<512xf32>
    %15 = arith.negf %14 : vector<512xf32>
    %16 = math.exp %15 : vector<512xf32>
    %cst_10 = arith.constant 1.000000e+00 : f32
    %17 = vector.broadcast %cst_10 : f32 to vector<512xf32>
    %18 = arith.addf %17, %16 : vector<512xf32>
    %19 = arith.divf %17, %18 : vector<512xf32>
    %20 = vector.shape_cast %19 : vector<512xf32> to vector<1x512xf32>
    %c0_11 = arith.constant 0 : index
    %c0_12 = arith.constant 0 : index
    %21 = vector.load %arg6[%c0_11, %c0_12] : memref<1x512xf32, #tpu.memory_space<vmem>>, vector<1x512xf32>
    tpu.vector_store %arg6[%c0_11, %c0_12], %20 {strides = array<i32>} : memref<1x512xf32, #tpu.memory_space<vmem>>, vector<1x512xf32>,
    return
  }
  func.func @transform_0(%arg0: i32) -> (i32, i32) {
    %c0_i32 = arith.constant 0 : i32
    %c0_i32_0 = arith.constant 0 : i32
    return %arg0, %c0_i32 : i32, i32
  }
  func.func @transform_1(%arg0: i32) -> (i32, i32) {
    %c0_i32 = arith.constant 0 : i32
    %c0_i32_0 = arith.constant 0 : i32
    %c0_i32_1 = arith.constant 0 : i32
    return %c0_i32, %c0_i32_0 : i32, i32
  }
  func.func @transform_2(%arg0: i32) -> (i32, i32) {
    %c0_i32 = arith.constant 0 : i32
    %c0_i32_0 = arith.constant 0 : i32
    %c0_i32_1 = arith.constant 0 : i32
    return %c0_i32, %c0_i32_0 : i32, i32
  }
  func.func @transform_3(%arg0: i32) -> (i32, i32) {
    %c0_i32 = arith.constant 0 : i32
    %c0_i32_0 = arith.constant 0 : i32
    %c0_i32_1 = arith.constant 0 : i32
    return %c0_i32, %c0_i32_0 : i32, i32
  }
  func.func @transform_4(%arg0: i32) -> i32 {
    %c0_i32 = arith.constant 0 : i32
    %c0_i32_0 = arith.constant 0 : i32
    return %c0_i32 : i32
  }
  func.func @transform_5(%arg0: i32) -> (i32, i32) {
    %c0_i32 = arith.constant 0 : i32
    %c0_i32_0 = arith.constant 0 : i32
    return %arg0, %c0_i32 : i32, i32
  }
}

</mosaic_0001>

<llo_original>
// kernel: tpu_custom_call.1
$region0: #{tpu_custom_call.1}
  #allocation0 [shape = 'u32[]', space=smem, size = 0x4, offset = 0x4, fixed_abs, tag = 'smem constant byte address 0x4 - core index']
  #allocation1 [shape = 'u32[144,128]{1,0:T(1,128)}', space=vmem, size = 0x12000, scoped, tag = 'internal scratch']
  #allocation2 [shape = 'f32[1]{0:T(128)S(6)}', space=smem, size = 0x200, scoped, tag = 'scoped memory for tpu_custom_call.1']
  %s0 = inlined_call_operand.hbm [shape: f32[512,128], index: 0, kind: input, shape index: {}]
  %s1 = inlined_call_operand.hbm [shape: f32[128,128], index: 1, kind: input, shape index: {}]
  %s2 = inlined_call_operand.vmem [shape: f32[1,128], index: 2, kind: input, shape index: {}]
  %s3 = inlined_call_operand.vmem [shape: f32[1,128], index: 3, kind: input, shape index: {}]
  %s4 = inlined_call_operand.<no memory space> [shape: f32[1], index: 4, kind: input, shape index: {}]
  %s5 = inlined_call_operand.hbm [shape: f32[1,512], index: 5, kind: output, shape index: {}]
  %s6 = sld [smem:[#allocation0]]
  $region38: #{tpu_custom_call.1} parent=0
    _
  %s8 = ssub.s32 1, %s6
  %s9 = scalar_select 0, %s8, %s6
  %10 = sst [smem:[#allocation2]] %s4
  $region1: #{tpu_custom_call.1} parent=0
    #allocation3 [shape = 'u8[262144]{0}', space=vmem, size = 0x40000, scoped, tag = 'input window, operand 0, single buffered']
    #allocation4 [shape = 's32[1]{0}', space=sflag, size = 0x4, scoped, tag = 'scoped memory for tpu_custom_call.1']
    #allocation5 [shape = 's32[1]{0}', space=sflag, size = 0x4, scoped, tag = 'scoped memory for tpu_custom_call.1']
    #allocation6 [shape = 'u8[65536]{0}', space=vmem, size = 0x10000, scoped, tag = 'input window, operand 1, single buffered']
    #allocation7 [shape = 's32[1]{0}', space=sflag, size = 0x4, scoped, tag = 'scoped memory for tpu_custom_call.1']
    #allocation8 [shape = 'u8[2048]{0}', space=vmem, size = 0x800, scoped, tag = 'output window, operand 0, single buffered']
    %11 = vsyncpa [#allocation4], 0
    %12 = vsyncpa [#allocation7], 0
    %13 = vsyncpa [#allocation5], 0
    // Predicated region
    $region2: #{tpu_custom_call.1} parent=1 // pred_check
      _
    $region3: #{tpu_custom_call.1} parent=1 // pred_check_branch
      %15 = sbr.rel (0) target = $region5
    $region4: #{tpu_custom_call.1} parent=1 // pred_region
      %s17 = ssub.s32 8192, 8192
      %18 = vsyncadd [#allocation4], %s17
      %s19 = sshll.u32 [#allocation3], 4
      %s20 = int_to_ptr.vmem [resolvable:$true] %s19
      %25 = dma.hbm_to_vmem [thread:$0]  %s0, 8192, %s20, [#allocation4], 128, 128, 8
    $region5: #{tpu_custom_call.1} parent=1 // pred_fallthru
      _
    // Predicated region
    $region6: #{tpu_custom_call.1} parent=1 // pred_check
      _
    $region7: #{tpu_custom_call.1} parent=1 // pred_check_branch
      %27 = sbr.rel (0) target = $region9
    $region8: #{tpu_custom_call.1} parent=1 // pred_region
      %s29 = ssub.s32 2048, 2048
      %30 = vsyncadd [#allocation7], %s29
      %s31 = sshll.u32 [#allocation6], 4
      %s32 = int_to_ptr.vmem [resolvable:$true] %s31
      %37 = dma.hbm_to_vmem [thread:$0]  %s1, 2048, %s32, [#allocation7], 128, 128, 8
    $region9: #{tpu_custom_call.1} parent=1 // pred_fallthru
      _
    // Predicated region
    $region10: #{tpu_custom_call.1} parent=1 // pred_check
      _
    $region11: #{tpu_custom_call.1} parent=1 // pred_check_branch
      %39 = sbr.rel (0) target = $region13
    $region12: #{tpu_custom_call.1} parent=1 // pred_region
      _
    $region13: #{tpu_custom_call.1} parent=1 // pred_fallthru
      _
    // Predicated region
    $region14: #{tpu_custom_call.1} parent=1 // pred_check
      _
    $region15: #{tpu_custom_call.1} parent=1 // pred_check_branch
      %41 = sbr.rel (0) target = $region17
    $region16: #{tpu_custom_call.1} parent=1 // pred_region
      _
    $region17: #{tpu_custom_call.1} parent=1 // pred_fallthru
      _
    // Predicated region
    $region18: #{tpu_custom_call.1} parent=1 // pred_check
      _
    $region19: #{tpu_custom_call.1} parent=1 // pred_check_branch
      %43 = sbr.rel (0) target = $region21
    $region20: #{tpu_custom_call.1} parent=1 // pred_region
      _
    $region21: #{tpu_custom_call.1} parent=1 // pred_fallthru
      _
    // Predicated region
    $region22: #{tpu_custom_call.1} parent=1 // pred_check
      _
    $region23: #{tpu_custom_call.1} parent=1 // pred_check_branch
      %45 = sbr.rel (0) target = $region25
    $region24: #{tpu_custom_call.1} parent=1 // pred_region
      %46 = dma.done [#allocation4], 8192
    $region25: #{tpu_custom_call.1} parent=1 // pred_fallthru
      _
    // Predicated region
    $region26: #{tpu_custom_call.1} parent=1 // pred_check
      _
    $region27: #{tpu_custom_call.1} parent=1 // pred_check_branch
      %48 = sbr.rel (0) target = $region29
    $region28: #{tpu_custom_call.1} parent=1 // pred_region
      %49 = dma.done [#allocation7], 2048
    $region29: #{tpu_custom_call.1} parent=1 // pred_fallthru
      _
    %v50 = vld [vmem:[#allocation3] sm:$0xff]
    %v51 = vld [vmem:[#allocation3 + $0x8] sm:$0xff]
    %v52 = vld [vmem:[#allocation3 + $0x10] sm:$0xff]
    %v53 = vld [vmem:[#allocation3 + $0x18] sm:$0xff]
    %v54 = vld [vmem:[#allocation3 + $0x20] sm:$0xff]
    %v55 = vld [vmem:[#allocation3 + $0x28] sm:$0xff]
    %v56 = vld [vmem:[#allocation3 + $0x30] sm:$0xff]
    %v57 = vld [vmem:[#allocation3 + $0x38] sm:$0xff]
    %v58 = vld [vmem:[#allocation3 + $0x40] sm:$0xff]
    %v59 = vld [vmem:[#allocation3 + $0x48] sm:$0xff]
    %v60 = vld [vmem:[#allocation3 + $0x50] sm:$0xff]
    %v61 = vld [vmem:[#allocation3 + $0x58] sm:$0xff]
    %v62 = vld [vmem:[#allocation3 + $0x60] sm:$0xff]
    %v63 = vld [vmem:[#allocation3 + $0x68] sm:$0xff]
    %v64 = vld [vmem:[#allocation3 + $0x70] sm:$0xff]
    %v65 = vld [vmem:[#allocation3 + $0x78] sm:$0xff]
    %v66 = vld [vmem:[#allocation3 + $0x80] sm:$0xff]
    %v67 = vld [vmem:[#allocation3 + $0x88] sm:$0xff]
    %v68 = vld [vmem:[#allocation3 + $0x90] sm:$0xff]
    %v69 = vld [vmem:[#allocation3 + $0x98] sm:$0xff]
    %v70 = vld [vmem:[#allocation3 + $0xa0] sm:$0xff]
    %v71 = vld [vmem:[#allocation3 + $0xa8] sm:$0xff]
    %v72 = vld [vmem:[#allocation3 + $0xb0] sm:$0xff]
    %v73 = vld [vmem:[#allocation3 + $0xb8] sm:$0xff]
    %v74 = vld [vmem:[#allocation3 + $0xc0] sm:$0xff]
    %v75 = vld [vmem:[#allocation3 + $0xc8] sm:$0xff]
    %v76 = vld [vmem:[#allocation3 + $0xd0] sm:$0xff]
    %v77 = vld [vmem:[#allocation3 + $0xd8] sm:$0xff]
    %v78 = vld [vmem:[#allocation3 + $0xe0] sm:$0xff]
    %v79 = vld [vmem:[#allocation3 + $0xe8] sm:$0xff]
    %v80 = vld [vmem:[#allocation3 + $0xf0] sm:$0xff]
    %v81 = vld [vmem:[#allocation3 + $0xf8] sm:$0xff]
    %v82 = vld [vmem:[#allocation3 + $0x100] sm:$0xff]
    %v83 = vld [vmem:[#allocation3 + $0x108] sm:$0xff]
    %v84 = vld [vmem:[#allocation3 + $0x110] sm:$0xff]
    %v85 = vld [vmem:[#allocation3 + $0x118] sm:$0xff]
    %v86 = vld [vmem:[#allocation3 + $0x120] sm:$0xff]
    %v87 = vld [vmem:[#allocation3 + $0x128] sm:$0xff]
    %v88 = vld [vmem:[#allocation3 + $0x130] sm:$0xff]
    %v89 = vld [vmem:[#allocation3 + $0x138] sm:$0xff]
    %v90 = vld [vmem:[#allocation3 + $0x140] sm:$0xff]
    %v91 = vld [vmem:[#allocation3 + $0x148] sm:$0xff]
    %v92 = vld [vmem:[#allocation3 + $0x150] sm:$0xff]
    %v93 = vld [vmem:[#allocation3 + $0x158] sm:$0xff]
    %v94 = vld [vmem:[#allocation3 + $0x160] sm:$0xff]
    %v95 = vld [vmem:[#allocation3 + $0x168] sm:$0xff]
    %v96 = vld [vmem:[#allocation3 + $0x170] sm:$0xff]
    %v97 = vld [vmem:[#allocation3 + $0x178] sm:$0xff]
    %v98 = vld [vmem:[#allocation3 + $0x180] sm:$0xff]
    %v99 = vld [vmem:[#allocation3 + $0x188] sm:$0xff]
    %v100 = vld [vmem:[#allocation3 + $0x190] sm:$0xff]
    %v101 = vld [vmem:[#allocation3 + $0x198] sm:$0xff]
    %v102 = vld [vmem:[#allocation3 + $0x1a0] sm:$0xff]
    %v103 = vld [vmem:[#allocation3 + $0x1a8] sm:$0xff]
    %v104 = vld [vmem:[#allocation3 + $0x1b0] sm:$0xff]
    %v105 = vld [vmem:[#allocation3 + $0x1b8] sm:$0xff]
    %v106 = vld [vmem:[#allocation3 + $0x1c0] sm:$0xff]
    %v107 = vld [vmem:[#allocation3 + $0x1c8] sm:$0xff]
    %v108 = vld [vmem:[#allocation3 + $0x1d0] sm:$0xff]
    %v109 = vld [vmem:[#allocation3 + $0x1d8] sm:$0xff]
    %v110 = vld [vmem:[#allocation3 + $0x1e0] sm:$0xff]
    %v111 = vld [vmem:[#allocation3 + $0x1e8] sm:$0xff]
    %v112 = vld [vmem:[#allocation3 + $0x1f0] sm:$0xff]
    %v113 = vld [vmem:[#allocation3 + $0x1f8] sm:$0xff]
    %v114 = vld [vmem:[#allocation6] sm:$0xff]
    %v115 = vld [vmem:[#allocation6 + $0x8] sm:$0xff]
    %v116 = vld [vmem:[#allocation6 + $0x10] sm:$0xff]
    %v117 = vld [vmem:[#allocation6 + $0x18] sm:$0xff]
    %v118 = vld [vmem:[#allocation6 + $0x20] sm:$0xff]
    %v119 = vld [vmem:[#allocation6 + $0x28] sm:$0xff]
    %v120 = vld [vmem:[#allocation6 + $0x30] sm:$0xff]
    %v121 = vld [vmem:[#allocation6 + $0x38] sm:$0xff]
    %v122 = vld [vmem:[#allocation6 + $0x40] sm:$0xff]
    %v123 = vld [vmem:[#allocation6 + $0x48] sm:$0xff]
    %v124 = vld [vmem:[#allocation6 + $0x50] sm:$0xff]
    %v125 = vld [vmem:[#allocation6 + $0x58] sm:$0xff]
    %v126 = vld [vmem:[#allocation6 + $0x60] sm:$0xff]
    %v127 = vld [vmem:[#allocation6 + $0x68] sm:$0xff]
    %v128 = vld [vmem:[#allocation6 + $0x70] sm:$0xff]
    %v129 = vld [vmem:[#allocation6 + $0x78] sm:$0xff]
    %v130 = vld [vmem:[%s2] sm:$0x1]
    %v132 = vlaneseq
    %v133 = vshrl.u32 %v132, 7
    %v134 = vsub.s32 0, %v133
    %v135 = vrot.slane %v130, %v134
    %137 = vmatprep.subr.mxu0 0.0
    %138 = vmatpush1.msra.mxu0 %v114
    %139 = vmatprep.subr.mxu0 0.0
    %140 = vmatpush1.msra.mxu0 %v115
    %141 = vmatprep.subr.mxu0 0.0
    %142 = vmatpush1.msra.mxu0 %v116
    %143 = vmatprep.subr.mxu0 0.0
    %144 = vmatpush1.msra.mxu0 %v117
    %145 = vmatprep.subr.mxu0 0.0
    %146 = vmatpush1.msra.mxu0 %v118
    %147 = vmatprep.subr.mxu0 0.0
    %148 = vmatpush1.msra.mxu0 %v119
    %149 = vmatprep.subr.mxu0 0.0
    %150 = vmatpush1.msra.mxu0 %v120
    %151 = vmatprep.subr.mxu0 0.0
    %152 = vmatpush1.msra.mxu0 %v121
    %153 = vmatprep.subr.mxu0 0.0
    %154 = vmatpush1.msra.mxu0 %v122
    %155 = vmatprep.subr.mxu0 0.0
    %156 = vmatpush1.msra.mxu0 %v123
    %157 = vmatprep.subr.mxu0 0.0
    %158 = vmatpush1.msra.mxu0 %v124
    %159 = vmatprep.subr.mxu0 0.0
    %160 = vmatpush1.msra.mxu0 %v125
    %161 = vmatprep.subr.mxu0 0.0
    %162 = vmatpush1.msra.mxu0 %v126
    %163 = vmatprep.subr.mxu0 0.0
    %164 = vmatpush1.msra.mxu0 %v127
    %165 = vmatprep.subr.mxu0 0.0
    %166 = vmatpush1.msra.mxu0 %v128
    %167 = vmatprep.subr.mxu0 0.0
    %168 = vmatpush1.msra.mxu0 %v129
    %169 = vmatprep.subr.mxu0 0.0
    %170 = vmatpush1.msra.mxu0 0.0
    %171 = vmatprep.subr.mxu0 0.0
    %172 = vmatpush1.msra.mxu0 0.0
    %173 = vmatprep.subr.mxu0 0.0
    %174 = vmatpush1.msra.mxu0 0.0
    %175 = vmatprep.subr.mxu0 0.0
    %176 = vmatpush1.msra.mxu0 0.0
    %177 = vmatprep.subr.mxu0 0.0
    %178 = vmatpush1.msra.mxu0 0.0
    %179 = vmatprep.subr.mxu0 0.0
    %180 = vmatpush1.msra.mxu0 0.0
    %181 = vmatprep.subr.mxu0 0.0
    %182 = vmatpush1.msra.mxu0 0.0
    %183 = vmatprep.subr.mxu0 0.0
    %184 = vmatpush1.msra.mxu0 0.0
    %185 = vmatprep.subr.mxu0 0.0
    %186 = vmatpush1.msra.mxu0 0.0
    %187 = vmatprep.subr.mxu0 0.0
    %188 = vmatpush1.msra.mxu0 0.0
    %189 = vmatprep.subr.mxu0 0.0
    %190 = vmatpush1.msra.mxu0 0.0
    %191 = vmatprep.subr.mxu0 0.0
    %192 = vmatpush1.msra.mxu0 0.0
    %193 = vmatprep.subr.mxu0 0.0
    %194 = vmatpush1.msra.mxu0 0.0
    %195 = vmatprep.subr.mxu0 0.0
    %196 = vmatpush1.msra.mxu0 0.0
    %197 = vmatprep.subr.mxu0 0.0
    %198 = vmatpush1.msra.mxu0 0.0
    %199 = vmatprep.subr.mxu0 0.0
    %200 = vmatpush1.msra.mxu0 0.0
    %201 = vmatprep.mubr.f32.mxu0 0.0
    %202 = vmatmul.mubr.f32.gmra.mrb[0].mxu0 %v50
    %v203 = vpop.f32.mrb[0].mxu0
    %v204 = vadd.f32 %v135, %v203
    %v205 = vpop.f32.mrb[0].mxu0
    %206 = vmatprep.mubr.f32.mxu0 0.0
    %207 = vmatmul.mubr.f32.gmra.mrb[0].mxu0 %v51
    %v208 = vpop.f32.mrb[0].mxu0
    %v209 = vadd.f32 %v135, %v208
    %v210 = vpop.f32.mrb[0].mxu0
    %211 = vmatprep.mubr.f32.mxu0 0.0
    %212 = vmatmul.mubr.f32.gmra.mrb[0].mxu0 %v52
    %v213 = vpop.f32.mrb[0].mxu0
    %v214 = vadd.f32 %v135, %v213
    %v215 = vpop.f32.mrb[0].mxu0
    %216 = vmatprep.mubr.f32.mxu0 0.0
    %217 = vmatmul.mubr.f32.gmra.mrb[0].mxu0 %v53
    %v218 = vpop.f32.mrb[0].mxu0
    %v219 = vadd.f32 %v135, %v218
    %v220 = vpop.f32.mrb[0].mxu0
    %221 = vmatprep.mubr.f32.mxu0 0.0
    %222 = vmatmul.mubr.f32.gmra.mrb[0].mxu0 %v54
    %v223 = vpop.f32.mrb[0].mxu0
    %v224 = vadd.f32 %v135, %v223
    %v225 = vpop.f32.mrb[0].mxu0
    %226 = vmatprep.mubr.f32.mxu0 0.0
    %227 = vmatmul.mubr.f32.gmra.mrb[0].mxu0 %v55
    %v228 = vpop.f32.mrb[0].mxu0
    %v229 = vadd.f32 %v135, %v228
    %v230 = vpop.f32.mrb[0].mxu0
    %231 = vmatprep.mubr.f32.mxu0 0.0
    %232 = vmatmul.mubr.f32.gmra.mrb[0].mxu0 %v56
    %v233 = vpop.f32.mrb[0].mxu0
    %v234 = vadd.f32 %v135, %v233
    %v235 = vpop.f32.mrb[0].mxu0
    %236 = vmatprep.mubr.f32.mxu0 0.0
    %237 = vmatmul.mubr.f32.gmra.mrb[0].mxu0 %v57
    %v238 = vpop.f32.mrb[0].mxu0
    %v239 = vadd.f32 %v135, %v238
    %v240 = vpop.f32.mrb[0].mxu0
    %241 = vmatprep.mubr.f32.mxu0 0.0
    %242 = vmatmul.mubr.f32.gmra.mrb[0].mxu0 %v58
    %v243 = vpop.f32.mrb[0].mxu0
    %v244 = vadd.f32 %v135, %v243
    %v245 = vpop.f32.mrb[0].mxu0
    %246 = vmatprep.mubr.f32.mxu0 0.0
    %247 = vmatmul.mubr.f32.gmra.mrb[0].mxu0 %v59
    %v248 = vpop.f32.mrb[0].mxu0
    %v249 = vadd.f32 %v135, %v248
    %v250 = vpop.f32.mrb[0].mxu0
    %251 = vmatprep.mubr.f32.mxu0 0.0
    %252 = vmatmul.mubr.f32.gmra.mrb[0].mxu0 %v60
    %v253 = vpop.f32.mrb[0].mxu0
    %v254 = vadd.f32 %v135, %v253
    %v255 = vpop.f32.mrb[0].mxu0
    %256 = vmatprep.mubr.f32.mxu0 0.0
    %257 = vmatmul.mubr.f32.gmra.mrb[0].mxu0 %v61
    %v258 = vpop.f32.mrb[0].mxu0
    %v259 = vadd.f32 %v135, %v258
    %v260 = vpop.f32.mrb[0].mxu0
    %261 = vmatprep.mubr.f32.mxu0 0.0
    %262 = vmatmul.mubr.f32.gmra.mrb[0].mxu0 %v62
    %v263 = vpop.f32.mrb[0].mxu0
    %v264 = vadd.f32 %v135, %v263
    %v265 = vpop.f32.mrb[0].mxu0
    %266 = vmatprep.mubr.f32.mxu0 0.0
    %267 = vmatmul.mubr.f32.gmra.mrb[0].mxu0 %v63
    %v268 = vpop.f32.mrb[0].mxu0
    %v269 = vadd.f32 %v135, %v268
    %v270 = vpop.f32.mrb[0].mxu0
    %271 = vmatprep.mubr.f32.mxu0 0.0
    %272 = vmatmul.mubr.f32.gmra.mrb[0].mxu0 %v64
    %v273 = vpop.f32.mrb[0].mxu0
    %v274 = vadd.f32 %v135, %v273
    %v275 = vpop.f32.mrb[0].mxu0
    %276 = vmatprep.mubr.f32.mxu0 0.0
    %277 = vmatmul.mubr.f32.gmra.mrb[0].mxu0 %v65
    %v278 = vpop.f32.mrb[0].mxu0
    %v279 = vadd.f32 %v135, %v278
    %v280 = vpop.f32.mrb[0].mxu0
    %281 = vmatprep.mubr.f32.mxu0 0.0
    %282 = vmatmul.mubr.f32.gmra.mrb[0].mxu0 %v66
    %v283 = vpop.f32.mrb[0].mxu0
    %v284 = vadd.f32 %v135, %v283
    %v285 = vpop.f32.mrb[0].mxu0
    %286 = vmatprep.mubr.f32.mxu0 0.0
    %287 = vmatmul.mubr.f32.gmra.mrb[0].mxu0 %v67
    %v288 = vpop.f32.mrb[0].mxu0
    %v289 = vadd.f32 %v135, %v288
    %v290 = vpop.f32.mrb[0].mxu0
    %291 = vmatprep.mubr.f32.mxu0 0.0
    %292 = vmatmul.mubr.f32.gmra.mrb[0].mxu0 %v68
    %v293 = vpop.f32.mrb[0].mxu0
    %v294 = vadd.f32 %v135, %v293
    %v295 = vpop.f32.mrb[0].mxu0
    %296 = vmatprep.mubr.f32.mxu0 0.0
    %297 = vmatmul.mubr.f32.gmra.mrb[0].mxu0 %v69
    %v298 = vpop.f32.mrb[0].mxu0
    %v299 = vadd.f32 %v135, %v298
    %v300 = vpop.f32.mrb[0].mxu0
    %301 = vmatprep.mubr.f32.mxu0 0.0
    %302 = vmatmul.mubr.f32.gmra.mrb[0].mxu0 %v70
    %v303 = vpop.f32.mrb[0].mxu0
    %v304 = vadd.f32 %v135, %v303
    %v305 = vpop.f32.mrb[0].mxu0
    %306 = vmatprep.mubr.f32.mxu0 0.0
    %307 = vmatmul.mubr.f32.gmra.mrb[0].mxu0 %v71
    %v308 = vpop.f32.mrb[0].mxu0
    %v309 = vadd.f32 %v135, %v308
    %v310 = vpop.f32.mrb[0].mxu0
    %311 = vmatprep.mubr.f32.mxu0 0.0
    %312 = vmatmul.mubr.f32.gmra.mrb[0].mxu0 %v72
    %v313 = vpop.f32.mrb[0].mxu0
    %v314 = vadd.f32 %v135, %v313
    %v315 = vpop.f32.mrb[0].mxu0
    %316 = vmatprep.mubr.f32.mxu0 0.0
    %317 = vmatmul.mubr.f32.gmra.mrb[0].mxu0 %v73
    %v318 = vpop.f32.mrb[0].mxu0
    %v319 = vadd.f32 %v135, %v318
    %v320 = vpop.f32.mrb[0].mxu0
    %321 = vmatprep.mubr.f32.mxu0 0.0
    %322 = vmatmul.mubr.f32.gmra.mrb[0].mxu0 %v74
    %v323 = vpop.f32.mrb[0].mxu0
    %v324 = vadd.f32 %v135, %v323
    %v325 = vpop.f32.mrb[0].mxu0
    %326 = vmatprep.mubr.f32.mxu0 0.0
    %327 = vmatmul.mubr.f32.gmra.mrb[0].mxu0 %v75
    %v328 = vpop.f32.mrb[0].mxu0
    %v329 = vadd.f32 %v135, %v328
    %v330 = vpop.f32.mrb[0].mxu0
    %331 = vmatprep.mubr.f32.mxu0 0.0
    %332 = vmatmul.mubr.f32.gmra.mrb[0].mxu0 %v76
    %v333 = vpop.f32.mrb[0].mxu0
    %v334 = vadd.f32 %v135, %v333
    %v335 = vpop.f32.mrb[0].mxu0
    %336 = vmatprep.mubr.f32.mxu0 0.0
    %337 = vmatmul.mubr.f32.gmra.mrb[0].mxu0 %v77
    %v338 = vpop.f32.mrb[0].mxu0
    %v339 = vadd.f32 %v135, %v338
    %v340 = vpop.f32.mrb[0].mxu0
    %341 = vmatprep.mubr.f32.mxu0 0.0
    %342 = vmatmul.mubr.f32.gmra.mrb[0].mxu0 %v78
    %v343 = vpop.f32.mrb[0].mxu0
    %v344 = vadd.f32 %v135, %v343
    %v345 = vpop.f32.mrb[0].mxu0
    %346 = vmatprep.mubr.f32.mxu0 0.0
    %347 = vmatmul.mubr.f32.gmra.mrb[0].mxu0 %v79
    %v348 = vpop.f32.mrb[0].mxu0
    %v349 = vadd.f32 %v135, %v348
    %v350 = vpop.f32.mrb[0].mxu0
    %351 = vmatprep.mubr.f32.mxu0 0.0
    %352 = vmatmul.mubr.f32.gmra.mrb[0].mxu0 %v80
    %v353 = vpop.f32.mrb[0].mxu0
    %v354 = vadd.f32 %v135, %v353
    %v355 = vpop.f32.mrb[0].mxu0
    %356 = vmatprep.mubr.f32.mxu0 0.0
    %357 = vmatmul.mubr.f32.gmra.mrb[0].mxu0 %v81
    %v358 = vpop.f32.mrb[0].mxu0
    %v359 = vadd.f32 %v135, %v358
    %v360 = vpop.f32.mrb[0].mxu0
    %361 = vmatprep.mubr.f32.mxu0 0.0
    %362 = vmatmul.mubr.f32.gmra.mrb[0].mxu0 %v82
    %v363 = vpop.f32.mrb[0].mxu0
    %v364 = vadd.f32 %v135, %v363
    %v365 = vpop.f32.mrb[0].mxu0
    %366 = vmatprep.mubr.f32.mxu0 0.0
    %367 = vmatmul.mubr.f32.gmra.mrb[0].mxu0 %v83
    %v368 = vpop.f32.mrb[0].mxu0
    %v369 = vadd.f32 %v135, %v368
    %v370 = vpop.f32.mrb[0].mxu0
    %371 = vmatprep.mubr.f32.mxu0 0.0
    %372 = vmatmul.mubr.f32.gmra.mrb[0].mxu0 %v84
    %v373 = vpop.f32.mrb[0].mxu0
    %v374 = vadd.f32 %v135, %v373
    %v375 = vpop.f32.mrb[0].mxu0
    %376 = vmatprep.mubr.f32.mxu0 0.0
    %377 = vmatmul.mubr.f32.gmra.mrb[0].mxu0 %v85
    %v378 = vpop.f32.mrb[0].mxu0
    %v379 = vadd.f32 %v135, %v378
    %v380 = vpop.f32.mrb[0].mxu0
    %381 = vmatprep.mubr.f32.mxu0 0.0
    %382 = vmatmul.mubr.f32.gmra.mrb[0].mxu0 %v86
    %v383 = vpop.f32.mrb[0].mxu0
    %v384 = vadd.f32 %v135, %v383
    %v385 = vpop.f32.mrb[0].mxu0
    %386 = vmatprep.mubr.f32.mxu0 0.0
    %387 = vmatmul.mubr.f32.gmra.mrb[0].mxu0 %v87
    %v388 = vpop.f32.mrb[0].mxu0
    %v389 = vadd.f32 %v135, %v388
    %v390 = vpop.f32.mrb[0].mxu0
    %391 = vmatprep.mubr.f32.mxu0 0.0
    %392 = vmatmul.mubr.f32.gmra.mrb[0].mxu0 %v88
    %v393 = vpop.f32.mrb[0].mxu0
    %v394 = vadd.f32 %v135, %v393
    %v395 = vpop.f32.mrb[0].mxu0
    %396 = vmatprep.mubr.f32.mxu0 0.0
    %397 = vmatmul.mubr.f32.gmra.mrb[0].mxu0 %v89
    %v398 = vpop.f32.mrb[0].mxu0
    %v399 = vadd.f32 %v135, %v398
    %v400 = vpop.f32.mrb[0].mxu0
    %401 = vmatprep.mubr.f32.mxu0 0.0
    %402 = vmatmul.mubr.f32.gmra.mrb[0].mxu0 %v90
    %v403 = vpop.f32.mrb[0].mxu0
    %v404 = vadd.f32 %v135, %v403
    %v405 = vpop.f32.mrb[0].mxu0
    %406 = vmatprep.mubr.f32.mxu0 0.0
    %407 = vmatmul.mubr.f32.gmra.mrb[0].mxu0 %v91
    %v408 = vpop.f32.mrb[0].mxu0
    %v409 = vadd.f32 %v135, %v408
    %v410 = vpop.f32.mrb[0].mxu0
    %411 = vmatprep.mubr.f32.mxu0 0.0
    %412 = vmatmul.mubr.f32.gmra.mrb[0].mxu0 %v92
    %v413 = vpop.f32.mrb[0].mxu0
    %v414 = vadd.f32 %v135, %v413
    %v415 = vpop.f32.mrb[0].mxu0
    %416 = vmatprep.mubr.f32.mxu0 0.0
    %417 = vmatmul.mubr.f32.gmra.mrb[0].mxu0 %v93
    %v418 = vpop.f32.mrb[0].mxu0
    %v419 = vadd.f32 %v135, %v418
    %v420 = vpop.f32.mrb[0].mxu0
    %421 = vmatprep.mubr.f32.mxu0 0.0
    %422 = vmatmul.mubr.f32.gmra.mrb[0].mxu0 %v94
    %v423 = vpop.f32.mrb[0].mxu0
    %v424 = vadd.f32 %v135, %v423
    %v425 = vpop.f32.mrb[0].mxu0
    %426 = vmatprep.mubr.f32.mxu0 0.0
    %427 = vmatmul.mubr.f32.gmra.mrb[0].mxu0 %v95
    %v428 = vpop.f32.mrb[0].mxu0
    %v429 = vadd.f32 %v135, %v428
    %v430 = vpop.f32.mrb[0].mxu0
    %431 = vmatprep.mubr.f32.mxu0 0.0
    %432 = vmatmul.mubr.f32.gmra.mrb[0].mxu0 %v96
    %v433 = vpop.f32.mrb[0].mxu0
    %v434 = vadd.f32 %v135, %v433
    %v435 = vpop.f32.mrb[0].mxu0
    %436 = vmatprep.mubr.f32.mxu0 0.0
    %437 = vmatmul.mubr.f32.gmra.mrb[0].mxu0 %v97
    %v438 = vpop.f32.mrb[0].mxu0
    %v439 = vadd.f32 %v135, %v438
    %v440 = vpop.f32.mrb[0].mxu0
    %441 = vmatprep.mubr.f32.mxu0 0.0
    %442 = vmatmul.mubr.f32.gmra.mrb[0].mxu0 %v98
    %v443 = vpop.f32.mrb[0].mxu0
    %v444 = vadd.f32 %v135, %v443
    %v445 = vpop.f32.mrb[0].mxu0
    %446 = vmatprep.mubr.f32.mxu0 0.0
    %447 = vmatmul.mubr.f32.gmra.mrb[0].mxu0 %v99
    %v448 = vpop.f32.mrb[0].mxu0
    %v449 = vadd.f32 %v135, %v448
    %v450 = vpop.f32.mrb[0].mxu0
    %451 = vmatprep.mubr.f32.mxu0 0.0
    %452 = vmatmul.mubr.f32.gmra.mrb[0].mxu0 %v100
    %v453 = vpop.f32.mrb[0].mxu0
    %v454 = vadd.f32 %v135, %v453
    %v455 = vpop.f32.mrb[0].mxu0
    %456 = vmatprep.mubr.f32.mxu0 0.0
    %457 = vmatmul.mubr.f32.gmra.mrb[0].mxu0 %v101
    %v458 = vpop.f32.mrb[0].mxu0
    %v459 = vadd.f32 %v135, %v458
    %v460 = vpop.f32.mrb[0].mxu0
    %461 = vmatprep.mubr.f32.mxu0 0.0
    %462 = vmatmul.mubr.f32.gmra.mrb[0].mxu0 %v102
    %v463 = vpop.f32.mrb[0].mxu0
    %v464 = vadd.f32 %v135, %v463
    %v465 = vpop.f32.mrb[0].mxu0
    %466 = vmatprep.mubr.f32.mxu0 0.0
    %467 = vmatmul.mubr.f32.gmra.mrb[0].mxu0 %v103
    %v468 = vpop.f32.mrb[0].mxu0
    %v469 = vadd.f32 %v135, %v468
    %v470 = vpop.f32.mrb[0].mxu0
    %471 = vmatprep.mubr.f32.mxu0 0.0
    %472 = vmatmul.mubr.f32.gmra.mrb[0].mxu0 %v104
    %v473 = vpop.f32.mrb[0].mxu0
    %v474 = vadd.f32 %v135, %v473
    %v475 = vpop.f32.mrb[0].mxu0
    %476 = vmatprep.mubr.f32.mxu0 0.0
    %477 = vmatmul.mubr.f32.gmra.mrb[0].mxu0 %v105
    %v478 = vpop.f32.mrb[0].mxu0
    %v479 = vadd.f32 %v135, %v478
    %v480 = vpop.f32.mrb[0].mxu0
    %481 = vmatprep.mubr.f32.mxu0 0.0
    %482 = vmatmul.mubr.f32.gmra.mrb[0].mxu0 %v106
    %v483 = vpop.f32.mrb[0].mxu0
    %v484 = vadd.f32 %v135, %v483
    %v485 = vpop.f32.mrb[0].mxu0
    %486 = vmatprep.mubr.f32.mxu0 0.0
    %487 = vmatmul.mubr.f32.gmra.mrb[0].mxu0 %v107
    %v488 = vpop.f32.mrb[0].mxu0
    %v489 = vadd.f32 %v135, %v488
    %v490 = vpop.f32.mrb[0].mxu0
    %491 = vmatprep.mubr.f32.mxu0 0.0
    %492 = vmatmul.mubr.f32.gmra.mrb[0].mxu0 %v108
    %v493 = vpop.f32.mrb[0].mxu0
    %v494 = vadd.f32 %v135, %v493
    %v495 = vpop.f32.mrb[0].mxu0
    %496 = vmatprep.mubr.f32.mxu0 0.0
    %497 = vmatmul.mubr.f32.gmra.mrb[0].mxu0 %v109
    %v498 = vpop.f32.mrb[0].mxu0
    %v499 = vadd.f32 %v135, %v498
    %v500 = vpop.f32.mrb[0].mxu0
    %501 = vmatprep.mubr.f32.mxu0 0.0
    %502 = vmatmul.mubr.f32.gmra.mrb[0].mxu0 %v110
    %v503 = vpop.f32.mrb[0].mxu0
    %v504 = vadd.f32 %v135, %v503
    %v505 = vpop.f32.mrb[0].mxu0
    %506 = vmatprep.mubr.f32.mxu0 0.0
    %507 = vmatmul.mubr.f32.gmra.mrb[0].mxu0 %v111
    %v508 = vpop.f32.mrb[0].mxu0
    %v509 = vadd.f32 %v135, %v508
    %v510 = vpop.f32.mrb[0].mxu0
    %511 = vmatprep.mubr.f32.mxu0 0.0
    %512 = vmatmul.mubr.f32.gmra.mrb[0].mxu0 %v112
    %v513 = vpop.f32.mrb[0].mxu0
    %v514 = vadd.f32 %v135, %v513
    %v515 = vpop.f32.mrb[0].mxu0
    %516 = vmatprep.mubr.f32.mxu0 0.0
    %517 = vmatmul.mubr.f32.gmra.mrb[0].mxu0 %v113
    %v518 = vpop.f32.mrb[0].mxu0
    %v519 = vadd.f32 %v135, %v518
    %v520 = vpop.f32.mrb[0].mxu0
    %521 = vdwg.mxu0
    %v522 = vmax.f32 %v204, 0.0
    %v523 = vmax.f32 %v209, 0.0
    %v524 = vmax.f32 %v214, 0.0
    %v525 = vmax.f32 %v219, 0.0
    %v526 = vmax.f32 %v224, 0.0
    %v527 = vmax.f32 %v229, 0.0
    %v528 = vmax.f32 %v234, 0.0
    %v529 = vmax.f32 %v239, 0.0
    %v530 = vmax.f32 %v244, 0.0
    %v531 = vmax.f32 %v249, 0.0
    %v532 = vmax.f32 %v254, 0.0
    %v533 = vmax.f32 %v259, 0.0
    %v534 = vmax.f32 %v264, 0.0
    %v535 = vmax.f32 %v269, 0.0
    %v536 = vmax.f32 %v274, 0.0
    %v537 = vmax.f32 %v279, 0.0
    %v538 = vmax.f32 %v284, 0.0
    %v539 = vmax.f32 %v289, 0.0
    %v540 = vmax.f32 %v294, 0.0
    %v541 = vmax.f32 %v299, 0.0
    %v542 = vmax.f32 %v304, 0.0
    %v543 = vmax.f32 %v309, 0.0
    %v544 = vmax.f32 %v314, 0.0
    %v545 = vmax.f32 %v319, 0.0
    %v546 = vmax.f32 %v324, 0.0
    %v547 = vmax.f32 %v329, 0.0
    %v548 = vmax.f32 %v334, 0.0
    %v549 = vmax.f32 %v339, 0.0
    %v550 = vmax.f32 %v344, 0.0
    %v551 = vmax.f32 %v349, 0.0
    %v552 = vmax.f32 %v354, 0.0
    %v553 = vmax.f32 %v359, 0.0
    %v554 = vmax.f32 %v364, 0.0
    %v555 = vmax.f32 %v369, 0.0
    %v556 = vmax.f32 %v374, 0.0
    %v557 = vmax.f32 %v379, 0.0
    %v558 = vmax.f32 %v384, 0.0
    %v559 = vmax.f32 %v389, 0.0
    %v560 = vmax.f32 %v394, 0.0
    %v561 = vmax.f32 %v399, 0.0
    %v562 = vmax.f32 %v404, 0.0
    %v563 = vmax.f32 %v409, 0.0
    %v564 = vmax.f32 %v414, 0.0
    %v565 = vmax.f32 %v419, 0.0
    %v566 = vmax.f32 %v424, 0.0
    %v567 = vmax.f32 %v429, 0.0
    %v568 = vmax.f32 %v434, 0.0
    %v569 = vmax.f32 %v439, 0.0
    %v570 = vmax.f32 %v444, 0.0
    %v571 = vmax.f32 %v449, 0.0
    %v572 = vmax.f32 %v454, 0.0
    %v573 = vmax.f32 %v459, 0.0
    %v574 = vmax.f32 %v464, 0.0
    %v575 = vmax.f32 %v469, 0.0
    %v576 = vmax.f32 %v474, 0.0
    %v577 = vmax.f32 %v479, 0.0
    %v578 = vmax.f32 %v484, 0.0
    %v579 = vmax.f32 %v489, 0.0
    %v580 = vmax.f32 %v494, 0.0
    %v581 = vmax.f32 %v499, 0.0
    %v582 = vmax.f32 %v504, 0.0
    %v583 = vmax.f32 %v509, 0.0
    %v584 = vmax.f32 %v514, 0.0
    %v585 = vmax.f32 %v519, 0.0
    %v586 = vld [vmem:[%s3] sm:$0x1]
    %v588 = vlaneseq
    %v589 = vshrl.u32 %v588, 7
    %v590 = vsub.s32 0, %v589
    %v591 = vrot.slane %v586, %v590
    %v593 = vmul.f32 %v522, %v591
    %v594 = vmul.f32 %v523, %v591
    %v595 = vmul.f32 %v524, %v591
    %v596 = vmul.f32 %v525, %v591
    %v597 = vmul.f32 %v526, %v591
    %v598 = vmul.f32 %v527, %v591
    %v599 = vmul.f32 %v528, %v591
    %v600 = vmul.f32 %v529, %v591
    %v601 = vmul.f32 %v530, %v591
    %v602 = vmul.f32 %v531, %v591
    %v603 = vmul.f32 %v532, %v591
    %v604 = vmul.f32 %v533, %v591
    %v605 = vmul.f32 %v534, %v591
    %v606 = vmul.f32 %v535, %v591
    %v607 = vmul.f32 %v536, %v591
    %v608 = vmul.f32 %v537, %v591
    %v609 = vmul.f32 %v538, %v591
    %v610 = vmul.f32 %v539, %v591
    %v611 = vmul.f32 %v540, %v591
    %v612 = vmul.f32 %v541, %v591
    %v613 = vmul.f32 %v542, %v591
    %v614 = vmul.f32 %v543, %v591
    %v615 = vmul.f32 %v544, %v591
    %v616 = vmul.f32 %v545, %v591
    %v617 = vmul.f32 %v546, %v591
    %v618 = vmul.f32 %v547, %v591
    %v619 = vmul.f32 %v548, %v591
    %v620 = vmul.f32 %v549, %v591
    %v621 = vmul.f32 %v550, %v591
    %v622 = vmul.f32 %v551, %v591
    %v623 = vmul.f32 %v552, %v591
    %v624 = vmul.f32 %v553, %v591
    %v625 = vmul.f32 %v554, %v591
    %v626 = vmul.f32 %v555, %v591
    %v627 = vmul.f32 %v556, %v591
    %v628 = vmul.f32 %v557, %v591
    %v629 = vmul.f32 %v558, %v591
    %v630 = vmul.f32 %v559, %v591
    %v631 = vmul.f32 %v560, %v591
    %v632 = vmul.f32 %v561, %v591
    %v633 = vmul.f32 %v562, %v591
    %v634 = vmul.f32 %v563, %v591
    %v635 = vmul.f32 %v564, %v591
    %v636 = vmul.f32 %v565, %v591
    %v637 = vmul.f32 %v566, %v591
    %v638 = vmul.f32 %v567, %v591
    %v639 = vmul.f32 %v568, %v591
    %v640 = vmul.f32 %v569, %v591
    %v641 = vmul.f32 %v570, %v591
    %v642 = vmul.f32 %v571, %v591
    %v643 = vmul.f32 %v572, %v591
    %v644 = vmul.f32 %v573, %v591
    %v645 = vmul.f32 %v574, %v591
    %v646 = vmul.f32 %v575, %v591
    %v647 = vmul.f32 %v576, %v591
    %v648 = vmul.f32 %v577, %v591
    %v649 = vmul.f32 %v578, %v591
    %v650 = vmul.f32 %v579, %v591
    %v651 = vmul.f32 %v580, %v591
    %v652 = vmul.f32 %v581, %v591
    %v653 = vmul.f32 %v582, %v591
    %v654 = vmul.f32 %v583, %v591
    %v655 = vmul.f32 %v584, %v591
    %v656 = vmul.f32 %v585, %v591
    %657 = vadd.xlane.f32.xlu0 %v593
    %v658 = vpop.xlane.xlu0 %657
    %659 = vadd.xlane.f32.xlu0 %v594
    %v660 = vpop.xlane.xlu0 %659
    %661 = vadd.xlane.f32.xlu0 %v595
    %v662 = vpop.xlane.xlu0 %661
    %663 = vadd.xlane.f32.xlu0 %v596
    %v664 = vpop.xlane.xlu0 %663
    %665 = vadd.xlane.f32.xlu0 %v597
    %v666 = vpop.xlane.xlu0 %665
    %667 = vadd.xlane.f32.xlu0 %v598
    %v668 = vpop.xlane.xlu0 %667
    %669 = vadd.xlane.f32.xlu0 %v599
    %v670 = vpop.xlane.xlu0 %669
    %671 = vadd.xlane.f32.xlu0 %v600
    %v672 = vpop.xlane.xlu0 %671
    %673 = vadd.xlane.f32.xlu0 %v601
    %v674 = vpop.xlane.xlu0 %673
    %675 = vadd.xlane.f32.xlu0 %v602
    %v676 = vpop.xlane.xlu0 %675
    %677 = vadd.xlane.f32.xlu0 %v603
    %v678 = vpop.xlane.xlu0 %677
    %679 = vadd.xlane.f32.xlu0 %v604
    %v680 = vpop.xlane.xlu0 %679
    %681 = vadd.xlane.f32.xlu0 %v605
    %v682 = vpop.xlane.xlu0 %681
    %683 = vadd.xlane.f32.xlu0 %v606
    %v684 = vpop.xlane.xlu0 %683
    %685 = vadd.xlane.f32.xlu0 %v607
    %v686 = vpop.xlane.xlu0 %685
    %687 = vadd.xlane.f32.xlu0 %v608
    %v688 = vpop.xlane.xlu0 %687
    %689 = vadd.xlane.f32.xlu0 %v609
    %v690 = vpop.xlane.xlu0 %689
    %691 = vadd.xlane.f32.xlu0 %v610
    %v692 = vpop.xlane.xlu0 %691
    %693 = vadd.xlane.f32.xlu0 %v611
    %v694 = vpop.xlane.xlu0 %693
    %695 = vadd.xlane.f32.xlu0 %v612
    %v696 = vpop.xlane.xlu0 %695
    %697 = vadd.xlane.f32.xlu0 %v613
    %v698 = vpop.xlane.xlu0 %697
    %699 = vadd.xlane.f32.xlu0 %v614
    %v700 = vpop.xlane.xlu0 %699
    %701 = vadd.xlane.f32.xlu0 %v615
    %v702 = vpop.xlane.xlu0 %701
    %703 = vadd.xlane.f32.xlu0 %v616
    %v704 = vpop.xlane.xlu0 %703
    %705 = vadd.xlane.f32.xlu0 %v617
    %v706 = vpop.xlane.xlu0 %705
    %707 = vadd.xlane.f32.xlu0 %v618
    %v708 = vpop.xlane.xlu0 %707
    %709 = vadd.xlane.f32.xlu0 %v619
    %v710 = vpop.xlane.xlu0 %709
    %711 = vadd.xlane.f32.xlu0 %v620
    %v712 = vpop.xlane.xlu0 %711
    %713 = vadd.xlane.f32.xlu0 %v621
    %v714 = vpop.xlane.xlu0 %713
    %715 = vadd.xlane.f32.xlu0 %v622
    %v716 = vpop.xlane.xlu0 %715
    %717 = vadd.xlane.f32.xlu0 %v623
    %v718 = vpop.xlane.xlu0 %717
    %719 = vadd.xlane.f32.xlu0 %v624
    %v720 = vpop.xlane.xlu0 %719
    %721 = vadd.xlane.f32.xlu0 %v625
    %v722 = vpop.xlane.xlu0 %721
    %723 = vadd.xlane.f32.xlu0 %v626
    %v724 = vpop.xlane.xlu0 %723
    %725 = vadd.xlane.f32.xlu0 %v627
    %v726 = vpop.xlane.xlu0 %725
    %727 = vadd.xlane.f32.xlu0 %v628
    %v728 = vpop.xlane.xlu0 %727
    %729 = vadd.xlane.f32.xlu0 %v629
    %v730 = vpop.xlane.xlu0 %729
    %731 = vadd.xlane.f32.xlu0 %v630
    %v732 = vpop.xlane.xlu0 %731
    %733 = vadd.xlane.f32.xlu0 %v631
    %v734 = vpop.xlane.xlu0 %733
    %735 = vadd.xlane.f32.xlu0 %v632
    %v736 = vpop.xlane.xlu0 %735
    %737 = vadd.xlane.f32.xlu0 %v633
    %v738 = vpop.xlane.xlu0 %737
    %739 = vadd.xlane.f32.xlu0 %v634
    %v740 = vpop.xlane.xlu0 %739
    %741 = vadd.xlane.f32.xlu0 %v635
    %v742 = vpop.xlane.xlu0 %741
    %743 = vadd.xlane.f32.xlu0 %v636
    %v744 = vpop.xlane.xlu0 %743
    %745 = vadd.xlane.f32.xlu0 %v637
    %v746 = vpop.xlane.xlu0 %745
    %747 = vadd.xlane.f32.xlu0 %v638
    %v748 = vpop.xlane.xlu0 %747
    %749 = vadd.xlane.f32.xlu0 %v639
    %v750 = vpop.xlane.xlu0 %749
    %751 = vadd.xlane.f32.xlu0 %v640
    %v752 = vpop.xlane.xlu0 %751
    %753 = vadd.xlane.f32.xlu0 %v641
    %v754 = vpop.xlane.xlu0 %753
    %755 = vadd.xlane.f32.xlu0 %v642
    %v756 = vpop.xlane.xlu0 %755
    %757 = vadd.xlane.f32.xlu0 %v643
    %v758 = vpop.xlane.xlu0 %757
    %759 = vadd.xlane.f32.xlu0 %v644
    %v760 = vpop.xlane.xlu0 %759
    %761 = vadd.xlane.f32.xlu0 %v645
    %v762 = vpop.xlane.xlu0 %761
    %763 = vadd.xlane.f32.xlu0 %v646
    %v764 = vpop.xlane.xlu0 %763
    %765 = vadd.xlane.f32.xlu0 %v647
    %v766 = vpop.xlane.xlu0 %765
    %767 = vadd.xlane.f32.xlu0 %v648
    %v768 = vpop.xlane.xlu0 %767
    %769 = vadd.xlane.f32.xlu0 %v649
    %v770 = vpop.xlane.xlu0 %769
    %771 = vadd.xlane.f32.xlu0 %v650
    %v772 = vpop.xlane.xlu0 %771
    %773 = vadd.xlane.f32.xlu0 %v651
    %v774 = vpop.xlane.xlu0 %773
    %775 = vadd.xlane.f32.xlu0 %v652
    %v776 = vpop.xlane.xlu0 %775
    %777 = vadd.xlane.f32.xlu0 %v653
    %v778 = vpop.xlane.xlu0 %777
    %779 = vadd.xlane.f32.xlu0 %v654
    %v780 = vpop.xlane.xlu0 %779
    %781 = vadd.xlane.f32.xlu0 %v655
    %v782 = vpop.xlane.xlu0 %781
    %783 = vadd.xlane.f32.xlu0 %v656
    %v784 = vpop.xlane.xlu0 %783
    %s785 = sld [smem:[#allocation2]]
    %v786 = vstv %s785
    %v787 = vadd.f32 %v658, %v786
    %v788 = vadd.f32 %v660, %v786
    %v789 = vadd.f32 %v662, %v786
    %v790 = vadd.f32 %v664, %v786
    %v791 = vadd.f32 %v666, %v786
    %v792 = vadd.f32 %v668, %v786
    %v793 = vadd.f32 %v670, %v786
    %v794 = vadd.f32 %v672, %v786
    %v795 = vadd.f32 %v674, %v786
    %v796 = vadd.f32 %v676, %v786
    %v797 = vadd.f32 %v678, %v786
    %v798 = vadd.f32 %v680, %v786
    %v799 = vadd.f32 %v682, %v786
    %v800 = vadd.f32 %v684, %v786
    %v801 = vadd.f32 %v686, %v786
    %v802 = vadd.f32 %v688, %v786
    %v803 = vadd.f32 %v690, %v786
    %v804 = vadd.f32 %v692, %v786
    %v805 = vadd.f32 %v694, %v786
    %v806 = vadd.f32 %v696, %v786
    %v807 = vadd.f32 %v698, %v786
    %v808 = vadd.f32 %v700, %v786
    %v809 = vadd.f32 %v702, %v786
    %v810 = vadd.f32 %v704, %v786
    %v811 = vadd.f32 %v706, %v786
    %v812 = vadd.f32 %v708, %v786
    %v813 = vadd.f32 %v710, %v786
    %v814 = vadd.f32 %v712, %v786
    %v815 = vadd.f32 %v714, %v786
    %v816 = vadd.f32 %v716, %v786
    %v817 = vadd.f32 %v718, %v786
    %v818 = vadd.f32 %v720, %v786
    %v819 = vadd.f32 %v722, %v786
    %v820 = vadd.f32 %v724, %v786
    %v821 = vadd.f32 %v726, %v786
    %v822 = vadd.f32 %v728, %v786
    %v823 = vadd.f32 %v730, %v786
    %v824 = vadd.f32 %v732, %v786
    %v825 = vadd.f32 %v734, %v786
    %v826 = vadd.f32 %v736, %v786
    %v827 = vadd.f32 %v738, %v786
    %v828 = vadd.f32 %v740, %v786
    %v829 = vadd.f32 %v742, %v786
    %v830 = vadd.f32 %v744, %v786
    %v831 = vadd.f32 %v746, %v786
    %v832 = vadd.f32 %v748, %v786
    %v833 = vadd.f32 %v750, %v786
    %v834 = vadd.f32 %v752, %v786
    %v835 = vadd.f32 %v754, %v786
    %v836 = vadd.f32 %v756, %v786
    %v837 = vadd.f32 %v758, %v786
    %v838 = vadd.f32 %v760, %v786
    %v839 = vadd.f32 %v762, %v786
    %v840 = vadd.f32 %v764, %v786
    %v841 = vadd.f32 %v766, %v786
    %v842 = vadd.f32 %v768, %v786
    %v843 = vadd.f32 %v770, %v786
    %v844 = vadd.f32 %v772, %v786
    %v845 = vadd.f32 %v774, %v786
    %v846 = vadd.f32 %v776, %v786
    %v847 = vadd.f32 %v778, %v786
    %v848 = vadd.f32 %v780, %v786
    %v849 = vadd.f32 %v782, %v786
    %v850 = vadd.f32 %v784, %v786
    %v851 = vxor.u32 %v787, 2147483648
    %v852 = vxor.u32 %v788, 2147483648
    %v853 = vxor.u32 %v789, 2147483648
    %v854 = vxor.u32 %v790, 2147483648
    %v855 = vxor.u32 %v791, 2147483648
    %v856 = vxor.u32 %v792, 2147483648
    %v857 = vxor.u32 %v793, 2147483648
    %v858 = vxor.u32 %v794, 2147483648
    %v859 = vxor.u32 %v795, 2147483648
    %v860 = vxor.u32 %v796, 2147483648
    %v861 = vxor.u32 %v797, 2147483648
    %v862 = vxor.u32 %v798, 2147483648
    %v863 = vxor.u32 %v799, 2147483648
    %v864 = vxor.u32 %v800, 2147483648
    %v865 = vxor.u32 %v801, 2147483648
    %v866 = vxor.u32 %v802, 2147483648
    %v867 = vxor.u32 %v803, 2147483648
    %v868 = vxor.u32 %v804, 2147483648
    %v869 = vxor.u32 %v805, 2147483648
    %v870 = vxor.u32 %v806, 2147483648
    %v871 = vxor.u32 %v807, 2147483648
    %v872 = vxor.u32 %v808, 2147483648
    %v873 = vxor.u32 %v809, 2147483648
    %v874 = vxor.u32 %v810, 2147483648
    %v875 = vxor.u32 %v811, 2147483648
    %v876 = vxor.u32 %v812, 2147483648
    %v877 = vxor.u32 %v813, 2147483648
    %v878 = vxor.u32 %v814, 2147483648
    %v879 = vxor.u32 %v815, 2147483648
    %v880 = vxor.u32 %v816, 2147483648
    %v881 = vxor.u32 %v817, 2147483648
    %v882 = vxor.u32 %v818, 2147483648
    %v883 = vxor.u32 %v819, 2147483648
    %v884 = vxor.u32 %v820, 2147483648
    %v885 = vxor.u32 %v821, 2147483648
    %v886 = vxor.u32 %v822, 2147483648
    %v887 = vxor.u32 %v823, 2147483648
    %v888 = vxor.u32 %v824, 2147483648
    %v889 = vxor.u32 %v825, 2147483648
    %v890 = vxor.u32 %v826, 2147483648
    %v891 = vxor.u32 %v827, 2147483648
    %v892 = vxor.u32 %v828, 2147483648
    %v893 = vxor.u32 %v829, 2147483648
    %v894 = vxor.u32 %v830, 2147483648
    %v895 = vxor.u32 %v831, 2147483648
    %v896 = vxor.u32 %v832, 2147483648
    %v897 = vxor.u32 %v833, 2147483648
    %v898 = vxor.u32 %v834, 2147483648
    %v899 = vxor.u32 %v835, 2147483648
    %v900 = vxor.u32 %v836, 2147483648
    %v901 = vxor.u32 %v837, 2147483648
    %v902 = vxor.u32 %v838, 2147483648
    %v903 = vxor.u32 %v839, 2147483648
    %v904 = vxor.u32 %v840, 2147483648
    %v905 = vxor.u32 %v841, 2147483648
    %v906 = vxor.u32 %v842, 2147483648
    %v907 = vxor.u32 %v843, 2147483648
    %v908 = vxor.u32 %v844, 2147483648
    %v909 = vxor.u32 %v845, 2147483648
    %v910 = vxor.u32 %v846, 2147483648
    %v911 = vxor.u32 %v847, 2147483648
    %v912 = vxor.u32 %v848, 2147483648
    %v913 = vxor.u32 %v849, 2147483648
    %v914 = vxor.u32 %v850, 2147483648
    %v915 = vmul.f32 %v851, 1.442695
    %v916 = vpow.pop %v915
    %v917 = vmul.f32 %v852, 1.442695
    %v918 = vpow.pop %v917
    %v919 = vmul.f32 %v853, 1.442695
    %v920 = vpow.pop %v919
    %v921 = vmul.f32 %v854, 1.442695
    %v922 = vpow.pop %v921
    %v923 = vmul.f32 %v855, 1.442695
    %v924 = vpow.pop %v923
    %v925 = vmul.f32 %v856, 1.442695
    %v926 = vpow.pop %v925
    %v927 = vmul.f32 %v857, 1.442695
    %v928 = vpow.pop %v927
    %v929 = vmul.f32 %v858, 1.442695
    %v930 = vpow.pop %v929
    %v931 = vmul.f32 %v859, 1.442695
    %v932 = vpow.pop %v931
    %v933 = vmul.f32 %v860, 1.442695
    %v934 = vpow.pop %v933
    %v935 = vmul.f32 %v861, 1.442695
    %v936 = vpow.pop %v935
    %v937 = vmul.f32 %v862, 1.442695
    %v938 = vpow.pop %v937
    %v939 = vmul.f32 %v863, 1.442695
    %v940 = vpow.pop %v939
    %v941 = vmul.f32 %v864, 1.442695
    %v942 = vpow.pop %v941
    %v943 = vmul.f32 %v865, 1.442695
    %v944 = vpow.pop %v943
    %v945 = vmul.f32 %v866, 1.442695
    %v946 = vpow.pop %v945
    %v947 = vmul.f32 %v867, 1.442695
    %v948 = vpow.pop %v947
    %v949 = vmul.f32 %v868, 1.442695
    %v950 = vpow.pop %v949
    %v951 = vmul.f32 %v869, 1.442695
    %v952 = vpow.pop %v951
    %v953 = vmul.f32 %v870, 1.442695
    %v954 = vpow.pop %v953
    %v955 = vmul.f32 %v871, 1.442695
    %v956 = vpow.pop %v955
    %v957 = vmul.f32 %v872, 1.442695
    %v958 = vpow.pop %v957
    %v959 = vmul.f32 %v873, 1.442695
    %v960 = vpow.pop %v959
    %v961 = vmul.f32 %v874, 1.442695
    %v962 = vpow.pop %v961
    %v963 = vmul.f32 %v875, 1.442695
    %v964 = vpow.pop %v963
    %v965 = vmul.f32 %v876, 1.442695
    %v966 = vpow.pop %v965
    %v967 = vmul.f32 %v877, 1.442695
    %v968 = vpow.pop %v967
    %v969 = vmul.f32 %v878, 1.442695
    %v970 = vpow.pop %v969
    %v971 = vmul.f32 %v879, 1.442695
    %v972 = vpow.pop %v971
    %v973 = vmul.f32 %v880, 1.442695
    %v974 = vpow.pop %v973
    %v975 = vmul.f32 %v881, 1.442695
    %v976 = vpow.pop %v975
    %v977 = vmul.f32 %v882, 1.442695
    %v978 = vpow.pop %v977
    %v979 = vmul.f32 %v883, 1.442695
    %v980 = vpow.pop %v979
    %v981 = vmul.f32 %v884, 1.442695
    %v982 = vpow.pop %v981
    %v983 = vmul.f32 %v885, 1.442695
    %v984 = vpow.pop %v983
    %v985 = vmul.f32 %v886, 1.442695
    %v986 = vpow.pop %v985
    %v987 = vmul.f32 %v887, 1.442695
    %v988 = vpow.pop %v987
    %v989 = vmul.f32 %v888, 1.442695
    %v990 = vpow.pop %v989
    %v991 = vmul.f32 %v889, 1.442695
    %v992 = vpow.pop %v991
    %v993 = vmul.f32 %v890, 1.442695
    %v994 = vpow.pop %v993
    %v995 = vmul.f32 %v891, 1.442695
    %v996 = vpow.pop %v995
    %v997 = vmul.f32 %v892, 1.442695
    %v998 = vpow.pop %v997
    %v999 = vmul.f32 %v893, 1.442695
    %v1000 = vpow.pop %v999
    %v1001 = vmul.f32 %v894, 1.442695
    %v1002 = vpow.pop %v1001
    %v1003 = vmul.f32 %v895, 1.442695
    %v1004 = vpow.pop %v1003
    %v1005 = vmul.f32 %v896, 1.442695
    %v1006 = vpow.pop %v1005
    %v1007 = vmul.f32 %v897, 1.442695
    %v1008 = vpow.pop %v1007
    %v1009 = vmul.f32 %v898, 1.442695
    %v1010 = vpow.pop %v1009
    %v1011 = vmul.f32 %v899, 1.442695
    %v1012 = vpow.pop %v1011
    %v1013 = vmul.f32 %v900, 1.442695
    %v1014 = vpow.pop %v1013
    %v1015 = vmul.f32 %v901, 1.442695
    %v1016 = vpow.pop %v1015
    %v1017 = vmul.f32 %v902, 1.442695
    %v1018 = vpow.pop %v1017
    %v1019 = vmul.f32 %v903, 1.442695
    %v1020 = vpow.pop %v1019
    %v1021 = vmul.f32 %v904, 1.442695
    %v1022 = vpow.pop %v1021
    %v1023 = vmul.f32 %v905, 1.442695
    %v1024 = vpow.pop %v1023
    %v1025 = vmul.f32 %v906, 1.442695
    %v1026 = vpow.pop %v1025
    %v1027 = vmul.f32 %v907, 1.442695
    %v1028 = vpow.pop %v1027
    %v1029 = vmul.f32 %v908, 1.442695
    %v1030 = vpow.pop %v1029
    %v1031 = vmul.f32 %v909, 1.442695
    %v1032 = vpow.pop %v1031
    %v1033 = vmul.f32 %v910, 1.442695
    %v1034 = vpow.pop %v1033
    %v1035 = vmul.f32 %v911, 1.442695
    %v1036 = vpow.pop %v1035
    %v1037 = vmul.f32 %v912, 1.442695
    %v1038 = vpow.pop %v1037
    %v1039 = vmul.f32 %v913, 1.442695
    %v1040 = vpow.pop %v1039
    %v1041 = vmul.f32 %v914, 1.442695
    %v1042 = vpow.pop %v1041
    %v1043 = vadd.f32 %v916, 1.0
    %v1044 = vadd.f32 %v918, 1.0
    %v1045 = vadd.f32 %v920, 1.0
    %v1046 = vadd.f32 %v922, 1.0
    %v1047 = vadd.f32 %v924, 1.0
    %v1048 = vadd.f32 %v926, 1.0
    %v1049 = vadd.f32 %v928, 1.0
    %v1050 = vadd.f32 %v930, 1.0
    %v1051 = vadd.f32 %v932, 1.0
    %v1052 = vadd.f32 %v934, 1.0
    %v1053 = vadd.f32 %v936, 1.0
    %v1054 = vadd.f32 %v938, 1.0
    %v1055 = vadd.f32 %v940, 1.0
    %v1056 = vadd.f32 %v942, 1.0
    %v1057 = vadd.f32 %v944, 1.0
    %v1058 = vadd.f32 %v946, 1.0
    %v1059 = vadd.f32 %v948, 1.0
    %v1060 = vadd.f32 %v950, 1.0
    %v1061 = vadd.f32 %v952, 1.0
    %v1062 = vadd.f32 %v954, 1.0
    %v1063 = vadd.f32 %v956, 1.0
    %v1064 = vadd.f32 %v958, 1.0
    %v1065 = vadd.f32 %v960, 1.0
    %v1066 = vadd.f32 %v962, 1.0
    %v1067 = vadd.f32 %v964, 1.0
    %v1068 = vadd.f32 %v966, 1.0
    %v1069 = vadd.f32 %v968, 1.0
    %v1070 = vadd.f32 %v970, 1.0
    %v1071 = vadd.f32 %v972, 1.0
    %v1072 = vadd.f32 %v974, 1.0
    %v1073 = vadd.f32 %v976, 1.0
    %v1074 = vadd.f32 %v978, 1.0
    %v1075 = vadd.f32 %v980, 1.0
    %v1076 = vadd.f32 %v982, 1.0
    %v1077 = vadd.f32 %v984, 1.0
    %v1078 = vadd.f32 %v986, 1.0
    %v1079 = vadd.f32 %v988, 1.0
    %v1080 = vadd.f32 %v990, 1.0
    %v1081 = vadd.f32 %v992, 1.0
    %v1082 = vadd.f32 %v994, 1.0
    %v1083 = vadd.f32 %v996, 1.0
    %v1084 = vadd.f32 %v998, 1.0
    %v1085 = vadd.f32 %v1000, 1.0
    %v1086 = vadd.f32 %v1002, 1.0
    %v1087 = vadd.f32 %v1004, 1.0
    %v1088 = vadd.f32 %v1006, 1.0
    %v1089 = vadd.f32 %v1008, 1.0
    %v1090 = vadd.f32 %v1010, 1.0
    %v1091 = vadd.f32 %v1012, 1.0
    %v1092 = vadd.f32 %v1014, 1.0
    %v1093 = vadd.f32 %v1016, 1.0
    %v1094 = vadd.f32 %v1018, 1.0
    %v1095 = vadd.f32 %v1020, 1.0
    %v1096 = vadd.f32 %v1022, 1.0
    %v1097 = vadd.f32 %v1024, 1.0
    %v1098 = vadd.f32 %v1026, 1.0
    %v1099 = vadd.f32 %v1028, 1.0
    %v1100 = vadd.f32 %v1030, 1.0
    %v1101 = vadd.f32 %v1032, 1.0
    %v1102 = vadd.f32 %v1034, 1.0
    %v1103 = vadd.f32 %v1036, 1.0
    %v1104 = vadd.f32 %v1038, 1.0
    %v1105 = vadd.f32 %v1040, 1.0
    %v1106 = vadd.f32 %v1042, 1.0
    %v1107 = vrcp.pop %v1043
    %v1108 = vmul.f32 1.0, %v1107
    %v1109 = vrcp.pop %v1044
    %v1110 = vmul.f32 1.0, %v1109
    %v1111 = vrcp.pop %v1045
    %v1112 = vmul.f32 1.0, %v1111
    %v1113 = vrcp.pop %v1046
    %v1114 = vmul.f32 1.0, %v1113
    %v1115 = vrcp.pop %v1047
    %v1116 = vmul.f32 1.0, %v1115
    %v1117 = vrcp.pop %v1048
    %v1118 = vmul.f32 1.0, %v1117
    %v1119 = vrcp.pop %v1049
    %v1120 = vmul.f32 1.0, %v1119
    %v1121 = vrcp.pop %v1050
    %v1122 = vmul.f32 1.0, %v1121
    %v1123 = vrcp.pop %v1051
    %v1124 = vmul.f32 1.0, %v1123
    %v1125 = vrcp.pop %v1052
    %v1126 = vmul.f32 1.0, %v1125
    %v1127 = vrcp.pop %v1053
    %v1128 = vmul.f32 1.0, %v1127
    %v1129 = vrcp.pop %v1054
    %v1130 = vmul.f32 1.0, %v1129
    %v1131 = vrcp.pop %v1055
    %v1132 = vmul.f32 1.0, %v1131
    %v1133 = vrcp.pop %v1056
    %v1134 = vmul.f32 1.0, %v1133
    %v1135 = vrcp.pop %v1057
    %v1136 = vmul.f32 1.0, %v1135
    %v1137 = vrcp.pop %v1058
    %v1138 = vmul.f32 1.0, %v1137
    %v1139 = vrcp.pop %v1059
    %v1140 = vmul.f32 1.0, %v1139
    %v1141 = vrcp.pop %v1060
    %v1142 = vmul.f32 1.0, %v1141
    %v1143 = vrcp.pop %v1061
    %v1144 = vmul.f32 1.0, %v1143
    %v1145 = vrcp.pop %v1062
    %v1146 = vmul.f32 1.0, %v1145
    %v1147 = vrcp.pop %v1063
    %v1148 = vmul.f32 1.0, %v1147
    %v1149 = vrcp.pop %v1064
    %v1150 = vmul.f32 1.0, %v1149
    %v1151 = vrcp.pop %v1065
    %v1152 = vmul.f32 1.0, %v1151
    %v1153 = vrcp.pop %v1066
    %v1154 = vmul.f32 1.0, %v1153
    %v1155 = vrcp.pop %v1067
    %v1156 = vmul.f32 1.0, %v1155
    %v1157 = vrcp.pop %v1068
    %v1158 = vmul.f32 1.0, %v1157
    %v1159 = vrcp.pop %v1069
    %v1160 = vmul.f32 1.0, %v1159
    %v1161 = vrcp.pop %v1070
    %v1162 = vmul.f32 1.0, %v1161
    %v1163 = vrcp.pop %v1071
    %v1164 = vmul.f32 1.0, %v1163
    %v1165 = vrcp.pop %v1072
    %v1166 = vmul.f32 1.0, %v1165
    %v1167 = vrcp.pop %v1073
    %v1168 = vmul.f32 1.0, %v1167
    %v1169 = vrcp.pop %v1074
    %v1170 = vmul.f32 1.0, %v1169
    %v1171 = vrcp.pop %v1075
    %v1172 = vmul.f32 1.0, %v1171
    %v1173 = vrcp.pop %v1076
    %v1174 = vmul.f32 1.0, %v1173
    %v1175 = vrcp.pop %v1077
    %v1176 = vmul.f32 1.0, %v1175
    %v1177 = vrcp.pop %v1078
    %v1178 = vmul.f32 1.0, %v1177
    %v1179 = vrcp.pop %v1079
    %v1180 = vmul.f32 1.0, %v1179
    %v1181 = vrcp.pop %v1080
    %v1182 = vmul.f32 1.0, %v1181
    %v1183 = vrcp.pop %v1081
    %v1184 = vmul.f32 1.0, %v1183
    %v1185 = vrcp.pop %v1082
    %v1186 = vmul.f32 1.0, %v1185
    %v1187 = vrcp.pop %v1083
    %v1188 = vmul.f32 1.0, %v1187
    %v1189 = vrcp.pop %v1084
    %v1190 = vmul.f32 1.0, %v1189
    %v1191 = vrcp.pop %v1085
    %v1192 = vmul.f32 1.0, %v1191
    %v1193 = vrcp.pop %v1086
    %v1194 = vmul.f32 1.0, %v1193
    %v1195 = vrcp.pop %v1087
    %v1196 = vmul.f32 1.0, %v1195
    %v1197 = vrcp.pop %v1088
    %v1198 = vmul.f32 1.0, %v1197
    %v1199 = vrcp.pop %v1089
    %v1200 = vmul.f32 1.0, %v1199
    %v1201 = vrcp.pop %v1090
    %v1202 = vmul.f32 1.0, %v1201
    %v1203 = vrcp.pop %v1091
    %v1204 = vmul.f32 1.0, %v1203
    %v1205 = vrcp.pop %v1092
    %v1206 = vmul.f32 1.0, %v1205
    %v1207 = vrcp.pop %v1093
    %v1208 = vmul.f32 1.0, %v1207
    %v1209 = vrcp.pop %v1094
    %v1210 = vmul.f32 1.0, %v1209
    %v1211 = vrcp.pop %v1095
    %v1212 = vmul.f32 1.0, %v1211
    %v1213 = vrcp.pop %v1096
    %v1214 = vmul.f32 1.0, %v1213
    %v1215 = vrcp.pop %v1097
    %v1216 = vmul.f32 1.0, %v1215
    %v1217 = vrcp.pop %v1098
    %v1218 = vmul.f32 1.0, %v1217
    %v1219 = vrcp.pop %v1099
    %v1220 = vmul.f32 1.0, %v1219
    %v1221 = vrcp.pop %v1100
    %v1222 = vmul.f32 1.0, %v1221
    %v1223 = vrcp.pop %v1101
    %v1224 = vmul.f32 1.0, %v1223
    %v1225 = vrcp.pop %v1102
    %v1226 = vmul.f32 1.0, %v1225
    %v1227 = vrcp.pop %v1103
    %v1228 = vmul.f32 1.0, %v1227
    %v1229 = vrcp.pop %v1104
    %v1230 = vmul.f32 1.0, %v1229
    %v1231 = vrcp.pop %v1105
    %v1232 = vmul.f32 1.0, %v1231
    %v1233 = vrcp.pop %v1106
    %v1234 = vmul.f32 1.0, %v1233
    %v1299 = vlaneseq
    %v1300 = vshrl.u32 %v1299, 7
    %v1301 = vsub.s32 0, %v1300
    %v1302 = vrot.slane %v1108, %v1301
    %v1303 = vlaneseq
    %v1304 = vshrl.u32 %v1303, 7
    %v1305 = vsub.s32 1, %v1304
    %v1306 = vrot.slane %v1108, %v1305
    %v1307 = vlaneseq
    %v1308 = vshrl.u32 %v1307, 7
    %v1309 = vsub.s32 2, %v1308
    %v1310 = vrot.slane %v1108, %v1309
    %v1311 = vlaneseq
    %v1312 = vshrl.u32 %v1311, 7
    %v1313 = vsub.s32 3, %v1312
    %v1314 = vrot.slane %v1108, %v1313
    %v1315 = vlaneseq
    %v1316 = vshrl.u32 %v1315, 7
    %v1317 = vsub.s32 4, %v1316
    %v1318 = vrot.slane %v1108, %v1317
    %v1319 = vlaneseq
    %v1320 = vshrl.u32 %v1319, 7
    %v1321 = vsub.s32 5, %v1320
    %v1322 = vrot.slane %v1108, %v1321
    %v1323 = vlaneseq
    %v1324 = vshrl.u32 %v1323, 7
    %v1325 = vsub.s32 6, %v1324
    %v1326 = vrot.slane %v1108, %v1325
    %v1327 = vlaneseq
    %v1328 = vshrl.u32 %v1327, 7
    %v1329 = vsub.s32 7, %v1328
    %v1330 = vrot.slane %v1108, %v1329
    %v1331 = vlaneseq
    %v1332 = vshrl.u32 %v1331, 7
    %v1333 = vsub.s32 0, %v1332
    %v1334 = vrot.slane %v1110, %v1333
    %v1335 = vlaneseq
    %v1336 = vshrl.u32 %v1335, 7
    %v1337 = vsub.s32 1, %v1336
    %v1338 = vrot.slane %v1110, %v1337
    %v1339 = vlaneseq
    %v1340 = vshrl.u32 %v1339, 7
    %v1341 = vsub.s32 2, %v1340
    %v1342 = vrot.slane %v1110, %v1341
    %v1343 = vlaneseq
    %v1344 = vshrl.u32 %v1343, 7
    %v1345 = vsub.s32 3, %v1344
    %v1346 = vrot.slane %v1110, %v1345
    %v1347 = vlaneseq
    %v1348 = vshrl.u32 %v1347, 7
    %v1349 = vsub.s32 4, %v1348
    %v1350 = vrot.slane %v1110, %v1349
    %v1351 = vlaneseq
    %v1352 = vshrl.u32 %v1351, 7
    %v1353 = vsub.s32 5, %v1352
    %v1354 = vrot.slane %v1110, %v1353
    %v1355 = vlaneseq
    %v1356 = vshrl.u32 %v1355, 7
    %v1357 = vsub.s32 6, %v1356
    %v1358 = vrot.slane %v1110, %v1357
    %v1359 = vlaneseq
    %v1360 = vshrl.u32 %v1359, 7
    %v1361 = vsub.s32 7, %v1360
    %v1362 = vrot.slane %v1110, %v1361
    %v1363 = vlaneseq
    %v1364 = vshrl.u32 %v1363, 7
    %v1365 = vsub.s32 0, %v1364
    %v1366 = vrot.slane %v1112, %v1365
    %v1367 = vlaneseq
    %v1368 = vshrl.u32 %v1367, 7
    %v1369 = vsub.s32 1, %v1368
    %v1370 = vrot.slane %v1112, %v1369
    %v1371 = vlaneseq
    %v1372 = vshrl.u32 %v1371, 7
    %v1373 = vsub.s32 2, %v1372
    %v1374 = vrot.slane %v1112, %v1373
    %v1375 = vlaneseq
    %v1376 = vshrl.u32 %v1375, 7
    %v1377 = vsub.s32 3, %v1376
    %v1378 = vrot.slane %v1112, %v1377
    %v1379 = vlaneseq
    %v1380 = vshrl.u32 %v1379, 7
    %v1381 = vsub.s32 4, %v1380
    %v1382 = vrot.slane %v1112, %v1381
    %v1383 = vlaneseq
    %v1384 = vshrl.u32 %v1383, 7
    %v1385 = vsub.s32 5, %v1384
    %v1386 = vrot.slane %v1112, %v1385
    %v1387 = vlaneseq
    %v1388 = vshrl.u32 %v1387, 7
    %v1389 = vsub.s32 6, %v1388
    %v1390 = vrot.slane %v1112, %v1389
    %v1391 = vlaneseq
    %v1392 = vshrl.u32 %v1391, 7
    %v1393 = vsub.s32 7, %v1392
    %v1394 = vrot.slane %v1112, %v1393
    %v1395 = vlaneseq
    %v1396 = vshrl.u32 %v1395, 7
    %v1397 = vsub.s32 0, %v1396
    %v1398 = vrot.slane %v1114, %v1397
    %v1399 = vlaneseq
    %v1400 = vshrl.u32 %v1399, 7
    %v1401 = vsub.s32 1, %v1400
    %v1402 = vrot.slane %v1114, %v1401
    %v1403 = vlaneseq
    %v1404 = vshrl.u32 %v1403, 7
    %v1405 = vsub.s32 2, %v1404
    %v1406 = vrot.slane %v1114, %v1405
    %v1407 = vlaneseq
    %v1408 = vshrl.u32 %v1407, 7
    %v1409 = vsub.s32 3, %v1408
    %v1410 = vrot.slane %v1114, %v1409
    %v1411 = vlaneseq
    %v1412 = vshrl.u32 %v1411, 7
    %v1413 = vsub.s32 4, %v1412
    %v1414 = vrot.slane %v1114, %v1413
    %v1415 = vlaneseq
    %v1416 = vshrl.u32 %v1415, 7
    %v1417 = vsub.s32 5, %v1416
    %v1418 = vrot.slane %v1114, %v1417
    %v1419 = vlaneseq
    %v1420 = vshrl.u32 %v1419, 7
    %v1421 = vsub.s32 6, %v1420
    %v1422 = vrot.slane %v1114, %v1421
    %v1423 = vlaneseq
    %v1424 = vshrl.u32 %v1423, 7
    %v1425 = vsub.s32 7, %v1424
    %v1426 = vrot.slane %v1114, %v1425
    %v1427 = vlaneseq
    %v1428 = vshrl.u32 %v1427, 7
    %v1429 = vsub.s32 0, %v1428
    %v1430 = vrot.slane %v1116, %v1429
    %v1431 = vlaneseq
    %v1432 = vshrl.u32 %v1431, 7
    %v1433 = vsub.s32 1, %v1432
    %v1434 = vrot.slane %v1116, %v1433
    %v1435 = vlaneseq
    %v1436 = vshrl.u32 %v1435, 7
    %v1437 = vsub.s32 2, %v1436
    %v1438 = vrot.slane %v1116, %v1437
    %v1439 = vlaneseq
    %v1440 = vshrl.u32 %v1439, 7
    %v1441 = vsub.s32 3, %v1440
    %v1442 = vrot.slane %v1116, %v1441
    %v1443 = vlaneseq
    %v1444 = vshrl.u32 %v1443, 7
    %v1445 = vsub.s32 4, %v1444
    %v1446 = vrot.slane %v1116, %v1445
    %v1447 = vlaneseq
    %v1448 = vshrl.u32 %v1447, 7
    %v1449 = vsub.s32 5, %v1448
    %v1450 = vrot.slane %v1116, %v1449
    %v1451 = vlaneseq
    %v1452 = vshrl.u32 %v1451, 7
    %v1453 = vsub.s32 6, %v1452
    %v1454 = vrot.slane %v1116, %v1453
    %v1455 = vlaneseq
    %v1456 = vshrl.u32 %v1455, 7
    %v1457 = vsub.s32 7, %v1456
    %v1458 = vrot.slane %v1116, %v1457
    %v1459 = vlaneseq
    %v1460 = vshrl.u32 %v1459, 7
    %v1461 = vsub.s32 0, %v1460
    %v1462 = vrot.slane %v1118, %v1461
    %v1463 = vlaneseq
    %v1464 = vshrl.u32 %v1463, 7
    %v1465 = vsub.s32 1, %v1464
    %v1466 = vrot.slane %v1118, %v1465
    %v1467 = vlaneseq
    %v1468 = vshrl.u32 %v1467, 7
    %v1469 = vsub.s32 2, %v1468
    %v1470 = vrot.slane %v1118, %v1469
    %v1471 = vlaneseq
    %v1472 = vshrl.u32 %v1471, 7
    %v1473 = vsub.s32 3, %v1472
    %v1474 = vrot.slane %v1118, %v1473
    %v1475 = vlaneseq
    %v1476 = vshrl.u32 %v1475, 7
    %v1477 = vsub.s32 4, %v1476
    %v1478 = vrot.slane %v1118, %v1477
    %v1479 = vlaneseq
    %v1480 = vshrl.u32 %v1479, 7
    %v1481 = vsub.s32 5, %v1480
    %v1482 = vrot.slane %v1118, %v1481
    %v1483 = vlaneseq
    %v1484 = vshrl.u32 %v1483, 7
    %v1485 = vsub.s32 6, %v1484
    %v1486 = vrot.slane %v1118, %v1485
    %v1487 = vlaneseq
    %v1488 = vshrl.u32 %v1487, 7
    %v1489 = vsub.s32 7, %v1488
    %v1490 = vrot.slane %v1118, %v1489
    %v1491 = vlaneseq
    %v1492 = vshrl.u32 %v1491, 7
    %v1493 = vsub.s32 0, %v1492
    %v1494 = vrot.slane %v1120, %v1493
    %v1495 = vlaneseq
    %v1496 = vshrl.u32 %v1495, 7
    %v1497 = vsub.s32 1, %v1496
    %v1498 = vrot.slane %v1120, %v1497
    %v1499 = vlaneseq
    %v1500 = vshrl.u32 %v1499, 7
    %v1501 = vsub.s32 2, %v1500
    %v1502 = vrot.slane %v1120, %v1501
    %v1503 = vlaneseq
    %v1504 = vshrl.u32 %v1503, 7
    %v1505 = vsub.s32 3, %v1504
    %v1506 = vrot.slane %v1120, %v1505
    %v1507 = vlaneseq
    %v1508 = vshrl.u32 %v1507, 7
    %v1509 = vsub.s32 4, %v1508
    %v1510 = vrot.slane %v1120, %v1509
    %v1511 = vlaneseq
    %v1512 = vshrl.u32 %v1511, 7
    %v1513 = vsub.s32 5, %v1512
    %v1514 = vrot.slane %v1120, %v1513
    %v1515 = vlaneseq
    %v1516 = vshrl.u32 %v1515, 7
    %v1517 = vsub.s32 6, %v1516
    %v1518 = vrot.slane %v1120, %v1517
    %v1519 = vlaneseq
    %v1520 = vshrl.u32 %v1519, 7
    %v1521 = vsub.s32 7, %v1520
    %v1522 = vrot.slane %v1120, %v1521
    %v1523 = vlaneseq
    %v1524 = vshrl.u32 %v1523, 7
    %v1525 = vsub.s32 0, %v1524
    %v1526 = vrot.slane %v1122, %v1525
    %v1527 = vlaneseq
    %v1528 = vshrl.u32 %v1527, 7
    %v1529 = vsub.s32 1, %v1528
    %v1530 = vrot.slane %v1122, %v1529
    %v1531 = vlaneseq
    %v1532 = vshrl.u32 %v1531, 7
    %v1533 = vsub.s32 2, %v1532
    %v1534 = vrot.slane %v1122, %v1533
    %v1535 = vlaneseq
    %v1536 = vshrl.u32 %v1535, 7
    %v1537 = vsub.s32 3, %v1536
    %v1538 = vrot.slane %v1122, %v1537
    %v1539 = vlaneseq
    %v1540 = vshrl.u32 %v1539, 7
    %v1541 = vsub.s32 4, %v1540
    %v1542 = vrot.slane %v1122, %v1541
    %v1543 = vlaneseq
    %v1544 = vshrl.u32 %v1543, 7
    %v1545 = vsub.s32 5, %v1544
    %v1546 = vrot.slane %v1122, %v1545
    %v1547 = vlaneseq
    %v1548 = vshrl.u32 %v1547, 7
    %v1549 = vsub.s32 6, %v1548
    %v1550 = vrot.slane %v1122, %v1549
    %v1551 = vlaneseq
    %v1552 = vshrl.u32 %v1551, 7
    %v1553 = vsub.s32 7, %v1552
    %v1554 = vrot.slane %v1122, %v1553
    %v1555 = vlaneseq
    %v1556 = vshrl.u32 %v1555, 7
    %v1557 = vsub.s32 0, %v1556
    %v1558 = vrot.slane %v1124, %v1557
    %v1559 = vlaneseq
    %v1560 = vshrl.u32 %v1559, 7
    %v1561 = vsub.s32 1, %v1560
    %v1562 = vrot.slane %v1124, %v1561
    %v1563 = vlaneseq
    %v1564 = vshrl.u32 %v1563, 7
    %v1565 = vsub.s32 2, %v1564
    %v1566 = vrot.slane %v1124, %v1565
    %v1567 = vlaneseq
    %v1568 = vshrl.u32 %v1567, 7
    %v1569 = vsub.s32 3, %v1568
    %v1570 = vrot.slane %v1124, %v1569
    %v1571 = vlaneseq
    %v1572 = vshrl.u32 %v1571, 7
    %v1573 = vsub.s32 4, %v1572
    %v1574 = vrot.slane %v1124, %v1573
    %v1575 = vlaneseq
    %v1576 = vshrl.u32 %v1575, 7
    %v1577 = vsub.s32 5, %v1576
    %v1578 = vrot.slane %v1124, %v1577
    %v1579 = vlaneseq
    %v1580 = vshrl.u32 %v1579, 7
    %v1581 = vsub.s32 6, %v1580
    %v1582 = vrot.slane %v1124, %v1581
    %v1583 = vlaneseq
    %v1584 = vshrl.u32 %v1583, 7
    %v1585 = vsub.s32 7, %v1584
    %v1586 = vrot.slane %v1124, %v1585
    %v1587 = vlaneseq
    %v1588 = vshrl.u32 %v1587, 7
    %v1589 = vsub.s32 0, %v1588
    %v1590 = vrot.slane %v1126, %v1589
    %v1591 = vlaneseq
    %v1592 = vshrl.u32 %v1591, 7
    %v1593 = vsub.s32 1, %v1592
    %v1594 = vrot.slane %v1126, %v1593
    %v1595 = vlaneseq
    %v1596 = vshrl.u32 %v1595, 7
    %v1597 = vsub.s32 2, %v1596
    %v1598 = vrot.slane %v1126, %v1597
    %v1599 = vlaneseq
    %v1600 = vshrl.u32 %v1599, 7
    %v1601 = vsub.s32 3, %v1600
    %v1602 = vrot.slane %v1126, %v1601
    %v1603 = vlaneseq
    %v1604 = vshrl.u32 %v1603, 7
    %v1605 = vsub.s32 4, %v1604
    %v1606 = vrot.slane %v1126, %v1605
    %v1607 = vlaneseq
    %v1608 = vshrl.u32 %v1607, 7
    %v1609 = vsub.s32 5, %v1608
    %v1610 = vrot.slane %v1126, %v1609
    %v1611 = vlaneseq
    %v1612 = vshrl.u32 %v1611, 7
    %v1613 = vsub.s32 6, %v1612
    %v1614 = vrot.slane %v1126, %v1613
    %v1615 = vlaneseq
    %v1616 = vshrl.u32 %v1615, 7
    %v1617 = vsub.s32 7, %v1616
    %v1618 = vrot.slane %v1126, %v1617
    %v1619 = vlaneseq
    %v1620 = vshrl.u32 %v1619, 7
    %v1621 = vsub.s32 0, %v1620
    %v1622 = vrot.slane %v1128, %v1621
    %v1623 = vlaneseq
    %v1624 = vshrl.u32 %v1623, 7
    %v1625 = vsub.s32 1, %v1624
    %v1626 = vrot.slane %v1128, %v1625
    %v1627 = vlaneseq
    %v1628 = vshrl.u32 %v1627, 7
    %v1629 = vsub.s32 2, %v1628
    %v1630 = vrot.slane %v1128, %v1629
    %v1631 = vlaneseq
    %v1632 = vshrl.u32 %v1631, 7
    %v1633 = vsub.s32 3, %v1632
    %v1634 = vrot.slane %v1128, %v1633
    %v1635 = vlaneseq
    %v1636 = vshrl.u32 %v1635, 7
    %v1637 = vsub.s32 4, %v1636
    %v1638 = vrot.slane %v1128, %v1637
    %v1639 = vlaneseq
    %v1640 = vshrl.u32 %v1639, 7
    %v1641 = vsub.s32 5, %v1640
    %v1642 = vrot.slane %v1128, %v1641
    %v1643 = vlaneseq
    %v1644 = vshrl.u32 %v1643, 7
    %v1645 = vsub.s32 6, %v1644
    %v1646 = vrot.slane %v1128, %v1645
    %v1647 = vlaneseq
    %v1648 = vshrl.u32 %v1647, 7
    %v1649 = vsub.s32 7, %v1648
    %v1650 = vrot.slane %v1128, %v1649
    %v1651 = vlaneseq
    %v1652 = vshrl.u32 %v1651, 7
    %v1653 = vsub.s32 0, %v1652
    %v1654 = vrot.slane %v1130, %v1653
    %v1655 = vlaneseq
    %v1656 = vshrl.u32 %v1655, 7
    %v1657 = vsub.s32 1, %v1656
    %v1658 = vrot.slane %v1130, %v1657
    %v1659 = vlaneseq
    %v1660 = vshrl.u32 %v1659, 7
    %v1661 = vsub.s32 2, %v1660
    %v1662 = vrot.slane %v1130, %v1661
    %v1663 = vlaneseq
    %v1664 = vshrl.u32 %v1663, 7
    %v1665 = vsub.s32 3, %v1664
    %v1666 = vrot.slane %v1130, %v1665
    %v1667 = vlaneseq
    %v1668 = vshrl.u32 %v1667, 7
    %v1669 = vsub.s32 4, %v1668
    %v1670 = vrot.slane %v1130, %v1669
    %v1671 = vlaneseq
    %v1672 = vshrl.u32 %v1671, 7
    %v1673 = vsub.s32 5, %v1672
    %v1674 = vrot.slane %v1130, %v1673
    %v1675 = vlaneseq
    %v1676 = vshrl.u32 %v1675, 7
    %v1677 = vsub.s32 6, %v1676
    %v1678 = vrot.slane %v1130, %v1677
    %v1679 = vlaneseq
    %v1680 = vshrl.u32 %v1679, 7
    %v1681 = vsub.s32 7, %v1680
    %v1682 = vrot.slane %v1130, %v1681
    %v1683 = vlaneseq
    %v1684 = vshrl.u32 %v1683, 7
    %v1685 = vsub.s32 0, %v1684
    %v1686 = vrot.slane %v1132, %v1685
    %v1687 = vlaneseq
    %v1688 = vshrl.u32 %v1687, 7
    %v1689 = vsub.s32 1, %v1688
    %v1690 = vrot.slane %v1132, %v1689
    %v1691 = vlaneseq
    %v1692 = vshrl.u32 %v1691, 7
    %v1693 = vsub.s32 2, %v1692
    %v1694 = vrot.slane %v1132, %v1693
    %v1695 = vlaneseq
    %v1696 = vshrl.u32 %v1695, 7
    %v1697 = vsub.s32 3, %v1696
    %v1698 = vrot.slane %v1132, %v1697
    %v1699 = vlaneseq
    %v1700 = vshrl.u32 %v1699, 7
    %v1701 = vsub.s32 4, %v1700
    %v1702 = vrot.slane %v1132, %v1701
    %v1703 = vlaneseq
    %v1704 = vshrl.u32 %v1703, 7
    %v1705 = vsub.s32 5, %v1704
    %v1706 = vrot.slane %v1132, %v1705
    %v1707 = vlaneseq
    %v1708 = vshrl.u32 %v1707, 7
    %v1709 = vsub.s32 6, %v1708
    %v1710 = vrot.slane %v1132, %v1709
    %v1711 = vlaneseq
    %v1712 = vshrl.u32 %v1711, 7
    %v1713 = vsub.s32 7, %v1712
    %v1714 = vrot.slane %v1132, %v1713
    %v1715 = vlaneseq
    %v1716 = vshrl.u32 %v1715, 7
    %v1717 = vsub.s32 0, %v1716
    %v1718 = vrot.slane %v1134, %v1717
    %v1719 = vlaneseq
    %v1720 = vshrl.u32 %v1719, 7
    %v1721 = vsub.s32 1, %v1720
    %v1722 = vrot.slane %v1134, %v1721
    %v1723 = vlaneseq
    %v1724 = vshrl.u32 %v1723, 7
    %v1725 = vsub.s32 2, %v1724
    %v1726 = vrot.slane %v1134, %v1725
    %v1727 = vlaneseq
    %v1728 = vshrl.u32 %v1727, 7
    %v1729 = vsub.s32 3, %v1728
    %v1730 = vrot.slane %v1134, %v1729
    %v1731 = vlaneseq
    %v1732 = vshrl.u32 %v1731, 7
    %v1733 = vsub.s32 4, %v1732
    %v1734 = vrot.slane %v1134, %v1733
    %v1735 = vlaneseq
    %v1736 = vshrl.u32 %v1735, 7
    %v1737 = vsub.s32 5, %v1736
    %v1738 = vrot.slane %v1134, %v1737
    %v1739 = vlaneseq
    %v1740 = vshrl.u32 %v1739, 7
    %v1741 = vsub.s32 6, %v1740
    %v1742 = vrot.slane %v1134, %v1741
    %v1743 = vlaneseq
    %v1744 = vshrl.u32 %v1743, 7
    %v1745 = vsub.s32 7, %v1744
    %v1746 = vrot.slane %v1134, %v1745
    %v1747 = vlaneseq
    %v1748 = vshrl.u32 %v1747, 7
    %v1749 = vsub.s32 0, %v1748
    %v1750 = vrot.slane %v1136, %v1749
    %v1751 = vlaneseq
    %v1752 = vshrl.u32 %v1751, 7
    %v1753 = vsub.s32 1, %v1752
    %v1754 = vrot.slane %v1136, %v1753
    %v1755 = vlaneseq
    %v1756 = vshrl.u32 %v1755, 7
    %v1757 = vsub.s32 2, %v1756
    %v1758 = vrot.slane %v1136, %v1757
    %v1759 = vlaneseq
    %v1760 = vshrl.u32 %v1759, 7
    %v1761 = vsub.s32 3, %v1760
    %v1762 = vrot.slane %v1136, %v1761
    %v1763 = vlaneseq
    %v1764 = vshrl.u32 %v1763, 7
    %v1765 = vsub.s32 4, %v1764
    %v1766 = vrot.slane %v1136, %v1765
    %v1767 = vlaneseq
    %v1768 = vshrl.u32 %v1767, 7
    %v1769 = vsub.s32 5, %v1768
    %v1770 = vrot.slane %v1136, %v1769
    %v1771 = vlaneseq
    %v1772 = vshrl.u32 %v1771, 7
    %v1773 = vsub.s32 6, %v1772
    %v1774 = vrot.slane %v1136, %v1773
    %v1775 = vlaneseq
    %v1776 = vshrl.u32 %v1775, 7
    %v1777 = vsub.s32 7, %v1776
    %v1778 = vrot.slane %v1136, %v1777
    %v1779 = vlaneseq
    %v1780 = vshrl.u32 %v1779, 7
    %v1781 = vsub.s32 0, %v1780
    %v1782 = vrot.slane %v1138, %v1781
    %v1783 = vlaneseq
    %v1784 = vshrl.u32 %v1783, 7
    %v1785 = vsub.s32 1, %v1784
    %v1786 = vrot.slane %v1138, %v1785
    %v1787 = vlaneseq
    %v1788 = vshrl.u32 %v1787, 7
    %v1789 = vsub.s32 2, %v1788
    %v1790 = vrot.slane %v1138, %v1789
    %v1791 = vlaneseq
    %v1792 = vshrl.u32 %v1791, 7
    %v1793 = vsub.s32 3, %v1792
    %v1794 = vrot.slane %v1138, %v1793
    %v1795 = vlaneseq
    %v1796 = vshrl.u32 %v1795, 7
    %v1797 = vsub.s32 4, %v1796
    %v1798 = vrot.slane %v1138, %v1797
    %v1799 = vlaneseq
    %v1800 = vshrl.u32 %v1799, 7
    %v1801 = vsub.s32 5, %v1800
    %v1802 = vrot.slane %v1138, %v1801
    %v1803 = vlaneseq
    %v1804 = vshrl.u32 %v1803, 7
    %v1805 = vsub.s32 6, %v1804
    %v1806 = vrot.slane %v1138, %v1805
    %v1807 = vlaneseq
    %v1808 = vshrl.u32 %v1807, 7
    %v1809 = vsub.s32 7, %v1808
    %v1810 = vrot.slane %v1138, %v1809
    %v1811 = vlaneseq
    %v1812 = vshrl.u32 %v1811, 7
    %v1813 = vsub.s32 0, %v1812
    %v1814 = vrot.slane %v1140, %v1813
    %v1815 = vlaneseq
    %v1816 = vshrl.u32 %v1815, 7
    %v1817 = vsub.s32 1, %v1816
    %v1818 = vrot.slane %v1140, %v1817
    %v1819 = vlaneseq
    %v1820 = vshrl.u32 %v1819, 7
    %v1821 = vsub.s32 2, %v1820
    %v1822 = vrot.slane %v1140, %v1821
    %v1823 = vlaneseq
    %v1824 = vshrl.u32 %v1823, 7
    %v1825 = vsub.s32 3, %v1824
    %v1826 = vrot.slane %v1140, %v1825
    %v1827 = vlaneseq
    %v1828 = vshrl.u32 %v1827, 7
    %v1829 = vsub.s32 4, %v1828
    %v1830 = vrot.slane %v1140, %v1829
    %v1831 = vlaneseq
    %v1832 = vshrl.u32 %v1831, 7
    %v1833 = vsub.s32 5, %v1832
    %v1834 = vrot.slane %v1140, %v1833
    %v1835 = vlaneseq
    %v1836 = vshrl.u32 %v1835, 7
    %v1837 = vsub.s32 6, %v1836
    %v1838 = vrot.slane %v1140, %v1837
    %v1839 = vlaneseq
    %v1840 = vshrl.u32 %v1839, 7
    %v1841 = vsub.s32 7, %v1840
    %v1842 = vrot.slane %v1140, %v1841
    %v1843 = vlaneseq
    %v1844 = vshrl.u32 %v1843, 7
    %v1845 = vsub.s32 0, %v1844
    %v1846 = vrot.slane %v1142, %v1845
    %v1847 = vlaneseq
    %v1848 = vshrl.u32 %v1847, 7
    %v1849 = vsub.s32 1, %v1848
    %v1850 = vrot.slane %v1142, %v1849
    %v1851 = vlaneseq
    %v1852 = vshrl.u32 %v1851, 7
    %v1853 = vsub.s32 2, %v1852
    %v1854 = vrot.slane %v1142, %v1853
    %v1855 = vlaneseq
    %v1856 = vshrl.u32 %v1855, 7
    %v1857 = vsub.s32 3, %v1856
    %v1858 = vrot.slane %v1142, %v1857
    %v1859 = vlaneseq
    %v1860 = vshrl.u32 %v1859, 7
    %v1861 = vsub.s32 4, %v1860
    %v1862 = vrot.slane %v1142, %v1861
    %v1863 = vlaneseq
    %v1864 = vshrl.u32 %v1863, 7
    %v1865 = vsub.s32 5, %v1864
    %v1866 = vrot.slane %v1142, %v1865
    %v1867 = vlaneseq
    %v1868 = vshrl.u32 %v1867, 7
    %v1869 = vsub.s32 6, %v1868
    %v1870 = vrot.slane %v1142, %v1869
    %v1871 = vlaneseq
    %v1872 = vshrl.u32 %v1871, 7
    %v1873 = vsub.s32 7, %v1872
    %v1874 = vrot.slane %v1142, %v1873
    %v1875 = vlaneseq
    %v1876 = vshrl.u32 %v1875, 7
    %v1877 = vsub.s32 0, %v1876
    %v1878 = vrot.slane %v1144, %v1877
    %v1879 = vlaneseq
    %v1880 = vshrl.u32 %v1879, 7
    %v1881 = vsub.s32 1, %v1880
    %v1882 = vrot.slane %v1144, %v1881
    %v1883 = vlaneseq
    %v1884 = vshrl.u32 %v1883, 7
    %v1885 = vsub.s32 2, %v1884
    %v1886 = vrot.slane %v1144, %v1885
    %v1887 = vlaneseq
    %v1888 = vshrl.u32 %v1887, 7
    %v1889 = vsub.s32 3, %v1888
    %v1890 = vrot.slane %v1144, %v1889
    %v1891 = vlaneseq
    %v1892 = vshrl.u32 %v1891, 7
    %v1893 = vsub.s32 4, %v1892
    %v1894 = vrot.slane %v1144, %v1893
    %v1895 = vlaneseq
    %v1896 = vshrl.u32 %v1895, 7
    %v1897 = vsub.s32 5, %v1896
    %v1898 = vrot.slane %v1144, %v1897
    %v1899 = vlaneseq
    %v1900 = vshrl.u32 %v1899, 7
    %v1901 = vsub.s32 6, %v1900
    %v1902 = vrot.slane %v1144, %v1901
    %v1903 = vlaneseq
    %v1904 = vshrl.u32 %v1903, 7
    %v1905 = vsub.s32 7, %v1904
    %v1906 = vrot.slane %v1144, %v1905
    %v1907 = vlaneseq
    %v1908 = vshrl.u32 %v1907, 7
    %v1909 = vsub.s32 0, %v1908
    %v1910 = vrot.slane %v1146, %v1909
    %v1911 = vlaneseq
    %v1912 = vshrl.u32 %v1911, 7
    %v1913 = vsub.s32 1, %v1912
    %v1914 = vrot.slane %v1146, %v1913
    %v1915 = vlaneseq
    %v1916 = vshrl.u32 %v1915, 7
    %v1917 = vsub.s32 2, %v1916
    %v1918 = vrot.slane %v1146, %v1917
    %v1919 = vlaneseq
    %v1920 = vshrl.u32 %v1919, 7
    %v1921 = vsub.s32 3, %v1920
    %v1922 = vrot.slane %v1146, %v1921
    %v1923 = vlaneseq
    %v1924 = vshrl.u32 %v1923, 7
    %v1925 = vsub.s32 4, %v1924
    %v1926 = vrot.slane %v1146, %v1925
    %v1927 = vlaneseq
    %v1928 = vshrl.u32 %v1927, 7
    %v1929 = vsub.s32 5, %v1928
    %v1930 = vrot.slane %v1146, %v1929
    %v1931 = vlaneseq
    %v1932 = vshrl.u32 %v1931, 7
    %v1933 = vsub.s32 6, %v1932
    %v1934 = vrot.slane %v1146, %v1933
    %v1935 = vlaneseq
    %v1936 = vshrl.u32 %v1935, 7
    %v1937 = vsub.s32 7, %v1936
    %v1938 = vrot.slane %v1146, %v1937
    %v1939 = vlaneseq
    %v1940 = vshrl.u32 %v1939, 7
    %v1941 = vsub.s32 0, %v1940
    %v1942 = vrot.slane %v1148, %v1941
    %v1943 = vlaneseq
    %v1944 = vshrl.u32 %v1943, 7
    %v1945 = vsub.s32 1, %v1944
    %v1946 = vrot.slane %v1148, %v1945
    %v1947 = vlaneseq
    %v1948 = vshrl.u32 %v1947, 7
    %v1949 = vsub.s32 2, %v1948
    %v1950 = vrot.slane %v1148, %v1949
    %v1951 = vlaneseq
    %v1952 = vshrl.u32 %v1951, 7
    %v1953 = vsub.s32 3, %v1952
    %v1954 = vrot.slane %v1148, %v1953
    %v1955 = vlaneseq
    %v1956 = vshrl.u32 %v1955, 7
    %v1957 = vsub.s32 4, %v1956
    %v1958 = vrot.slane %v1148, %v1957
    %v1959 = vlaneseq
    %v1960 = vshrl.u32 %v1959, 7
    %v1961 = vsub.s32 5, %v1960
    %v1962 = vrot.slane %v1148, %v1961
    %v1963 = vlaneseq
    %v1964 = vshrl.u32 %v1963, 7
    %v1965 = vsub.s32 6, %v1964
    %v1966 = vrot.slane %v1148, %v1965
    %v1967 = vlaneseq
    %v1968 = vshrl.u32 %v1967, 7
    %v1969 = vsub.s32 7, %v1968
    %v1970 = vrot.slane %v1148, %v1969
    %v1971 = vlaneseq
    %v1972 = vshrl.u32 %v1971, 7
    %v1973 = vsub.s32 0, %v1972
    %v1974 = vrot.slane %v1150, %v1973
    %v1975 = vlaneseq
    %v1976 = vshrl.u32 %v1975, 7
    %v1977 = vsub.s32 1, %v1976
    %v1978 = vrot.slane %v1150, %v1977
    %v1979 = vlaneseq
    %v1980 = vshrl.u32 %v1979, 7
    %v1981 = vsub.s32 2, %v1980
    %v1982 = vrot.slane %v1150, %v1981
    %v1983 = vlaneseq
    %v1984 = vshrl.u32 %v1983, 7
    %v1985 = vsub.s32 3, %v1984
    %v1986 = vrot.slane %v1150, %v1985
    %v1987 = vlaneseq
    %v1988 = vshrl.u32 %v1987, 7
    %v1989 = vsub.s32 4, %v1988
    %v1990 = vrot.slane %v1150, %v1989
    %v1991 = vlaneseq
    %v1992 = vshrl.u32 %v1991, 7
    %v1993 = vsub.s32 5, %v1992
    %v1994 = vrot.slane %v1150, %v1993
    %v1995 = vlaneseq
    %v1996 = vshrl.u32 %v1995, 7
    %v1997 = vsub.s32 6, %v1996
    %v1998 = vrot.slane %v1150, %v1997
    %v1999 = vlaneseq
    %v2000 = vshrl.u32 %v1999, 7
    %v2001 = vsub.s32 7, %v2000
    %v2002 = vrot.slane %v1150, %v2001
    %v2003 = vlaneseq
    %v2004 = vshrl.u32 %v2003, 7
    %v2005 = vsub.s32 0, %v2004
    %v2006 = vrot.slane %v1152, %v2005
    %v2007 = vlaneseq
    %v2008 = vshrl.u32 %v2007, 7
    %v2009 = vsub.s32 1, %v2008
    %v2010 = vrot.slane %v1152, %v2009
    %v2011 = vlaneseq
    %v2012 = vshrl.u32 %v2011, 7
    %v2013 = vsub.s32 2, %v2012
    %v2014 = vrot.slane %v1152, %v2013
    %v2015 = vlaneseq
    %v2016 = vshrl.u32 %v2015, 7
    %v2017 = vsub.s32 3, %v2016
    %v2018 = vrot.slane %v1152, %v2017
    %v2019 = vlaneseq
    %v2020 = vshrl.u32 %v2019, 7
    %v2021 = vsub.s32 4, %v2020
    %v2022 = vrot.slane %v1152, %v2021
    %v2023 = vlaneseq
    %v2024 = vshrl.u32 %v2023, 7
    %v2025 = vsub.s32 5, %v2024
    %v2026 = vrot.slane %v1152, %v2025
    %v2027 = vlaneseq
    %v2028 = vshrl.u32 %v2027, 7
    %v2029 = vsub.s32 6, %v2028
    %v2030 = vrot.slane %v1152, %v2029
    %v2031 = vlaneseq
    %v2032 = vshrl.u32 %v2031, 7
    %v2033 = vsub.s32 7, %v2032
    %v2034 = vrot.slane %v1152, %v2033
    %v2035 = vlaneseq
    %v2036 = vshrl.u32 %v2035, 7
    %v2037 = vsub.s32 0, %v2036
    %v2038 = vrot.slane %v1154, %v2037
    %v2039 = vlaneseq
    %v2040 = vshrl.u32 %v2039, 7
    %v2041 = vsub.s32 1, %v2040
    %v2042 = vrot.slane %v1154, %v2041
    %v2043 = vlaneseq
    %v2044 = vshrl.u32 %v2043, 7
    %v2045 = vsub.s32 2, %v2044
    %v2046 = vrot.slane %v1154, %v2045
    %v2047 = vlaneseq
    %v2048 = vshrl.u32 %v2047, 7
    %v2049 = vsub.s32 3, %v2048
    %v2050 = vrot.slane %v1154, %v2049
    %v2051 = vlaneseq
    %v2052 = vshrl.u32 %v2051, 7
    %v2053 = vsub.s32 4, %v2052
    %v2054 = vrot.slane %v1154, %v2053
    %v2055 = vlaneseq
    %v2056 = vshrl.u32 %v2055, 7
    %v2057 = vsub.s32 5, %v2056
    %v2058 = vrot.slane %v1154, %v2057
    %v2059 = vlaneseq
    %v2060 = vshrl.u32 %v2059, 7
    %v2061 = vsub.s32 6, %v2060
    %v2062 = vrot.slane %v1154, %v2061
    %v2063 = vlaneseq
    %v2064 = vshrl.u32 %v2063, 7
    %v2065 = vsub.s32 7, %v2064
    %v2066 = vrot.slane %v1154, %v2065
    %v2067 = vlaneseq
    %v2068 = vshrl.u32 %v2067, 7
    %v2069 = vsub.s32 0, %v2068
    %v2070 = vrot.slane %v1156, %v2069
    %v2071 = vlaneseq
    %v2072 = vshrl.u32 %v2071, 7
    %v2073 = vsub.s32 1, %v2072
    %v2074 = vrot.slane %v1156, %v2073
    %v2075 = vlaneseq
    %v2076 = vshrl.u32 %v2075, 7
    %v2077 = vsub.s32 2, %v2076
    %v2078 = vrot.slane %v1156, %v2077
    %v2079 = vlaneseq
    %v2080 = vshrl.u32 %v2079, 7
    %v2081 = vsub.s32 3, %v2080
    %v2082 = vrot.slane %v1156, %v2081
    %v2083 = vlaneseq
    %v2084 = vshrl.u32 %v2083, 7
    %v2085 = vsub.s32 4, %v2084
    %v2086 = vrot.slane %v1156, %v2085
    %v2087 = vlaneseq
    %v2088 = vshrl.u32 %v2087, 7
    %v2089 = vsub.s32 5, %v2088
    %v2090 = vrot.slane %v1156, %v2089
    %v2091 = vlaneseq
    %v2092 = vshrl.u32 %v2091, 7
    %v2093 = vsub.s32 6, %v2092
    %v2094 = vrot.slane %v1156, %v2093
    %v2095 = vlaneseq
    %v2096 = vshrl.u32 %v2095, 7
    %v2097 = vsub.s32 7, %v2096
    %v2098 = vrot.slane %v1156, %v2097
    %v2099 = vlaneseq
    %v2100 = vshrl.u32 %v2099, 7
    %v2101 = vsub.s32 0, %v2100
    %v2102 = vrot.slane %v1158, %v2101
    %v2103 = vlaneseq
    %v2104 = vshrl.u32 %v2103, 7
    %v2105 = vsub.s32 1, %v2104
    %v2106 = vrot.slane %v1158, %v2105
    %v2107 = vlaneseq
    %v2108 = vshrl.u32 %v2107, 7
    %v2109 = vsub.s32 2, %v2108
    %v2110 = vrot.slane %v1158, %v2109
    %v2111 = vlaneseq
    %v2112 = vshrl.u32 %v2111, 7
    %v2113 = vsub.s32 3, %v2112
    %v2114 = vrot.slane %v1158, %v2113
    %v2115 = vlaneseq
    %v2116 = vshrl.u32 %v2115, 7
    %v2117 = vsub.s32 4, %v2116
    %v2118 = vrot.slane %v1158, %v2117
    %v2119 = vlaneseq
    %v2120 = vshrl.u32 %v2119, 7
    %v2121 = vsub.s32 5, %v2120
    %v2122 = vrot.slane %v1158, %v2121
    %v2123 = vlaneseq
    %v2124 = vshrl.u32 %v2123, 7
    %v2125 = vsub.s32 6, %v2124
    %v2126 = vrot.slane %v1158, %v2125
    %v2127 = vlaneseq
    %v2128 = vshrl.u32 %v2127, 7
    %v2129 = vsub.s32 7, %v2128
    %v2130 = vrot.slane %v1158, %v2129
    %v2131 = vlaneseq
    %v2132 = vshrl.u32 %v2131, 7
    %v2133 = vsub.s32 0, %v2132
    %v2134 = vrot.slane %v1160, %v2133
    %v2135 = vlaneseq
    %v2136 = vshrl.u32 %v2135, 7
    %v2137 = vsub.s32 1, %v2136
    %v2138 = vrot.slane %v1160, %v2137
    %v2139 = vlaneseq
    %v2140 = vshrl.u32 %v2139, 7
    %v2141 = vsub.s32 2, %v2140
    %v2142 = vrot.slane %v1160, %v2141
    %v2143 = vlaneseq
    %v2144 = vshrl.u32 %v2143, 7
    %v2145 = vsub.s32 3, %v2144
    %v2146 = vrot.slane %v1160, %v2145
    %v2147 = vlaneseq
    %v2148 = vshrl.u32 %v2147, 7
    %v2149 = vsub.s32 4, %v2148
    %v2150 = vrot.slane %v1160, %v2149
    %v2151 = vlaneseq
    %v2152 = vshrl.u32 %v2151, 7
    %v2153 = vsub.s32 5, %v2152
    %v2154 = vrot.slane %v1160, %v2153
    %v2155 = vlaneseq
    %v2156 = vshrl.u32 %v2155, 7
    %v2157 = vsub.s32 6, %v2156
    %v2158 = vrot.slane %v1160, %v2157
    %v2159 = vlaneseq
    %v2160 = vshrl.u32 %v2159, 7
    %v2161 = vsub.s32 7, %v2160
    %v2162 = vrot.slane %v1160, %v2161
    %v2163 = vlaneseq
    %v2164 = vshrl.u32 %v2163, 7
    %v2165 = vsub.s32 0, %v2164
    %v2166 = vrot.slane %v1162, %v2165
    %v2167 = vlaneseq
    %v2168 = vshrl.u32 %v2167, 7
    %v2169 = vsub.s32 1, %v2168
    %v2170 = vrot.slane %v1162, %v2169
    %v2171 = vlaneseq
    %v2172 = vshrl.u32 %v2171, 7
    %v2173 = vsub.s32 2, %v2172
    %v2174 = vrot.slane %v1162, %v2173
    %v2175 = vlaneseq
    %v2176 = vshrl.u32 %v2175, 7
    %v2177 = vsub.s32 3, %v2176
    %v2178 = vrot.slane %v1162, %v2177
    %v2179 = vlaneseq
    %v2180 = vshrl.u32 %v2179, 7
    %v2181 = vsub.s32 4, %v2180
    %v2182 = vrot.slane %v1162, %v2181
    %v2183 = vlaneseq
    %v2184 = vshrl.u32 %v2183, 7
    %v2185 = vsub.s32 5, %v2184
    %v2186 = vrot.slane %v1162, %v2185
    %v2187 = vlaneseq
    %v2188 = vshrl.u32 %v2187, 7
    %v2189 = vsub.s32 6, %v2188
    %v2190 = vrot.slane %v1162, %v2189
    %v2191 = vlaneseq
    %v2192 = vshrl.u32 %v2191, 7
    %v2193 = vsub.s32 7, %v2192
    %v2194 = vrot.slane %v1162, %v2193
    %v2195 = vlaneseq
    %v2196 = vshrl.u32 %v2195, 7
    %v2197 = vsub.s32 0, %v2196
    %v2198 = vrot.slane %v1164, %v2197
    %v2199 = vlaneseq
    %v2200 = vshrl.u32 %v2199, 7
    %v2201 = vsub.s32 1, %v2200
    %v2202 = vrot.slane %v1164, %v2201
    %v2203 = vlaneseq
    %v2204 = vshrl.u32 %v2203, 7
    %v2205 = vsub.s32 2, %v2204
    %v2206 = vrot.slane %v1164, %v2205
    %v2207 = vlaneseq
    %v2208 = vshrl.u32 %v2207, 7
    %v2209 = vsub.s32 3, %v2208
    %v2210 = vrot.slane %v1164, %v2209
    %v2211 = vlaneseq
    %v2212 = vshrl.u32 %v2211, 7
    %v2213 = vsub.s32 4, %v2212
    %v2214 = vrot.slane %v1164, %v2213
    %v2215 = vlaneseq
    %v2216 = vshrl.u32 %v2215, 7
    %v2217 = vsub.s32 5, %v2216
    %v2218 = vrot.slane %v1164, %v2217
    %v2219 = vlaneseq
    %v2220 = vshrl.u32 %v2219, 7
    %v2221 = vsub.s32 6, %v2220
    %v2222 = vrot.slane %v1164, %v2221
    %v2223 = vlaneseq
    %v2224 = vshrl.u32 %v2223, 7
    %v2225 = vsub.s32 7, %v2224
    %v2226 = vrot.slane %v1164, %v2225
    %v2227 = vlaneseq
    %v2228 = vshrl.u32 %v2227, 7
    %v2229 = vsub.s32 0, %v2228
    %v2230 = vrot.slane %v1166, %v2229
    %v2231 = vlaneseq
    %v2232 = vshrl.u32 %v2231, 7
    %v2233 = vsub.s32 1, %v2232
    %v2234 = vrot.slane %v1166, %v2233
    %v2235 = vlaneseq
    %v2236 = vshrl.u32 %v2235, 7
    %v2237 = vsub.s32 2, %v2236
    %v2238 = vrot.slane %v1166, %v2237
    %v2239 = vlaneseq
    %v2240 = vshrl.u32 %v2239, 7
    %v2241 = vsub.s32 3, %v2240
    %v2242 = vrot.slane %v1166, %v2241
    %v2243 = vlaneseq
    %v2244 = vshrl.u32 %v2243, 7
    %v2245 = vsub.s32 4, %v2244
    %v2246 = vrot.slane %v1166, %v2245
    %v2247 = vlaneseq
    %v2248 = vshrl.u32 %v2247, 7
    %v2249 = vsub.s32 5, %v2248
    %v2250 = vrot.slane %v1166, %v2249
    %v2251 = vlaneseq
    %v2252 = vshrl.u32 %v2251, 7
    %v2253 = vsub.s32 6, %v2252
    %v2254 = vrot.slane %v1166, %v2253
    %v2255 = vlaneseq
    %v2256 = vshrl.u32 %v2255, 7
    %v2257 = vsub.s32 7, %v2256
    %v2258 = vrot.slane %v1166, %v2257
    %v2259 = vlaneseq
    %v2260 = vshrl.u32 %v2259, 7
    %v2261 = vsub.s32 0, %v2260
    %v2262 = vrot.slane %v1168, %v2261
    %v2263 = vlaneseq
    %v2264 = vshrl.u32 %v2263, 7
    %v2265 = vsub.s32 1, %v2264
    %v2266 = vrot.slane %v1168, %v2265
    %v2267 = vlaneseq
    %v2268 = vshrl.u32 %v2267, 7
    %v2269 = vsub.s32 2, %v2268
    %v2270 = vrot.slane %v1168, %v2269
    %v2271 = vlaneseq
    %v2272 = vshrl.u32 %v2271, 7
    %v2273 = vsub.s32 3, %v2272
    %v2274 = vrot.slane %v1168, %v2273
    %v2275 = vlaneseq
    %v2276 = vshrl.u32 %v2275, 7
    %v2277 = vsub.s32 4, %v2276
    %v2278 = vrot.slane %v1168, %v2277
    %v2279 = vlaneseq
    %v2280 = vshrl.u32 %v2279, 7
    %v2281 = vsub.s32 5, %v2280
    %v2282 = vrot.slane %v1168, %v2281
    %v2283 = vlaneseq
    %v2284 = vshrl.u32 %v2283, 7
    %v2285 = vsub.s32 6, %v2284
    %v2286 = vrot.slane %v1168, %v2285
    %v2287 = vlaneseq
    %v2288 = vshrl.u32 %v2287, 7
    %v2289 = vsub.s32 7, %v2288
    %v2290 = vrot.slane %v1168, %v2289
    %v2291 = vlaneseq
    %v2292 = vshrl.u32 %v2291, 7
    %v2293 = vsub.s32 0, %v2292
    %v2294 = vrot.slane %v1170, %v2293
    %v2295 = vlaneseq
    %v2296 = vshrl.u32 %v2295, 7
    %v2297 = vsub.s32 1, %v2296
    %v2298 = vrot.slane %v1170, %v2297
    %v2299 = vlaneseq
    %v2300 = vshrl.u32 %v2299, 7
    %v2301 = vsub.s32 2, %v2300
    %v2302 = vrot.slane %v1170, %v2301
    %v2303 = vlaneseq
    %v2304 = vshrl.u32 %v2303, 7
    %v2305 = vsub.s32 3, %v2304
    %v2306 = vrot.slane %v1170, %v2305
    %v2307 = vlaneseq
    %v2308 = vshrl.u32 %v2307, 7
    %v2309 = vsub.s32 4, %v2308
    %v2310 = vrot.slane %v1170, %v2309
    %v2311 = vlaneseq
    %v2312 = vshrl.u32 %v2311, 7
    %v2313 = vsub.s32 5, %v2312
    %v2314 = vrot.slane %v1170, %v2313
    %v2315 = vlaneseq
    %v2316 = vshrl.u32 %v2315, 7
    %v2317 = vsub.s32 6, %v2316
    %v2318 = vrot.slane %v1170, %v2317
    %v2319 = vlaneseq
    %v2320 = vshrl.u32 %v2319, 7
    %v2321 = vsub.s32 7, %v2320
    %v2322 = vrot.slane %v1170, %v2321
    %v2323 = vlaneseq
    %v2324 = vshrl.u32 %v2323, 7
    %v2325 = vsub.s32 0, %v2324
    %v2326 = vrot.slane %v1172, %v2325
    %v2327 = vlaneseq
    %v2328 = vshrl.u32 %v2327, 7
    %v2329 = vsub.s32 1, %v2328
    %v2330 = vrot.slane %v1172, %v2329
    %v2331 = vlaneseq
    %v2332 = vshrl.u32 %v2331, 7
    %v2333 = vsub.s32 2, %v2332
    %v2334 = vrot.slane %v1172, %v2333
    %v2335 = vlaneseq
    %v2336 = vshrl.u32 %v2335, 7
    %v2337 = vsub.s32 3, %v2336
    %v2338 = vrot.slane %v1172, %v2337
    %v2339 = vlaneseq
    %v2340 = vshrl.u32 %v2339, 7
    %v2341 = vsub.s32 4, %v2340
    %v2342 = vrot.slane %v1172, %v2341
    %v2343 = vlaneseq
    %v2344 = vshrl.u32 %v2343, 7
    %v2345 = vsub.s32 5, %v2344
    %v2346 = vrot.slane %v1172, %v2345
    %v2347 = vlaneseq
    %v2348 = vshrl.u32 %v2347, 7
    %v2349 = vsub.s32 6, %v2348
    %v2350 = vrot.slane %v1172, %v2349
    %v2351 = vlaneseq
    %v2352 = vshrl.u32 %v2351, 7
    %v2353 = vsub.s32 7, %v2352
    %v2354 = vrot.slane %v1172, %v2353
    %v2355 = vlaneseq
    %v2356 = vshrl.u32 %v2355, 7
    %v2357 = vsub.s32 0, %v2356
    %v2358 = vrot.slane %v1174, %v2357
    %v2359 = vlaneseq
    %v2360 = vshrl.u32 %v2359, 7
    %v2361 = vsub.s32 1, %v2360
    %v2362 = vrot.slane %v1174, %v2361
    %v2363 = vlaneseq
    %v2364 = vshrl.u32 %v2363, 7
    %v2365 = vsub.s32 2, %v2364
    %v2366 = vrot.slane %v1174, %v2365
    %v2367 = vlaneseq
    %v2368 = vshrl.u32 %v2367, 7
    %v2369 = vsub.s32 3, %v2368
    %v2370 = vrot.slane %v1174, %v2369
    %v2371 = vlaneseq
    %v2372 = vshrl.u32 %v2371, 7
    %v2373 = vsub.s32 4, %v2372
    %v2374 = vrot.slane %v1174, %v2373
    %v2375 = vlaneseq
    %v2376 = vshrl.u32 %v2375, 7
    %v2377 = vsub.s32 5, %v2376
    %v2378 = vrot.slane %v1174, %v2377
    %v2379 = vlaneseq
    %v2380 = vshrl.u32 %v2379, 7
    %v2381 = vsub.s32 6, %v2380
    %v2382 = vrot.slane %v1174, %v2381
    %v2383 = vlaneseq
    %v2384 = vshrl.u32 %v2383, 7
    %v2385 = vsub.s32 7, %v2384
    %v2386 = vrot.slane %v1174, %v2385
    %v2387 = vlaneseq
    %v2388 = vshrl.u32 %v2387, 7
    %v2389 = vsub.s32 0, %v2388
    %v2390 = vrot.slane %v1176, %v2389
    %v2391 = vlaneseq
    %v2392 = vshrl.u32 %v2391, 7
    %v2393 = vsub.s32 1, %v2392
    %v2394 = vrot.slane %v1176, %v2393
    %v2395 = vlaneseq
    %v2396 = vshrl.u32 %v2395, 7
    %v2397 = vsub.s32 2, %v2396
    %v2398 = vrot.slane %v1176, %v2397
    %v2399 = vlaneseq
    %v2400 = vshrl.u32 %v2399, 7
    %v2401 = vsub.s32 3, %v2400
    %v2402 = vrot.slane %v1176, %v2401
    %v2403 = vlaneseq
    %v2404 = vshrl.u32 %v2403, 7
    %v2405 = vsub.s32 4, %v2404
    %v2406 = vrot.slane %v1176, %v2405
    %v2407 = vlaneseq
    %v2408 = vshrl.u32 %v2407, 7
    %v2409 = vsub.s32 5, %v2408
    %v2410 = vrot.slane %v1176, %v2409
    %v2411 = vlaneseq
    %v2412 = vshrl.u32 %v2411, 7
    %v2413 = vsub.s32 6, %v2412
    %v2414 = vrot.slane %v1176, %v2413
    %v2415 = vlaneseq
    %v2416 = vshrl.u32 %v2415, 7
    %v2417 = vsub.s32 7, %v2416
    %v2418 = vrot.slane %v1176, %v2417
    %v2419 = vlaneseq
    %v2420 = vshrl.u32 %v2419, 7
    %v2421 = vsub.s32 0, %v2420
    %v2422 = vrot.slane %v1178, %v2421
    %v2423 = vlaneseq
    %v2424 = vshrl.u32 %v2423, 7
    %v2425 = vsub.s32 1, %v2424
    %v2426 = vrot.slane %v1178, %v2425
    %v2427 = vlaneseq
    %v2428 = vshrl.u32 %v2427, 7
    %v2429 = vsub.s32 2, %v2428
    %v2430 = vrot.slane %v1178, %v2429
    %v2431 = vlaneseq
    %v2432 = vshrl.u32 %v2431, 7
    %v2433 = vsub.s32 3, %v2432
    %v2434 = vrot.slane %v1178, %v2433
    %v2435 = vlaneseq
    %v2436 = vshrl.u32 %v2435, 7
    %v2437 = vsub.s32 4, %v2436
    %v2438 = vrot.slane %v1178, %v2437
    %v2439 = vlaneseq
    %v2440 = vshrl.u32 %v2439, 7
    %v2441 = vsub.s32 5, %v2440
    %v2442 = vrot.slane %v1178, %v2441
    %v2443 = vlaneseq
    %v2444 = vshrl.u32 %v2443, 7
    %v2445 = vsub.s32 6, %v2444
    %v2446 = vrot.slane %v1178, %v2445
    %v2447 = vlaneseq
    %v2448 = vshrl.u32 %v2447, 7
    %v2449 = vsub.s32 7, %v2448
    %v2450 = vrot.slane %v1178, %v2449
    %v2451 = vlaneseq
    %v2452 = vshrl.u32 %v2451, 7
    %v2453 = vsub.s32 0, %v2452
    %v2454 = vrot.slane %v1180, %v2453
    %v2455 = vlaneseq
    %v2456 = vshrl.u32 %v2455, 7
    %v2457 = vsub.s32 1, %v2456
    %v2458 = vrot.slane %v1180, %v2457
    %v2459 = vlaneseq
    %v2460 = vshrl.u32 %v2459, 7
    %v2461 = vsub.s32 2, %v2460
    %v2462 = vrot.slane %v1180, %v2461
    %v2463 = vlaneseq
    %v2464 = vshrl.u32 %v2463, 7
    %v2465 = vsub.s32 3, %v2464
    %v2466 = vrot.slane %v1180, %v2465
    %v2467 = vlaneseq
    %v2468 = vshrl.u32 %v2467, 7
    %v2469 = vsub.s32 4, %v2468
    %v2470 = vrot.slane %v1180, %v2469
    %v2471 = vlaneseq
    %v2472 = vshrl.u32 %v2471, 7
    %v2473 = vsub.s32 5, %v2472
    %v2474 = vrot.slane %v1180, %v2473
    %v2475 = vlaneseq
    %v2476 = vshrl.u32 %v2475, 7
    %v2477 = vsub.s32 6, %v2476
    %v2478 = vrot.slane %v1180, %v2477
    %v2479 = vlaneseq
    %v2480 = vshrl.u32 %v2479, 7
    %v2481 = vsub.s32 7, %v2480
    %v2482 = vrot.slane %v1180, %v2481
    %v2483 = vlaneseq
    %v2484 = vshrl.u32 %v2483, 7
    %v2485 = vsub.s32 0, %v2484
    %v2486 = vrot.slane %v1182, %v2485
    %v2487 = vlaneseq
    %v2488 = vshrl.u32 %v2487, 7
    %v2489 = vsub.s32 1, %v2488
    %v2490 = vrot.slane %v1182, %v2489
    %v2491 = vlaneseq
    %v2492 = vshrl.u32 %v2491, 7
    %v2493 = vsub.s32 2, %v2492
    %v2494 = vrot.slane %v1182, %v2493
    %v2495 = vlaneseq
    %v2496 = vshrl.u32 %v2495, 7
    %v2497 = vsub.s32 3, %v2496
    %v2498 = vrot.slane %v1182, %v2497
    %v2499 = vlaneseq
    %v2500 = vshrl.u32 %v2499, 7
    %v2501 = vsub.s32 4, %v2500
    %v2502 = vrot.slane %v1182, %v2501
    %v2503 = vlaneseq
    %v2504 = vshrl.u32 %v2503, 7
    %v2505 = vsub.s32 5, %v2504
    %v2506 = vrot.slane %v1182, %v2505
    %v2507 = vlaneseq
    %v2508 = vshrl.u32 %v2507, 7
    %v2509 = vsub.s32 6, %v2508
    %v2510 = vrot.slane %v1182, %v2509
    %v2511 = vlaneseq
    %v2512 = vshrl.u32 %v2511, 7
    %v2513 = vsub.s32 7, %v2512
    %v2514 = vrot.slane %v1182, %v2513
    %v2515 = vlaneseq
    %v2516 = vshrl.u32 %v2515, 7
    %v2517 = vsub.s32 0, %v2516
    %v2518 = vrot.slane %v1184, %v2517
    %v2519 = vlaneseq
    %v2520 = vshrl.u32 %v2519, 7
    %v2521 = vsub.s32 1, %v2520
    %v2522 = vrot.slane %v1184, %v2521
    %v2523 = vlaneseq
    %v2524 = vshrl.u32 %v2523, 7
    %v2525 = vsub.s32 2, %v2524
    %v2526 = vrot.slane %v1184, %v2525
    %v2527 = vlaneseq
    %v2528 = vshrl.u32 %v2527, 7
    %v2529 = vsub.s32 3, %v2528
    %v2530 = vrot.slane %v1184, %v2529
    %v2531 = vlaneseq
    %v2532 = vshrl.u32 %v2531, 7
    %v2533 = vsub.s32 4, %v2532
    %v2534 = vrot.slane %v1184, %v2533
    %v2535 = vlaneseq
    %v2536 = vshrl.u32 %v2535, 7
    %v2537 = vsub.s32 5, %v2536
    %v2538 = vrot.slane %v1184, %v2537
    %v2539 = vlaneseq
    %v2540 = vshrl.u32 %v2539, 7
    %v2541 = vsub.s32 6, %v2540
    %v2542 = vrot.slane %v1184, %v2541
    %v2543 = vlaneseq
    %v2544 = vshrl.u32 %v2543, 7
    %v2545 = vsub.s32 7, %v2544
    %v2546 = vrot.slane %v1184, %v2545
    %v2547 = vlaneseq
    %v2548 = vshrl.u32 %v2547, 7
    %v2549 = vsub.s32 0, %v2548
    %v2550 = vrot.slane %v1186, %v2549
    %v2551 = vlaneseq
    %v2552 = vshrl.u32 %v2551, 7
    %v2553 = vsub.s32 1, %v2552
    %v2554 = vrot.slane %v1186, %v2553
    %v2555 = vlaneseq
    %v2556 = vshrl.u32 %v2555, 7
    %v2557 = vsub.s32 2, %v2556
    %v2558 = vrot.slane %v1186, %v2557
    %v2559 = vlaneseq
    %v2560 = vshrl.u32 %v2559, 7
    %v2561 = vsub.s32 3, %v2560
    %v2562 = vrot.slane %v1186, %v2561
    %v2563 = vlaneseq
    %v2564 = vshrl.u32 %v2563, 7
    %v2565 = vsub.s32 4, %v2564
    %v2566 = vrot.slane %v1186, %v2565
    %v2567 = vlaneseq
    %v2568 = vshrl.u32 %v2567, 7
    %v2569 = vsub.s32 5, %v2568
    %v2570 = vrot.slane %v1186, %v2569
    %v2571 = vlaneseq
    %v2572 = vshrl.u32 %v2571, 7
    %v2573 = vsub.s32 6, %v2572
    %v2574 = vrot.slane %v1186, %v2573
    %v2575 = vlaneseq
    %v2576 = vshrl.u32 %v2575, 7
    %v2577 = vsub.s32 7, %v2576
    %v2578 = vrot.slane %v1186, %v2577
    %v2579 = vlaneseq
    %v2580 = vshrl.u32 %v2579, 7
    %v2581 = vsub.s32 0, %v2580
    %v2582 = vrot.slane %v1188, %v2581
    %v2583 = vlaneseq
    %v2584 = vshrl.u32 %v2583, 7
    %v2585 = vsub.s32 1, %v2584
    %v2586 = vrot.slane %v1188, %v2585
    %v2587 = vlaneseq
    %v2588 = vshrl.u32 %v2587, 7
    %v2589 = vsub.s32 2, %v2588
    %v2590 = vrot.slane %v1188, %v2589
    %v2591 = vlaneseq
    %v2592 = vshrl.u32 %v2591, 7
    %v2593 = vsub.s32 3, %v2592
    %v2594 = vrot.slane %v1188, %v2593
    %v2595 = vlaneseq
    %v2596 = vshrl.u32 %v2595, 7
    %v2597 = vsub.s32 4, %v2596
    %v2598 = vrot.slane %v1188, %v2597
    %v2599 = vlaneseq
    %v2600 = vshrl.u32 %v2599, 7
    %v2601 = vsub.s32 5, %v2600
    %v2602 = vrot.slane %v1188, %v2601
    %v2603 = vlaneseq
    %v2604 = vshrl.u32 %v2603, 7
    %v2605 = vsub.s32 6, %v2604
    %v2606 = vrot.slane %v1188, %v2605
    %v2607 = vlaneseq
    %v2608 = vshrl.u32 %v2607, 7
    %v2609 = vsub.s32 7, %v2608
    %v2610 = vrot.slane %v1188, %v2609
    %v2611 = vlaneseq
    %v2612 = vshrl.u32 %v2611, 7
    %v2613 = vsub.s32 0, %v2612
    %v2614 = vrot.slane %v1190, %v2613
    %v2615 = vlaneseq
    %v2616 = vshrl.u32 %v2615, 7
    %v2617 = vsub.s32 1, %v2616
    %v2618 = vrot.slane %v1190, %v2617
    %v2619 = vlaneseq
    %v2620 = vshrl.u32 %v2619, 7
    %v2621 = vsub.s32 2, %v2620
    %v2622 = vrot.slane %v1190, %v2621
    %v2623 = vlaneseq
    %v2624 = vshrl.u32 %v2623, 7
    %v2625 = vsub.s32 3, %v2624
    %v2626 = vrot.slane %v1190, %v2625
    %v2627 = vlaneseq
    %v2628 = vshrl.u32 %v2627, 7
    %v2629 = vsub.s32 4, %v2628
    %v2630 = vrot.slane %v1190, %v2629
    %v2631 = vlaneseq
    %v2632 = vshrl.u32 %v2631, 7
    %v2633 = vsub.s32 5, %v2632
    %v2634 = vrot.slane %v1190, %v2633
    %v2635 = vlaneseq
    %v2636 = vshrl.u32 %v2635, 7
    %v2637 = vsub.s32 6, %v2636
    %v2638 = vrot.slane %v1190, %v2637
    %v2639 = vlaneseq
    %v2640 = vshrl.u32 %v2639, 7
    %v2641 = vsub.s32 7, %v2640
    %v2642 = vrot.slane %v1190, %v2641
    %v2643 = vlaneseq
    %v2644 = vshrl.u32 %v2643, 7
    %v2645 = vsub.s32 0, %v2644
    %v2646 = vrot.slane %v1192, %v2645
    %v2647 = vlaneseq
    %v2648 = vshrl.u32 %v2647, 7
    %v2649 = vsub.s32 1, %v2648
    %v2650 = vrot.slane %v1192, %v2649
    %v2651 = vlaneseq
    %v2652 = vshrl.u32 %v2651, 7
    %v2653 = vsub.s32 2, %v2652
    %v2654 = vrot.slane %v1192, %v2653
    %v2655 = vlaneseq
    %v2656 = vshrl.u32 %v2655, 7
    %v2657 = vsub.s32 3, %v2656
    %v2658 = vrot.slane %v1192, %v2657
    %v2659 = vlaneseq
    %v2660 = vshrl.u32 %v2659, 7
    %v2661 = vsub.s32 4, %v2660
    %v2662 = vrot.slane %v1192, %v2661
    %v2663 = vlaneseq
    %v2664 = vshrl.u32 %v2663, 7
    %v2665 = vsub.s32 5, %v2664
    %v2666 = vrot.slane %v1192, %v2665
    %v2667 = vlaneseq
    %v2668 = vshrl.u32 %v2667, 7
    %v2669 = vsub.s32 6, %v2668
    %v2670 = vrot.slane %v1192, %v2669
    %v2671 = vlaneseq
    %v2672 = vshrl.u32 %v2671, 7
    %v2673 = vsub.s32 7, %v2672
    %v2674 = vrot.slane %v1192, %v2673
    %v2675 = vlaneseq
    %v2676 = vshrl.u32 %v2675, 7
    %v2677 = vsub.s32 0, %v2676
    %v2678 = vrot.slane %v1194, %v2677
    %v2679 = vlaneseq
    %v2680 = vshrl.u32 %v2679, 7
    %v2681 = vsub.s32 1, %v2680
    %v2682 = vrot.slane %v1194, %v2681
    %v2683 = vlaneseq
    %v2684 = vshrl.u32 %v2683, 7
    %v2685 = vsub.s32 2, %v2684
    %v2686 = vrot.slane %v1194, %v2685
    %v2687 = vlaneseq
    %v2688 = vshrl.u32 %v2687, 7
    %v2689 = vsub.s32 3, %v2688
    %v2690 = vrot.slane %v1194, %v2689
    %v2691 = vlaneseq
    %v2692 = vshrl.u32 %v2691, 7
    %v2693 = vsub.s32 4, %v2692
    %v2694 = vrot.slane %v1194, %v2693
    %v2695 = vlaneseq
    %v2696 = vshrl.u32 %v2695, 7
    %v2697 = vsub.s32 5, %v2696
    %v2698 = vrot.slane %v1194, %v2697
    %v2699 = vlaneseq
    %v2700 = vshrl.u32 %v2699, 7
    %v2701 = vsub.s32 6, %v2700
    %v2702 = vrot.slane %v1194, %v2701
    %v2703 = vlaneseq
    %v2704 = vshrl.u32 %v2703, 7
    %v2705 = vsub.s32 7, %v2704
    %v2706 = vrot.slane %v1194, %v2705
    %v2707 = vlaneseq
    %v2708 = vshrl.u32 %v2707, 7
    %v2709 = vsub.s32 0, %v2708
    %v2710 = vrot.slane %v1196, %v2709
    %v2711 = vlaneseq
    %v2712 = vshrl.u32 %v2711, 7
    %v2713 = vsub.s32 1, %v2712
    %v2714 = vrot.slane %v1196, %v2713
    %v2715 = vlaneseq
    %v2716 = vshrl.u32 %v2715, 7
    %v2717 = vsub.s32 2, %v2716
    %v2718 = vrot.slane %v1196, %v2717
    %v2719 = vlaneseq
    %v2720 = vshrl.u32 %v2719, 7
    %v2721 = vsub.s32 3, %v2720
    %v2722 = vrot.slane %v1196, %v2721
    %v2723 = vlaneseq
    %v2724 = vshrl.u32 %v2723, 7
    %v2725 = vsub.s32 4, %v2724
    %v2726 = vrot.slane %v1196, %v2725
    %v2727 = vlaneseq
    %v2728 = vshrl.u32 %v2727, 7
    %v2729 = vsub.s32 5, %v2728
    %v2730 = vrot.slane %v1196, %v2729
    %v2731 = vlaneseq
    %v2732 = vshrl.u32 %v2731, 7
    %v2733 = vsub.s32 6, %v2732
    %v2734 = vrot.slane %v1196, %v2733
    %v2735 = vlaneseq
    %v2736 = vshrl.u32 %v2735, 7
    %v2737 = vsub.s32 7, %v2736
    %v2738 = vrot.slane %v1196, %v2737
    %v2739 = vlaneseq
    %v2740 = vshrl.u32 %v2739, 7
    %v2741 = vsub.s32 0, %v2740
    %v2742 = vrot.slane %v1198, %v2741
    %v2743 = vlaneseq
    %v2744 = vshrl.u32 %v2743, 7
    %v2745 = vsub.s32 1, %v2744
    %v2746 = vrot.slane %v1198, %v2745
    %v2747 = vlaneseq
    %v2748 = vshrl.u32 %v2747, 7
    %v2749 = vsub.s32 2, %v2748
    %v2750 = vrot.slane %v1198, %v2749
    %v2751 = vlaneseq
    %v2752 = vshrl.u32 %v2751, 7
    %v2753 = vsub.s32 3, %v2752
    %v2754 = vrot.slane %v1198, %v2753
    %v2755 = vlaneseq
    %v2756 = vshrl.u32 %v2755, 7
    %v2757 = vsub.s32 4, %v2756
    %v2758 = vrot.slane %v1198, %v2757
    %v2759 = vlaneseq
    %v2760 = vshrl.u32 %v2759, 7
    %v2761 = vsub.s32 5, %v2760
    %v2762 = vrot.slane %v1198, %v2761
    %v2763 = vlaneseq
    %v2764 = vshrl.u32 %v2763, 7
    %v2765 = vsub.s32 6, %v2764
    %v2766 = vrot.slane %v1198, %v2765
    %v2767 = vlaneseq
    %v2768 = vshrl.u32 %v2767, 7
    %v2769 = vsub.s32 7, %v2768
    %v2770 = vrot.slane %v1198, %v2769
    %v2771 = vlaneseq
    %v2772 = vshrl.u32 %v2771, 7
    %v2773 = vsub.s32 0, %v2772
    %v2774 = vrot.slane %v1200, %v2773
    %v2775 = vlaneseq
    %v2776 = vshrl.u32 %v2775, 7
    %v2777 = vsub.s32 1, %v2776
    %v2778 = vrot.slane %v1200, %v2777
    %v2779 = vlaneseq
    %v2780 = vshrl.u32 %v2779, 7
    %v2781 = vsub.s32 2, %v2780
    %v2782 = vrot.slane %v1200, %v2781
    %v2783 = vlaneseq
    %v2784 = vshrl.u32 %v2783, 7
    %v2785 = vsub.s32 3, %v2784
    %v2786 = vrot.slane %v1200, %v2785
    %v2787 = vlaneseq
    %v2788 = vshrl.u32 %v2787, 7
    %v2789 = vsub.s32 4, %v2788
    %v2790 = vrot.slane %v1200, %v2789
    %v2791 = vlaneseq
    %v2792 = vshrl.u32 %v2791, 7
    %v2793 = vsub.s32 5, %v2792
    %v2794 = vrot.slane %v1200, %v2793
    %v2795 = vlaneseq
    %v2796 = vshrl.u32 %v2795, 7
    %v2797 = vsub.s32 6, %v2796
    %v2798 = vrot.slane %v1200, %v2797
    %v2799 = vlaneseq
    %v2800 = vshrl.u32 %v2799, 7
    %v2801 = vsub.s32 7, %v2800
    %v2802 = vrot.slane %v1200, %v2801
    %v2803 = vlaneseq
    %v2804 = vshrl.u32 %v2803, 7
    %v2805 = vsub.s32 0, %v2804
    %v2806 = vrot.slane %v1202, %v2805
    %v2807 = vlaneseq
    %v2808 = vshrl.u32 %v2807, 7
    %v2809 = vsub.s32 1, %v2808
    %v2810 = vrot.slane %v1202, %v2809
    %v2811 = vlaneseq
    %v2812 = vshrl.u32 %v2811, 7
    %v2813 = vsub.s32 2, %v2812
    %v2814 = vrot.slane %v1202, %v2813
    %v2815 = vlaneseq
    %v2816 = vshrl.u32 %v2815, 7
    %v2817 = vsub.s32 3, %v2816
    %v2818 = vrot.slane %v1202, %v2817
    %v2819 = vlaneseq
    %v2820 = vshrl.u32 %v2819, 7
    %v2821 = vsub.s32 4, %v2820
    %v2822 = vrot.slane %v1202, %v2821
    %v2823 = vlaneseq
    %v2824 = vshrl.u32 %v2823, 7
    %v2825 = vsub.s32 5, %v2824
    %v2826 = vrot.slane %v1202, %v2825
    %v2827 = vlaneseq
    %v2828 = vshrl.u32 %v2827, 7
    %v2829 = vsub.s32 6, %v2828
    %v2830 = vrot.slane %v1202, %v2829
    %v2831 = vlaneseq
    %v2832 = vshrl.u32 %v2831, 7
    %v2833 = vsub.s32 7, %v2832
    %v2834 = vrot.slane %v1202, %v2833
    %v2835 = vlaneseq
    %v2836 = vshrl.u32 %v2835, 7
    %v2837 = vsub.s32 0, %v2836
    %v2838 = vrot.slane %v1204, %v2837
    %v2839 = vlaneseq
    %v2840 = vshrl.u32 %v2839, 7
    %v2841 = vsub.s32 1, %v2840
    %v2842 = vrot.slane %v1204, %v2841
    %v2843 = vlaneseq
    %v2844 = vshrl.u32 %v2843, 7
    %v2845 = vsub.s32 2, %v2844
    %v2846 = vrot.slane %v1204, %v2845
    %v2847 = vlaneseq
    %v2848 = vshrl.u32 %v2847, 7
    %v2849 = vsub.s32 3, %v2848
    %v2850 = vrot.slane %v1204, %v2849
    %v2851 = vlaneseq
    %v2852 = vshrl.u32 %v2851, 7
    %v2853 = vsub.s32 4, %v2852
    %v2854 = vrot.slane %v1204, %v2853
    %v2855 = vlaneseq
    %v2856 = vshrl.u32 %v2855, 7
    %v2857 = vsub.s32 5, %v2856
    %v2858 = vrot.slane %v1204, %v2857
    %v2859 = vlaneseq
    %v2860 = vshrl.u32 %v2859, 7
    %v2861 = vsub.s32 6, %v2860
    %v2862 = vrot.slane %v1204, %v2861
    %v2863 = vlaneseq
    %v2864 = vshrl.u32 %v2863, 7
    %v2865 = vsub.s32 7, %v2864
    %v2866 = vrot.slane %v1204, %v2865
    %v2867 = vlaneseq
    %v2868 = vshrl.u32 %v2867, 7
    %v2869 = vsub.s32 0, %v2868
    %v2870 = vrot.slane %v1206, %v2869
    %v2871 = vlaneseq
    %v2872 = vshrl.u32 %v2871, 7
    %v2873 = vsub.s32 1, %v2872
    %v2874 = vrot.slane %v1206, %v2873
    %v2875 = vlaneseq
    %v2876 = vshrl.u32 %v2875, 7
    %v2877 = vsub.s32 2, %v2876
    %v2878 = vrot.slane %v1206, %v2877
    %v2879 = vlaneseq
    %v2880 = vshrl.u32 %v2879, 7
    %v2881 = vsub.s32 3, %v2880
    %v2882 = vrot.slane %v1206, %v2881
    %v2883 = vlaneseq
    %v2884 = vshrl.u32 %v2883, 7
    %v2885 = vsub.s32 4, %v2884
    %v2886 = vrot.slane %v1206, %v2885
    %v2887 = vlaneseq
    %v2888 = vshrl.u32 %v2887, 7
    %v2889 = vsub.s32 5, %v2888
    %v2890 = vrot.slane %v1206, %v2889
    %v2891 = vlaneseq
    %v2892 = vshrl.u32 %v2891, 7
    %v2893 = vsub.s32 6, %v2892
    %v2894 = vrot.slane %v1206, %v2893
    %v2895 = vlaneseq
    %v2896 = vshrl.u32 %v2895, 7
    %v2897 = vsub.s32 7, %v2896
    %v2898 = vrot.slane %v1206, %v2897
    %v2899 = vlaneseq
    %v2900 = vshrl.u32 %v2899, 7
    %v2901 = vsub.s32 0, %v2900
    %v2902 = vrot.slane %v1208, %v2901
    %v2903 = vlaneseq
    %v2904 = vshrl.u32 %v2903, 7
    %v2905 = vsub.s32 1, %v2904
    %v2906 = vrot.slane %v1208, %v2905
    %v2907 = vlaneseq
    %v2908 = vshrl.u32 %v2907, 7
    %v2909 = vsub.s32 2, %v2908
    %v2910 = vrot.slane %v1208, %v2909
    %v2911 = vlaneseq
    %v2912 = vshrl.u32 %v2911, 7
    %v2913 = vsub.s32 3, %v2912
    %v2914 = vrot.slane %v1208, %v2913
    %v2915 = vlaneseq
    %v2916 = vshrl.u32 %v2915, 7
    %v2917 = vsub.s32 4, %v2916
    %v2918 = vrot.slane %v1208, %v2917
    %v2919 = vlaneseq
    %v2920 = vshrl.u32 %v2919, 7
    %v2921 = vsub.s32 5, %v2920
    %v2922 = vrot.slane %v1208, %v2921
    %v2923 = vlaneseq
    %v2924 = vshrl.u32 %v2923, 7
    %v2925 = vsub.s32 6, %v2924
    %v2926 = vrot.slane %v1208, %v2925
    %v2927 = vlaneseq
    %v2928 = vshrl.u32 %v2927, 7
    %v2929 = vsub.s32 7, %v2928
    %v2930 = vrot.slane %v1208, %v2929
    %v2931 = vlaneseq
    %v2932 = vshrl.u32 %v2931, 7
    %v2933 = vsub.s32 0, %v2932
    %v2934 = vrot.slane %v1210, %v2933
    %v2935 = vlaneseq
    %v2936 = vshrl.u32 %v2935, 7
    %v2937 = vsub.s32 1, %v2936
    %v2938 = vrot.slane %v1210, %v2937
    %v2939 = vlaneseq
    %v2940 = vshrl.u32 %v2939, 7
    %v2941 = vsub.s32 2, %v2940
    %v2942 = vrot.slane %v1210, %v2941
    %v2943 = vlaneseq
    %v2944 = vshrl.u32 %v2943, 7
    %v2945 = vsub.s32 3, %v2944
    %v2946 = vrot.slane %v1210, %v2945
    %v2947 = vlaneseq
    %v2948 = vshrl.u32 %v2947, 7
    %v2949 = vsub.s32 4, %v2948
    %v2950 = vrot.slane %v1210, %v2949
    %v2951 = vlaneseq
    %v2952 = vshrl.u32 %v2951, 7
    %v2953 = vsub.s32 5, %v2952
    %v2954 = vrot.slane %v1210, %v2953
    %v2955 = vlaneseq
    %v2956 = vshrl.u32 %v2955, 7
    %v2957 = vsub.s32 6, %v2956
    %v2958 = vrot.slane %v1210, %v2957
    %v2959 = vlaneseq
    %v2960 = vshrl.u32 %v2959, 7
    %v2961 = vsub.s32 7, %v2960
    %v2962 = vrot.slane %v1210, %v2961
    %v2963 = vlaneseq
    %v2964 = vshrl.u32 %v2963, 7
    %v2965 = vsub.s32 0, %v2964
    %v2966 = vrot.slane %v1212, %v2965
    %v2967 = vlaneseq
    %v2968 = vshrl.u32 %v2967, 7
    %v2969 = vsub.s32 1, %v2968
    %v2970 = vrot.slane %v1212, %v2969
    %v2971 = vlaneseq
    %v2972 = vshrl.u32 %v2971, 7
    %v2973 = vsub.s32 2, %v2972
    %v2974 = vrot.slane %v1212, %v2973
    %v2975 = vlaneseq
    %v2976 = vshrl.u32 %v2975, 7
    %v2977 = vsub.s32 3, %v2976
    %v2978 = vrot.slane %v1212, %v2977
    %v2979 = vlaneseq
    %v2980 = vshrl.u32 %v2979, 7
    %v2981 = vsub.s32 4, %v2980
    %v2982 = vrot.slane %v1212, %v2981
    %v2983 = vlaneseq
    %v2984 = vshrl.u32 %v2983, 7
    %v2985 = vsub.s32 5, %v2984
    %v2986 = vrot.slane %v1212, %v2985
    %v2987 = vlaneseq
    %v2988 = vshrl.u32 %v2987, 7
    %v2989 = vsub.s32 6, %v2988
    %v2990 = vrot.slane %v1212, %v2989
    %v2991 = vlaneseq
    %v2992 = vshrl.u32 %v2991, 7
    %v2993 = vsub.s32 7, %v2992
    %v2994 = vrot.slane %v1212, %v2993
    %v2995 = vlaneseq
    %v2996 = vshrl.u32 %v2995, 7
    %v2997 = vsub.s32 0, %v2996
    %v2998 = vrot.slane %v1214, %v2997
    %v2999 = vlaneseq
    %v3000 = vshrl.u32 %v2999, 7
    %v3001 = vsub.s32 1, %v3000
    %v3002 = vrot.slane %v1214, %v3001
    %v3003 = vlaneseq
    %v3004 = vshrl.u32 %v3003, 7
    %v3005 = vsub.s32 2, %v3004
    %v3006 = vrot.slane %v1214, %v3005
    %v3007 = vlaneseq
    %v3008 = vshrl.u32 %v3007, 7
    %v3009 = vsub.s32 3, %v3008
    %v3010 = vrot.slane %v1214, %v3009
    %v3011 = vlaneseq
    %v3012 = vshrl.u32 %v3011, 7
    %v3013 = vsub.s32 4, %v3012
    %v3014 = vrot.slane %v1214, %v3013
    %v3015 = vlaneseq
    %v3016 = vshrl.u32 %v3015, 7
    %v3017 = vsub.s32 5, %v3016
    %v3018 = vrot.slane %v1214, %v3017
    %v3019 = vlaneseq
    %v3020 = vshrl.u32 %v3019, 7
    %v3021 = vsub.s32 6, %v3020
    %v3022 = vrot.slane %v1214, %v3021
    %v3023 = vlaneseq
    %v3024 = vshrl.u32 %v3023, 7
    %v3025 = vsub.s32 7, %v3024
    %v3026 = vrot.slane %v1214, %v3025
    %v3027 = vlaneseq
    %v3028 = vshrl.u32 %v3027, 7
    %v3029 = vsub.s32 0, %v3028
    %v3030 = vrot.slane %v1216, %v3029
    %v3031 = vlaneseq
    %v3032 = vshrl.u32 %v3031, 7
    %v3033 = vsub.s32 1, %v3032
    %v3034 = vrot.slane %v1216, %v3033
    %v3035 = vlaneseq
    %v3036 = vshrl.u32 %v3035, 7
    %v3037 = vsub.s32 2, %v3036
    %v3038 = vrot.slane %v1216, %v3037
    %v3039 = vlaneseq
    %v3040 = vshrl.u32 %v3039, 7
    %v3041 = vsub.s32 3, %v3040
    %v3042 = vrot.slane %v1216, %v3041
    %v3043 = vlaneseq
    %v3044 = vshrl.u32 %v3043, 7
    %v3045 = vsub.s32 4, %v3044
    %v3046 = vrot.slane %v1216, %v3045
    %v3047 = vlaneseq
    %v3048 = vshrl.u32 %v3047, 7
    %v3049 = vsub.s32 5, %v3048
    %v3050 = vrot.slane %v1216, %v3049
    %v3051 = vlaneseq
    %v3052 = vshrl.u32 %v3051, 7
    %v3053 = vsub.s32 6, %v3052
    %v3054 = vrot.slane %v1216, %v3053
    %v3055 = vlaneseq
    %v3056 = vshrl.u32 %v3055, 7
    %v3057 = vsub.s32 7, %v3056
    %v3058 = vrot.slane %v1216, %v3057
    %v3059 = vlaneseq
    %v3060 = vshrl.u32 %v3059, 7
    %v3061 = vsub.s32 0, %v3060
    %v3062 = vrot.slane %v1218, %v3061
    %v3063 = vlaneseq
    %v3064 = vshrl.u32 %v3063, 7
    %v3065 = vsub.s32 1, %v3064
    %v3066 = vrot.slane %v1218, %v3065
    %v3067 = vlaneseq
    %v3068 = vshrl.u32 %v3067, 7
    %v3069 = vsub.s32 2, %v3068
    %v3070 = vrot.slane %v1218, %v3069
    %v3071 = vlaneseq
    %v3072 = vshrl.u32 %v3071, 7
    %v3073 = vsub.s32 3, %v3072
    %v3074 = vrot.slane %v1218, %v3073
    %v3075 = vlaneseq
    %v3076 = vshrl.u32 %v3075, 7
    %v3077 = vsub.s32 4, %v3076
    %v3078 = vrot.slane %v1218, %v3077
    %v3079 = vlaneseq
    %v3080 = vshrl.u32 %v3079, 7
    %v3081 = vsub.s32 5, %v3080
    %v3082 = vrot.slane %v1218, %v3081
    %v3083 = vlaneseq
    %v3084 = vshrl.u32 %v3083, 7
    %v3085 = vsub.s32 6, %v3084
    %v3086 = vrot.slane %v1218, %v3085
    %v3087 = vlaneseq
    %v3088 = vshrl.u32 %v3087, 7
    %v3089 = vsub.s32 7, %v3088
    %v3090 = vrot.slane %v1218, %v3089
    %v3091 = vlaneseq
    %v3092 = vshrl.u32 %v3091, 7
    %v3093 = vsub.s32 0, %v3092
    %v3094 = vrot.slane %v1220, %v3093
    %v3095 = vlaneseq
    %v3096 = vshrl.u32 %v3095, 7
    %v3097 = vsub.s32 1, %v3096
    %v3098 = vrot.slane %v1220, %v3097
    %v3099 = vlaneseq
    %v3100 = vshrl.u32 %v3099, 7
    %v3101 = vsub.s32 2, %v3100
    %v3102 = vrot.slane %v1220, %v3101
    %v3103 = vlaneseq
    %v3104 = vshrl.u32 %v3103, 7
    %v3105 = vsub.s32 3, %v3104
    %v3106 = vrot.slane %v1220, %v3105
    %v3107 = vlaneseq
    %v3108 = vshrl.u32 %v3107, 7
    %v3109 = vsub.s32 4, %v3108
    %v3110 = vrot.slane %v1220, %v3109
    %v3111 = vlaneseq
    %v3112 = vshrl.u32 %v3111, 7
    %v3113 = vsub.s32 5, %v3112
    %v3114 = vrot.slane %v1220, %v3113
    %v3115 = vlaneseq
    %v3116 = vshrl.u32 %v3115, 7
    %v3117 = vsub.s32 6, %v3116
    %v3118 = vrot.slane %v1220, %v3117
    %v3119 = vlaneseq
    %v3120 = vshrl.u32 %v3119, 7
    %v3121 = vsub.s32 7, %v3120
    %v3122 = vrot.slane %v1220, %v3121
    %v3123 = vlaneseq
    %v3124 = vshrl.u32 %v3123, 7
    %v3125 = vsub.s32 0, %v3124
    %v3126 = vrot.slane %v1222, %v3125
    %v3127 = vlaneseq
    %v3128 = vshrl.u32 %v3127, 7
    %v3129 = vsub.s32 1, %v3128
    %v3130 = vrot.slane %v1222, %v3129
    %v3131 = vlaneseq
    %v3132 = vshrl.u32 %v3131, 7
    %v3133 = vsub.s32 2, %v3132
    %v3134 = vrot.slane %v1222, %v3133
    %v3135 = vlaneseq
    %v3136 = vshrl.u32 %v3135, 7
    %v3137 = vsub.s32 3, %v3136
    %v3138 = vrot.slane %v1222, %v3137
    %v3139 = vlaneseq
    %v3140 = vshrl.u32 %v3139, 7
    %v3141 = vsub.s32 4, %v3140
    %v3142 = vrot.slane %v1222, %v3141
    %v3143 = vlaneseq
    %v3144 = vshrl.u32 %v3143, 7
    %v3145 = vsub.s32 5, %v3144
    %v3146 = vrot.slane %v1222, %v3145
    %v3147 = vlaneseq
    %v3148 = vshrl.u32 %v3147, 7
    %v3149 = vsub.s32 6, %v3148
    %v3150 = vrot.slane %v1222, %v3149
    %v3151 = vlaneseq
    %v3152 = vshrl.u32 %v3151, 7
    %v3153 = vsub.s32 7, %v3152
    %v3154 = vrot.slane %v1222, %v3153
    %v3155 = vlaneseq
    %v3156 = vshrl.u32 %v3155, 7
    %v3157 = vsub.s32 0, %v3156
    %v3158 = vrot.slane %v1224, %v3157
    %v3159 = vlaneseq
    %v3160 = vshrl.u32 %v3159, 7
    %v3161 = vsub.s32 1, %v3160
    %v3162 = vrot.slane %v1224, %v3161
    %v3163 = vlaneseq
    %v3164 = vshrl.u32 %v3163, 7
    %v3165 = vsub.s32 2, %v3164
    %v3166 = vrot.slane %v1224, %v3165
    %v3167 = vlaneseq
    %v3168 = vshrl.u32 %v3167, 7
    %v3169 = vsub.s32 3, %v3168
    %v3170 = vrot.slane %v1224, %v3169
    %v3171 = vlaneseq
    %v3172 = vshrl.u32 %v3171, 7
    %v3173 = vsub.s32 4, %v3172
    %v3174 = vrot.slane %v1224, %v3173
    %v3175 = vlaneseq
    %v3176 = vshrl.u32 %v3175, 7
    %v3177 = vsub.s32 5, %v3176
    %v3178 = vrot.slane %v1224, %v3177
    %v3179 = vlaneseq
    %v3180 = vshrl.u32 %v3179, 7
    %v3181 = vsub.s32 6, %v3180
    %v3182 = vrot.slane %v1224, %v3181
    %v3183 = vlaneseq
    %v3184 = vshrl.u32 %v3183, 7
    %v3185 = vsub.s32 7, %v3184
    %v3186 = vrot.slane %v1224, %v3185
    %v3187 = vlaneseq
    %v3188 = vshrl.u32 %v3187, 7
    %v3189 = vsub.s32 0, %v3188
    %v3190 = vrot.slane %v1226, %v3189
    %v3191 = vlaneseq
    %v3192 = vshrl.u32 %v3191, 7
    %v3193 = vsub.s32 1, %v3192
    %v3194 = vrot.slane %v1226, %v3193
    %v3195 = vlaneseq
    %v3196 = vshrl.u32 %v3195, 7
    %v3197 = vsub.s32 2, %v3196
    %v3198 = vrot.slane %v1226, %v3197
    %v3199 = vlaneseq
    %v3200 = vshrl.u32 %v3199, 7
    %v3201 = vsub.s32 3, %v3200
    %v3202 = vrot.slane %v1226, %v3201
    %v3203 = vlaneseq
    %v3204 = vshrl.u32 %v3203, 7
    %v3205 = vsub.s32 4, %v3204
    %v3206 = vrot.slane %v1226, %v3205
    %v3207 = vlaneseq
    %v3208 = vshrl.u32 %v3207, 7
    %v3209 = vsub.s32 5, %v3208
    %v3210 = vrot.slane %v1226, %v3209
    %v3211 = vlaneseq
    %v3212 = vshrl.u32 %v3211, 7
    %v3213 = vsub.s32 6, %v3212
    %v3214 = vrot.slane %v1226, %v3213
    %v3215 = vlaneseq
    %v3216 = vshrl.u32 %v3215, 7
    %v3217 = vsub.s32 7, %v3216
    %v3218 = vrot.slane %v1226, %v3217
    %v3219 = vlaneseq
    %v3220 = vshrl.u32 %v3219, 7
    %v3221 = vsub.s32 0, %v3220
    %v3222 = vrot.slane %v1228, %v3221
    %v3223 = vlaneseq
    %v3224 = vshrl.u32 %v3223, 7
    %v3225 = vsub.s32 1, %v3224
    %v3226 = vrot.slane %v1228, %v3225
    %v3227 = vlaneseq
    %v3228 = vshrl.u32 %v3227, 7
    %v3229 = vsub.s32 2, %v3228
    %v3230 = vrot.slane %v1228, %v3229
    %v3231 = vlaneseq
    %v3232 = vshrl.u32 %v3231, 7
    %v3233 = vsub.s32 3, %v3232
    %v3234 = vrot.slane %v1228, %v3233
    %v3235 = vlaneseq
    %v3236 = vshrl.u32 %v3235, 7
    %v3237 = vsub.s32 4, %v3236
    %v3238 = vrot.slane %v1228, %v3237
    %v3239 = vlaneseq
    %v3240 = vshrl.u32 %v3239, 7
    %v3241 = vsub.s32 5, %v3240
    %v3242 = vrot.slane %v1228, %v3241
    %v3243 = vlaneseq
    %v3244 = vshrl.u32 %v3243, 7
    %v3245 = vsub.s32 6, %v3244
    %v3246 = vrot.slane %v1228, %v3245
    %v3247 = vlaneseq
    %v3248 = vshrl.u32 %v3247, 7
    %v3249 = vsub.s32 7, %v3248
    %v3250 = vrot.slane %v1228, %v3249
    %v3251 = vlaneseq
    %v3252 = vshrl.u32 %v3251, 7
    %v3253 = vsub.s32 0, %v3252
    %v3254 = vrot.slane %v1230, %v3253
    %v3255 = vlaneseq
    %v3256 = vshrl.u32 %v3255, 7
    %v3257 = vsub.s32 1, %v3256
    %v3258 = vrot.slane %v1230, %v3257
    %v3259 = vlaneseq
    %v3260 = vshrl.u32 %v3259, 7
    %v3261 = vsub.s32 2, %v3260
    %v3262 = vrot.slane %v1230, %v3261
    %v3263 = vlaneseq
    %v3264 = vshrl.u32 %v3263, 7
    %v3265 = vsub.s32 3, %v3264
    %v3266 = vrot.slane %v1230, %v3265
    %v3267 = vlaneseq
    %v3268 = vshrl.u32 %v3267, 7
    %v3269 = vsub.s32 4, %v3268
    %v3270 = vrot.slane %v1230, %v3269
    %v3271 = vlaneseq
    %v3272 = vshrl.u32 %v3271, 7
    %v3273 = vsub.s32 5, %v3272
    %v3274 = vrot.slane %v1230, %v3273
    %v3275 = vlaneseq
    %v3276 = vshrl.u32 %v3275, 7
    %v3277 = vsub.s32 6, %v3276
    %v3278 = vrot.slane %v1230, %v3277
    %v3279 = vlaneseq
    %v3280 = vshrl.u32 %v3279, 7
    %v3281 = vsub.s32 7, %v3280
    %v3282 = vrot.slane %v1230, %v3281
    %v3283 = vlaneseq
    %v3284 = vshrl.u32 %v3283, 7
    %v3285 = vsub.s32 0, %v3284
    %v3286 = vrot.slane %v1232, %v3285
    %v3287 = vlaneseq
    %v3288 = vshrl.u32 %v3287, 7
    %v3289 = vsub.s32 1, %v3288
    %v3290 = vrot.slane %v1232, %v3289
    %v3291 = vlaneseq
    %v3292 = vshrl.u32 %v3291, 7
    %v3293 = vsub.s32 2, %v3292
    %v3294 = vrot.slane %v1232, %v3293
    %v3295 = vlaneseq
    %v3296 = vshrl.u32 %v3295, 7
    %v3297 = vsub.s32 3, %v3296
    %v3298 = vrot.slane %v1232, %v3297
    %v3299 = vlaneseq
    %v3300 = vshrl.u32 %v3299, 7
    %v3301 = vsub.s32 4, %v3300
    %v3302 = vrot.slane %v1232, %v3301
    %v3303 = vlaneseq
    %v3304 = vshrl.u32 %v3303, 7
    %v3305 = vsub.s32 5, %v3304
    %v3306 = vrot.slane %v1232, %v3305
    %v3307 = vlaneseq
    %v3308 = vshrl.u32 %v3307, 7
    %v3309 = vsub.s32 6, %v3308
    %v3310 = vrot.slane %v1232, %v3309
    %v3311 = vlaneseq
    %v3312 = vshrl.u32 %v3311, 7
    %v3313 = vsub.s32 7, %v3312
    %v3314 = vrot.slane %v1232, %v3313
    %v3315 = vlaneseq
    %v3316 = vshrl.u32 %v3315, 7
    %v3317 = vsub.s32 0, %v3316
    %v3318 = vrot.slane %v1234, %v3317
    %v3319 = vlaneseq
    %v3320 = vshrl.u32 %v3319, 7
    %v3321 = vsub.s32 1, %v3320
    %v3322 = vrot.slane %v1234, %v3321
    %v3323 = vlaneseq
    %v3324 = vshrl.u32 %v3323, 7
    %v3325 = vsub.s32 2, %v3324
    %v3326 = vrot.slane %v1234, %v3325
    %v3327 = vlaneseq
    %v3328 = vshrl.u32 %v3327, 7
    %v3329 = vsub.s32 3, %v3328
    %v3330 = vrot.slane %v1234, %v3329
    %v3331 = vlaneseq
    %v3332 = vshrl.u32 %v3331, 7
    %v3333 = vsub.s32 4, %v3332
    %v3334 = vrot.slane %v1234, %v3333
    %v3335 = vlaneseq
    %v3336 = vshrl.u32 %v3335, 7
    %v3337 = vsub.s32 5, %v3336
    %v3338 = vrot.slane %v1234, %v3337
    %v3339 = vlaneseq
    %v3340 = vshrl.u32 %v3339, 7
    %v3341 = vsub.s32 6, %v3340
    %v3342 = vrot.slane %v1234, %v3341
    %v3343 = vlaneseq
    %v3344 = vshrl.u32 %v3343, 7
    %v3345 = vsub.s32 7, %v3344
    %v3346 = vrot.slane %v1234, %v3345
    %v3347 = vcombine.low %v1302, %v1306
    %v3348 = vcombine.low %v1310, %v1314
    %v3349 = vcombine.low %v1318, %v1322
    %v3350 = vcombine.low %v1326, %v1330
    %v3352 = vunpack.c.l.s4 1966171168
    %v3353 = vunpack.c.0.s8 %v3352
    %v3354 = vlaneseq
    %v3355 = vshrl.u32 %v3354, 7
    %v3356 = vsub.s32 %v3353, %v3355
    %v3357 = vrot.slane %v3347, %v3356
    %v3359 = vunpack.c.l.s4 1966171168
    %v3360 = vunpack.c.0.s8 %v3359
    %v3361 = vlaneseq
    %v3362 = vshrl.u32 %v3361, 7
    %v3363 = vsub.s32 %v3360, %v3362
    %v3364 = vrot.slane %v3348, %v3363
    %v3366 = vunpack.c.l.s4 1966171168
    %v3367 = vunpack.c.0.s8 %v3366
    %v3368 = vlaneseq
    %v3369 = vshrl.u32 %v3368, 7
    %v3370 = vsub.s32 %v3367, %v3369
    %v3371 = vrot.slane %v3349, %v3370
    %v3373 = vunpack.c.l.s4 1966171168
    %v3374 = vunpack.c.0.s8 %v3373
    %v3375 = vlaneseq
    %v3376 = vshrl.u32 %v3375, 7
    %v3377 = vsub.s32 %v3374, %v3376
    %v3378 = vrot.slane %v3350, %v3377
    %v3379 = vcombine.low %v3357, %v3364
    %v3380 = vcombine.low %v3371, %v3378
    %v3382 = vunpack.c.l.s4 1966171168
    %v3383 = vunpack.c.0.s8 %v3382
    %v3384 = vlaneseq
    %v3385 = vshrl.u32 %v3384, 7
    %v3386 = vsub.s32 %v3383, %v3385
    %v3387 = vrot.slane %v3379, %v3386
    %v3389 = vunpack.c.l.s4 1966171168
    %v3390 = vunpack.c.0.s8 %v3389
    %v3391 = vlaneseq
    %v3392 = vshrl.u32 %v3391, 7
    %v3393 = vsub.s32 %v3390, %v3392
    %v3394 = vrot.slane %v3380, %v3393
    %v3395 = vcombine.low %v3387, %v3394
    %v3396 = vcombine.low %v1334, %v1338
    %v3397 = vcombine.low %v1342, %v1346
    %v3398 = vcombine.low %v1350, %v1354
    %v3399 = vcombine.low %v1358, %v1362
    %v3401 = vunpack.c.l.s4 1966171168
    %v3402 = vunpack.c.0.s8 %v3401
    %v3403 = vlaneseq
    %v3404 = vshrl.u32 %v3403, 7
    %v3405 = vsub.s32 %v3402, %v3404
    %v3406 = vrot.slane %v3396, %v3405
    %v3408 = vunpack.c.l.s4 1966171168
    %v3409 = vunpack.c.0.s8 %v3408
    %v3410 = vlaneseq
    %v3411 = vshrl.u32 %v3410, 7
    %v3412 = vsub.s32 %v3409, %v3411
    %v3413 = vrot.slane %v3397, %v3412
    %v3415 = vunpack.c.l.s4 1966171168
    %v3416 = vunpack.c.0.s8 %v3415
    %v3417 = vlaneseq
    %v3418 = vshrl.u32 %v3417, 7
    %v3419 = vsub.s32 %v3416, %v3418
    %v3420 = vrot.slane %v3398, %v3419
    %v3422 = vunpack.c.l.s4 1966171168
    %v3423 = vunpack.c.0.s8 %v3422
    %v3424 = vlaneseq
    %v3425 = vshrl.u32 %v3424, 7
    %v3426 = vsub.s32 %v3423, %v3425
    %v3427 = vrot.slane %v3399, %v3426
    %v3428 = vcombine.low %v3406, %v3413
    %v3429 = vcombine.low %v3420, %v3427
    %v3431 = vunpack.c.l.s4 1966171168
    %v3432 = vunpack.c.0.s8 %v3431
    %v3433 = vlaneseq
    %v3434 = vshrl.u32 %v3433, 7
    %v3435 = vsub.s32 %v3432, %v3434
    %v3436 = vrot.slane %v3428, %v3435
    %v3438 = vunpack.c.l.s4 1966171168
    %v3439 = vunpack.c.0.s8 %v3438
    %v3440 = vlaneseq
    %v3441 = vshrl.u32 %v3440, 7
    %v3442 = vsub.s32 %v3439, %v3441
    %v3443 = vrot.slane %v3429, %v3442
    %v3444 = vcombine.low %v3436, %v3443
    %v3445 = vcombine.low %v1366, %v1370
    %v3446 = vcombine.low %v1374, %v1378
    %v3447 = vcombine.low %v1382, %v1386
    %v3448 = vcombine.low %v1390, %v1394
    %v3450 = vunpack.c.l.s4 1966171168
    %v3451 = vunpack.c.0.s8 %v3450
    %v3452 = vlaneseq
    %v3453 = vshrl.u32 %v3452, 7
    %v3454 = vsub.s32 %v3451, %v3453
    %v3455 = vrot.slane %v3445, %v3454
    %v3457 = vunpack.c.l.s4 1966171168
    %v3458 = vunpack.c.0.s8 %v3457
    %v3459 = vlaneseq
    %v3460 = vshrl.u32 %v3459, 7
    %v3461 = vsub.s32 %v3458, %v3460
    %v3462 = vrot.slane %v3446, %v3461
    %v3464 = vunpack.c.l.s4 1966171168
    %v3465 = vunpack.c.0.s8 %v3464
    %v3466 = vlaneseq
    %v3467 = vshrl.u32 %v3466, 7
    %v3468 = vsub.s32 %v3465, %v3467
    %v3469 = vrot.slane %v3447, %v3468
    %v3471 = vunpack.c.l.s4 1966171168
    %v3472 = vunpack.c.0.s8 %v3471
    %v3473 = vlaneseq
    %v3474 = vshrl.u32 %v3473, 7
    %v3475 = vsub.s32 %v3472, %v3474
    %v3476 = vrot.slane %v3448, %v3475
    %v3477 = vcombine.low %v3455, %v3462
    %v3478 = vcombine.low %v3469, %v3476
    %v3480 = vunpack.c.l.s4 1966171168
    %v3481 = vunpack.c.0.s8 %v3480
    %v3482 = vlaneseq
    %v3483 = vshrl.u32 %v3482, 7
    %v3484 = vsub.s32 %v3481, %v3483
    %v3485 = vrot.slane %v3477, %v3484
    %v3487 = vunpack.c.l.s4 1966171168
    %v3488 = vunpack.c.0.s8 %v3487
    %v3489 = vlaneseq
    %v3490 = vshrl.u32 %v3489, 7
    %v3491 = vsub.s32 %v3488, %v3490
    %v3492 = vrot.slane %v3478, %v3491
    %v3493 = vcombine.low %v3485, %v3492
    %v3494 = vcombine.low %v1398, %v1402
    %v3495 = vcombine.low %v1406, %v1410
    %v3496 = vcombine.low %v1414, %v1418
    %v3497 = vcombine.low %v1422, %v1426
    %v3499 = vunpack.c.l.s4 1966171168
    %v3500 = vunpack.c.0.s8 %v3499
    %v3501 = vlaneseq
    %v3502 = vshrl.u32 %v3501, 7
    %v3503 = vsub.s32 %v3500, %v3502
    %v3504 = vrot.slane %v3494, %v3503
    %v3506 = vunpack.c.l.s4 1966171168
    %v3507 = vunpack.c.0.s8 %v3506
    %v3508 = vlaneseq
    %v3509 = vshrl.u32 %v3508, 7
    %v3510 = vsub.s32 %v3507, %v3509
    %v3511 = vrot.slane %v3495, %v3510
    %v3513 = vunpack.c.l.s4 1966171168
    %v3514 = vunpack.c.0.s8 %v3513
    %v3515 = vlaneseq
    %v3516 = vshrl.u32 %v3515, 7
    %v3517 = vsub.s32 %v3514, %v3516
    %v3518 = vrot.slane %v3496, %v3517
    %v3520 = vunpack.c.l.s4 1966171168
    %v3521 = vunpack.c.0.s8 %v3520
    %v3522 = vlaneseq
    %v3523 = vshrl.u32 %v3522, 7
    %v3524 = vsub.s32 %v3521, %v3523
    %v3525 = vrot.slane %v3497, %v3524
    %v3526 = vcombine.low %v3504, %v3511
    %v3527 = vcombine.low %v3518, %v3525
    %v3529 = vunpack.c.l.s4 1966171168
    %v3530 = vunpack.c.0.s8 %v3529
    %v3531 = vlaneseq
    %v3532 = vshrl.u32 %v3531, 7
    %v3533 = vsub.s32 %v3530, %v3532
    %v3534 = vrot.slane %v3526, %v3533
    %v3536 = vunpack.c.l.s4 1966171168
    %v3537 = vunpack.c.0.s8 %v3536
    %v3538 = vlaneseq
    %v3539 = vshrl.u32 %v3538, 7
    %v3540 = vsub.s32 %v3537, %v3539
    %v3541 = vrot.slane %v3527, %v3540
    %v3542 = vcombine.low %v3534, %v3541
    %v3543 = vcombine.low %v1430, %v1434
    %v3544 = vcombine.low %v1438, %v1442
    %v3545 = vcombine.low %v1446, %v1450
    %v3546 = vcombine.low %v1454, %v1458
    %v3548 = vunpack.c.l.s4 1966171168
    %v3549 = vunpack.c.0.s8 %v3548
    %v3550 = vlaneseq
    %v3551 = vshrl.u32 %v3550, 7
    %v3552 = vsub.s32 %v3549, %v3551
    %v3553 = vrot.slane %v3543, %v3552
    %v3555 = vunpack.c.l.s4 1966171168
    %v3556 = vunpack.c.0.s8 %v3555
    %v3557 = vlaneseq
    %v3558 = vshrl.u32 %v3557, 7
    %v3559 = vsub.s32 %v3556, %v3558
    %v3560 = vrot.slane %v3544, %v3559
    %v3562 = vunpack.c.l.s4 1966171168
    %v3563 = vunpack.c.0.s8 %v3562
    %v3564 = vlaneseq
    %v3565 = vshrl.u32 %v3564, 7
    %v3566 = vsub.s32 %v3563, %v3565
    %v3567 = vrot.slane %v3545, %v3566
    %v3569 = vunpack.c.l.s4 1966171168
    %v3570 = vunpack.c.0.s8 %v3569
    %v3571 = vlaneseq
    %v3572 = vshrl.u32 %v3571, 7
    %v3573 = vsub.s32 %v3570, %v3572
    %v3574 = vrot.slane %v3546, %v3573
    %v3575 = vcombine.low %v3553, %v3560
    %v3576 = vcombine.low %v3567, %v3574
    %v3578 = vunpack.c.l.s4 1966171168
    %v3579 = vunpack.c.0.s8 %v3578
    %v3580 = vlaneseq
    %v3581 = vshrl.u32 %v3580, 7
    %v3582 = vsub.s32 %v3579, %v3581
    %v3583 = vrot.slane %v3575, %v3582
    %v3585 = vunpack.c.l.s4 1966171168
    %v3586 = vunpack.c.0.s8 %v3585
    %v3587 = vlaneseq
    %v3588 = vshrl.u32 %v3587, 7
    %v3589 = vsub.s32 %v3586, %v3588
    %v3590 = vrot.slane %v3576, %v3589
    %v3591 = vcombine.low %v3583, %v3590
    %v3592 = vcombine.low %v1462, %v1466
    %v3593 = vcombine.low %v1470, %v1474
    %v3594 = vcombine.low %v1478, %v1482
    %v3595 = vcombine.low %v1486, %v1490
    %v3597 = vunpack.c.l.s4 1966171168
    %v3598 = vunpack.c.0.s8 %v3597
    %v3599 = vlaneseq
    %v3600 = vshrl.u32 %v3599, 7
    %v3601 = vsub.s32 %v3598, %v3600
    %v3602 = vrot.slane %v3592, %v3601
    %v3604 = vunpack.c.l.s4 1966171168
    %v3605 = vunpack.c.0.s8 %v3604
    %v3606 = vlaneseq
    %v3607 = vshrl.u32 %v3606, 7
    %v3608 = vsub.s32 %v3605, %v3607
    %v3609 = vrot.slane %v3593, %v3608
    %v3611 = vunpack.c.l.s4 1966171168
    %v3612 = vunpack.c.0.s8 %v3611
    %v3613 = vlaneseq
    %v3614 = vshrl.u32 %v3613, 7
    %v3615 = vsub.s32 %v3612, %v3614
    %v3616 = vrot.slane %v3594, %v3615
    %v3618 = vunpack.c.l.s4 1966171168
    %v3619 = vunpack.c.0.s8 %v3618
    %v3620 = vlaneseq
    %v3621 = vshrl.u32 %v3620, 7
    %v3622 = vsub.s32 %v3619, %v3621
    %v3623 = vrot.slane %v3595, %v3622
    %v3624 = vcombine.low %v3602, %v3609
    %v3625 = vcombine.low %v3616, %v3623
    %v3627 = vunpack.c.l.s4 1966171168
    %v3628 = vunpack.c.0.s8 %v3627
    %v3629 = vlaneseq
    %v3630 = vshrl.u32 %v3629, 7
    %v3631 = vsub.s32 %v3628, %v3630
    %v3632 = vrot.slane %v3624, %v3631
    %v3634 = vunpack.c.l.s4 1966171168
    %v3635 = vunpack.c.0.s8 %v3634
    %v3636 = vlaneseq
    %v3637 = vshrl.u32 %v3636, 7
    %v3638 = vsub.s32 %v3635, %v3637
    %v3639 = vrot.slane %v3625, %v3638
    %v3640 = vcombine.low %v3632, %v3639
    %v3641 = vcombine.low %v1494, %v1498
    %v3642 = vcombine.low %v1502, %v1506
    %v3643 = vcombine.low %v1510, %v1514
    %v3644 = vcombine.low %v1518, %v1522
    %v3646 = vunpack.c.l.s4 1966171168
    %v3647 = vunpack.c.0.s8 %v3646
    %v3648 = vlaneseq
    %v3649 = vshrl.u32 %v3648, 7
    %v3650 = vsub.s32 %v3647, %v3649
    %v3651 = vrot.slane %v3641, %v3650
    %v3653 = vunpack.c.l.s4 1966171168
    %v3654 = vunpack.c.0.s8 %v3653
    %v3655 = vlaneseq
    %v3656 = vshrl.u32 %v3655, 7
    %v3657 = vsub.s32 %v3654, %v3656
    %v3658 = vrot.slane %v3642, %v3657
    %v3660 = vunpack.c.l.s4 1966171168
    %v3661 = vunpack.c.0.s8 %v3660
    %v3662 = vlaneseq
    %v3663 = vshrl.u32 %v3662, 7
    %v3664 = vsub.s32 %v3661, %v3663
    %v3665 = vrot.slane %v3643, %v3664
    %v3667 = vunpack.c.l.s4 1966171168
    %v3668 = vunpack.c.0.s8 %v3667
    %v3669 = vlaneseq
    %v3670 = vshrl.u32 %v3669, 7
    %v3671 = vsub.s32 %v3668, %v3670
    %v3672 = vrot.slane %v3644, %v3671
    %v3673 = vcombine.low %v3651, %v3658
    %v3674 = vcombine.low %v3665, %v3672
    %v3676 = vunpack.c.l.s4 1966171168
    %v3677 = vunpack.c.0.s8 %v3676
    %v3678 = vlaneseq
    %v3679 = vshrl.u32 %v3678, 7
    %v3680 = vsub.s32 %v3677, %v3679
    %v3681 = vrot.slane %v3673, %v3680
    %v3683 = vunpack.c.l.s4 1966171168
    %v3684 = vunpack.c.0.s8 %v3683
    %v3685 = vlaneseq
    %v3686 = vshrl.u32 %v3685, 7
    %v3687 = vsub.s32 %v3684, %v3686
    %v3688 = vrot.slane %v3674, %v3687
    %v3689 = vcombine.low %v3681, %v3688
    %v3690 = vcombine.low %v1526, %v1530
    %v3691 = vcombine.low %v1534, %v1538
    %v3692 = vcombine.low %v1542, %v1546
    %v3693 = vcombine.low %v1550, %v1554
    %v3695 = vunpack.c.l.s4 1966171168
    %v3696 = vunpack.c.0.s8 %v3695
    %v3697 = vlaneseq
    %v3698 = vshrl.u32 %v3697, 7
    %v3699 = vsub.s32 %v3696, %v3698
    %v3700 = vrot.slane %v3690, %v3699
    %v3702 = vunpack.c.l.s4 1966171168
    %v3703 = vunpack.c.0.s8 %v3702
    %v3704 = vlaneseq
    %v3705 = vshrl.u32 %v3704, 7
    %v3706 = vsub.s32 %v3703, %v3705
    %v3707 = vrot.slane %v3691, %v3706
    %v3709 = vunpack.c.l.s4 1966171168
    %v3710 = vunpack.c.0.s8 %v3709
    %v3711 = vlaneseq
    %v3712 = vshrl.u32 %v3711, 7
    %v3713 = vsub.s32 %v3710, %v3712
    %v3714 = vrot.slane %v3692, %v3713
    %v3716 = vunpack.c.l.s4 1966171168
    %v3717 = vunpack.c.0.s8 %v3716
    %v3718 = vlaneseq
    %v3719 = vshrl.u32 %v3718, 7
    %v3720 = vsub.s32 %v3717, %v3719
    %v3721 = vrot.slane %v3693, %v3720
    %v3722 = vcombine.low %v3700, %v3707
    %v3723 = vcombine.low %v3714, %v3721
    %v3725 = vunpack.c.l.s4 1966171168
    %v3726 = vunpack.c.0.s8 %v3725
    %v3727 = vlaneseq
    %v3728 = vshrl.u32 %v3727, 7
    %v3729 = vsub.s32 %v3726, %v3728
    %v3730 = vrot.slane %v3722, %v3729
    %v3732 = vunpack.c.l.s4 1966171168
    %v3733 = vunpack.c.0.s8 %v3732
    %v3734 = vlaneseq
    %v3735 = vshrl.u32 %v3734, 7
    %v3736 = vsub.s32 %v3733, %v3735
    %v3737 = vrot.slane %v3723, %v3736
    %v3738 = vcombine.low %v3730, %v3737
    %v3739 = vcombine.low %v1558, %v1562
    %v3740 = vcombine.low %v1566, %v1570
    %v3741 = vcombine.low %v1574, %v1578
    %v3742 = vcombine.low %v1582, %v1586
    %v3744 = vunpack.c.l.s4 1966171168
    %v3745 = vunpack.c.0.s8 %v3744
    %v3746 = vlaneseq
    %v3747 = vshrl.u32 %v3746, 7
    %v3748 = vsub.s32 %v3745, %v3747
    %v3749 = vrot.slane %v3739, %v3748
    %v3751 = vunpack.c.l.s4 1966171168
    %v3752 = vunpack.c.0.s8 %v3751
    %v3753 = vlaneseq
    %v3754 = vshrl.u32 %v3753, 7
    %v3755 = vsub.s32 %v3752, %v3754
    %v3756 = vrot.slane %v3740, %v3755
    %v3758 = vunpack.c.l.s4 1966171168
    %v3759 = vunpack.c.0.s8 %v3758
    %v3760 = vlaneseq
    %v3761 = vshrl.u32 %v3760, 7
    %v3762 = vsub.s32 %v3759, %v3761
    %v3763 = vrot.slane %v3741, %v3762
    %v3765 = vunpack.c.l.s4 1966171168
    %v3766 = vunpack.c.0.s8 %v3765
    %v3767 = vlaneseq
    %v3768 = vshrl.u32 %v3767, 7
    %v3769 = vsub.s32 %v3766, %v3768
    %v3770 = vrot.slane %v3742, %v3769
    %v3771 = vcombine.low %v3749, %v3756
    %v3772 = vcombine.low %v3763, %v3770
    %v3774 = vunpack.c.l.s4 1966171168
    %v3775 = vunpack.c.0.s8 %v3774
    %v3776 = vlaneseq
    %v3777 = vshrl.u32 %v3776, 7
    %v3778 = vsub.s32 %v3775, %v3777
    %v3779 = vrot.slane %v3771, %v3778
    %v3781 = vunpack.c.l.s4 1966171168
    %v3782 = vunpack.c.0.s8 %v3781
    %v3783 = vlaneseq
    %v3784 = vshrl.u32 %v3783, 7
    %v3785 = vsub.s32 %v3782, %v3784
    %v3786 = vrot.slane %v3772, %v3785
    %v3787 = vcombine.low %v3779, %v3786
    %v3788 = vcombine.low %v1590, %v1594
    %v3789 = vcombine.low %v1598, %v1602
    %v3790 = vcombine.low %v1606, %v1610
    %v3791 = vcombine.low %v1614, %v1618
    %v3793 = vunpack.c.l.s4 1966171168
    %v3794 = vunpack.c.0.s8 %v3793
    %v3795 = vlaneseq
    %v3796 = vshrl.u32 %v3795, 7
    %v3797 = vsub.s32 %v3794, %v3796
    %v3798 = vrot.slane %v3788, %v3797
    %v3800 = vunpack.c.l.s4 1966171168
    %v3801 = vunpack.c.0.s8 %v3800
    %v3802 = vlaneseq
    %v3803 = vshrl.u32 %v3802, 7
    %v3804 = vsub.s32 %v3801, %v3803
    %v3805 = vrot.slane %v3789, %v3804
    %v3807 = vunpack.c.l.s4 1966171168
    %v3808 = vunpack.c.0.s8 %v3807
    %v3809 = vlaneseq
    %v3810 = vshrl.u32 %v3809, 7
    %v3811 = vsub.s32 %v3808, %v3810
    %v3812 = vrot.slane %v3790, %v3811
    %v3814 = vunpack.c.l.s4 1966171168
    %v3815 = vunpack.c.0.s8 %v3814
    %v3816 = vlaneseq
    %v3817 = vshrl.u32 %v3816, 7
    %v3818 = vsub.s32 %v3815, %v3817
    %v3819 = vrot.slane %v3791, %v3818
    %v3820 = vcombine.low %v3798, %v3805
    %v3821 = vcombine.low %v3812, %v3819
    %v3823 = vunpack.c.l.s4 1966171168
    %v3824 = vunpack.c.0.s8 %v3823
    %v3825 = vlaneseq
    %v3826 = vshrl.u32 %v3825, 7
    %v3827 = vsub.s32 %v3824, %v3826
    %v3828 = vrot.slane %v3820, %v3827
    %v3830 = vunpack.c.l.s4 1966171168
    %v3831 = vunpack.c.0.s8 %v3830
    %v3832 = vlaneseq
    %v3833 = vshrl.u32 %v3832, 7
    %v3834 = vsub.s32 %v3831, %v3833
    %v3835 = vrot.slane %v3821, %v3834
    %v3836 = vcombine.low %v3828, %v3835
    %v3837 = vcombine.low %v1622, %v1626
    %v3838 = vcombine.low %v1630, %v1634
    %v3839 = vcombine.low %v1638, %v1642
    %v3840 = vcombine.low %v1646, %v1650
    %v3842 = vunpack.c.l.s4 1966171168
    %v3843 = vunpack.c.0.s8 %v3842
    %v3844 = vlaneseq
    %v3845 = vshrl.u32 %v3844, 7
    %v3846 = vsub.s32 %v3843, %v3845
    %v3847 = vrot.slane %v3837, %v3846
    %v3849 = vunpack.c.l.s4 1966171168
    %v3850 = vunpack.c.0.s8 %v3849
    %v3851 = vlaneseq
    %v3852 = vshrl.u32 %v3851, 7
    %v3853 = vsub.s32 %v3850, %v3852
    %v3854 = vrot.slane %v3838, %v3853
    %v3856 = vunpack.c.l.s4 1966171168
    %v3857 = vunpack.c.0.s8 %v3856
    %v3858 = vlaneseq
    %v3859 = vshrl.u32 %v3858, 7
    %v3860 = vsub.s32 %v3857, %v3859
    %v3861 = vrot.slane %v3839, %v3860
    %v3863 = vunpack.c.l.s4 1966171168
    %v3864 = vunpack.c.0.s8 %v3863
    %v3865 = vlaneseq
    %v3866 = vshrl.u32 %v3865, 7
    %v3867 = vsub.s32 %v3864, %v3866
    %v3868 = vrot.slane %v3840, %v3867
    %v3869 = vcombine.low %v3847, %v3854
    %v3870 = vcombine.low %v3861, %v3868
    %v3872 = vunpack.c.l.s4 1966171168
    %v3873 = vunpack.c.0.s8 %v3872
    %v3874 = vlaneseq
    %v3875 = vshrl.u32 %v3874, 7
    %v3876 = vsub.s32 %v3873, %v3875
    %v3877 = vrot.slane %v3869, %v3876
    %v3879 = vunpack.c.l.s4 1966171168
    %v3880 = vunpack.c.0.s8 %v3879
    %v3881 = vlaneseq
    %v3882 = vshrl.u32 %v3881, 7
    %v3883 = vsub.s32 %v3880, %v3882
    %v3884 = vrot.slane %v3870, %v3883
    %v3885 = vcombine.low %v3877, %v3884
    %v3886 = vcombine.low %v1654, %v1658
    %v3887 = vcombine.low %v1662, %v1666
    %v3888 = vcombine.low %v1670, %v1674
    %v3889 = vcombine.low %v1678, %v1682
    %v3891 = vunpack.c.l.s4 1966171168
    %v3892 = vunpack.c.0.s8 %v3891
    %v3893 = vlaneseq
    %v3894 = vshrl.u32 %v3893, 7
    %v3895 = vsub.s32 %v3892, %v3894
    %v3896 = vrot.slane %v3886, %v3895
    %v3898 = vunpack.c.l.s4 1966171168
    %v3899 = vunpack.c.0.s8 %v3898
    %v3900 = vlaneseq
    %v3901 = vshrl.u32 %v3900, 7
    %v3902 = vsub.s32 %v3899, %v3901
    %v3903 = vrot.slane %v3887, %v3902
    %v3905 = vunpack.c.l.s4 1966171168
    %v3906 = vunpack.c.0.s8 %v3905
    %v3907 = vlaneseq
    %v3908 = vshrl.u32 %v3907, 7
    %v3909 = vsub.s32 %v3906, %v3908
    %v3910 = vrot.slane %v3888, %v3909
    %v3912 = vunpack.c.l.s4 1966171168
    %v3913 = vunpack.c.0.s8 %v3912
    %v3914 = vlaneseq
    %v3915 = vshrl.u32 %v3914, 7
    %v3916 = vsub.s32 %v3913, %v3915
    %v3917 = vrot.slane %v3889, %v3916
    %v3918 = vcombine.low %v3896, %v3903
    %v3919 = vcombine.low %v3910, %v3917
    %v3921 = vunpack.c.l.s4 1966171168
    %v3922 = vunpack.c.0.s8 %v3921
    %v3923 = vlaneseq
    %v3924 = vshrl.u32 %v3923, 7
    %v3925 = vsub.s32 %v3922, %v3924
    %v3926 = vrot.slane %v3918, %v3925
    %v3928 = vunpack.c.l.s4 1966171168
    %v3929 = vunpack.c.0.s8 %v3928
    %v3930 = vlaneseq
    %v3931 = vshrl.u32 %v3930, 7
    %v3932 = vsub.s32 %v3929, %v3931
    %v3933 = vrot.slane %v3919, %v3932
    %v3934 = vcombine.low %v3926, %v3933
    %v3935 = vcombine.low %v1686, %v1690
    %v3936 = vcombine.low %v1694, %v1698
    %v3937 = vcombine.low %v1702, %v1706
    %v3938 = vcombine.low %v1710, %v1714
    %v3940 = vunpack.c.l.s4 1966171168
    %v3941 = vunpack.c.0.s8 %v3940
    %v3942 = vlaneseq
    %v3943 = vshrl.u32 %v3942, 7
    %v3944 = vsub.s32 %v3941, %v3943
    %v3945 = vrot.slane %v3935, %v3944
    %v3947 = vunpack.c.l.s4 1966171168
    %v3948 = vunpack.c.0.s8 %v3947
    %v3949 = vlaneseq
    %v3950 = vshrl.u32 %v3949, 7
    %v3951 = vsub.s32 %v3948, %v3950
    %v3952 = vrot.slane %v3936, %v3951
    %v3954 = vunpack.c.l.s4 1966171168
    %v3955 = vunpack.c.0.s8 %v3954
    %v3956 = vlaneseq
    %v3957 = vshrl.u32 %v3956, 7
    %v3958 = vsub.s32 %v3955, %v3957
    %v3959 = vrot.slane %v3937, %v3958
    %v3961 = vunpack.c.l.s4 1966171168
    %v3962 = vunpack.c.0.s8 %v3961
    %v3963 = vlaneseq
    %v3964 = vshrl.u32 %v3963, 7
    %v3965 = vsub.s32 %v3962, %v3964
    %v3966 = vrot.slane %v3938, %v3965
    %v3967 = vcombine.low %v3945, %v3952
    %v3968 = vcombine.low %v3959, %v3966
    %v3970 = vunpack.c.l.s4 1966171168
    %v3971 = vunpack.c.0.s8 %v3970
    %v3972 = vlaneseq
    %v3973 = vshrl.u32 %v3972, 7
    %v3974 = vsub.s32 %v3971, %v3973
    %v3975 = vrot.slane %v3967, %v3974
    %v3977 = vunpack.c.l.s4 1966171168
    %v3978 = vunpack.c.0.s8 %v3977
    %v3979 = vlaneseq
    %v3980 = vshrl.u32 %v3979, 7
    %v3981 = vsub.s32 %v3978, %v3980
    %v3982 = vrot.slane %v3968, %v3981
    %v3983 = vcombine.low %v3975, %v3982
    %v3984 = vcombine.low %v1718, %v1722
    %v3985 = vcombine.low %v1726, %v1730
    %v3986 = vcombine.low %v1734, %v1738
    %v3987 = vcombine.low %v1742, %v1746
    %v3989 = vunpack.c.l.s4 1966171168
    %v3990 = vunpack.c.0.s8 %v3989
    %v3991 = vlaneseq
    %v3992 = vshrl.u32 %v3991, 7
    %v3993 = vsub.s32 %v3990, %v3992
    %v3994 = vrot.slane %v3984, %v3993
    %v3996 = vunpack.c.l.s4 1966171168
    %v3997 = vunpack.c.0.s8 %v3996
    %v3998 = vlaneseq
    %v3999 = vshrl.u32 %v3998, 7
    %v4000 = vsub.s32 %v3997, %v3999
    %v4001 = vrot.slane %v3985, %v4000
    %v4003 = vunpack.c.l.s4 1966171168
    %v4004 = vunpack.c.0.s8 %v4003
    %v4005 = vlaneseq
    %v4006 = vshrl.u32 %v4005, 7
    %v4007 = vsub.s32 %v4004, %v4006
    %v4008 = vrot.slane %v3986, %v4007
    %v4010 = vunpack.c.l.s4 1966171168
    %v4011 = vunpack.c.0.s8 %v4010
    %v4012 = vlaneseq
    %v4013 = vshrl.u32 %v4012, 7
    %v4014 = vsub.s32 %v4011, %v4013
    %v4015 = vrot.slane %v3987, %v4014
    %v4016 = vcombine.low %v3994, %v4001
    %v4017 = vcombine.low %v4008, %v4015
    %v4019 = vunpack.c.l.s4 1966171168
    %v4020 = vunpack.c.0.s8 %v4019
    %v4021 = vlaneseq
    %v4022 = vshrl.u32 %v4021, 7
    %v4023 = vsub.s32 %v4020, %v4022
    %v4024 = vrot.slane %v4016, %v4023
    %v4026 = vunpack.c.l.s4 1966171168
    %v4027 = vunpack.c.0.s8 %v4026
    %v4028 = vlaneseq
    %v4029 = vshrl.u32 %v4028, 7
    %v4030 = vsub.s32 %v4027, %v4029
    %v4031 = vrot.slane %v4017, %v4030
    %v4032 = vcombine.low %v4024, %v4031
    %v4033 = vcombine.low %v1750, %v1754
    %v4034 = vcombine.low %v1758, %v1762
    %v4035 = vcombine.low %v1766, %v1770
    %v4036 = vcombine.low %v1774, %v1778
    %v4038 = vunpack.c.l.s4 1966171168
    %v4039 = vunpack.c.0.s8 %v4038
    %v4040 = vlaneseq
    %v4041 = vshrl.u32 %v4040, 7
    %v4042 = vsub.s32 %v4039, %v4041
    %v4043 = vrot.slane %v4033, %v4042
    %v4045 = vunpack.c.l.s4 1966171168
    %v4046 = vunpack.c.0.s8 %v4045
    %v4047 = vlaneseq
    %v4048 = vshrl.u32 %v4047, 7
    %v4049 = vsub.s32 %v4046, %v4048
    %v4050 = vrot.slane %v4034, %v4049
    %v4052 = vunpack.c.l.s4 1966171168
    %v4053 = vunpack.c.0.s8 %v4052
    %v4054 = vlaneseq
    %v4055 = vshrl.u32 %v4054, 7
    %v4056 = vsub.s32 %v4053, %v4055
    %v4057 = vrot.slane %v4035, %v4056
    %v4059 = vunpack.c.l.s4 1966171168
    %v4060 = vunpack.c.0.s8 %v4059
    %v4061 = vlaneseq
    %v4062 = vshrl.u32 %v4061, 7
    %v4063 = vsub.s32 %v4060, %v4062
    %v4064 = vrot.slane %v4036, %v4063
    %v4065 = vcombine.low %v4043, %v4050
    %v4066 = vcombine.low %v4057, %v4064
    %v4068 = vunpack.c.l.s4 1966171168
    %v4069 = vunpack.c.0.s8 %v4068
    %v4070 = vlaneseq
    %v4071 = vshrl.u32 %v4070, 7
    %v4072 = vsub.s32 %v4069, %v4071
    %v4073 = vrot.slane %v4065, %v4072
    %v4075 = vunpack.c.l.s4 1966171168
    %v4076 = vunpack.c.0.s8 %v4075
    %v4077 = vlaneseq
    %v4078 = vshrl.u32 %v4077, 7
    %v4079 = vsub.s32 %v4076, %v4078
    %v4080 = vrot.slane %v4066, %v4079
    %v4081 = vcombine.low %v4073, %v4080
    %v4082 = vcombine.low %v1782, %v1786
    %v4083 = vcombine.low %v1790, %v1794
    %v4084 = vcombine.low %v1798, %v1802
    %v4085 = vcombine.low %v1806, %v1810
    %v4087 = vunpack.c.l.s4 1966171168
    %v4088 = vunpack.c.0.s8 %v4087
    %v4089 = vlaneseq
    %v4090 = vshrl.u32 %v4089, 7
    %v4091 = vsub.s32 %v4088, %v4090
    %v4092 = vrot.slane %v4082, %v4091
    %v4094 = vunpack.c.l.s4 1966171168
    %v4095 = vunpack.c.0.s8 %v4094
    %v4096 = vlaneseq
    %v4097 = vshrl.u32 %v4096, 7
    %v4098 = vsub.s32 %v4095, %v4097
    %v4099 = vrot.slane %v4083, %v4098
    %v4101 = vunpack.c.l.s4 1966171168
    %v4102 = vunpack.c.0.s8 %v4101
    %v4103 = vlaneseq
    %v4104 = vshrl.u32 %v4103, 7
    %v4105 = vsub.s32 %v4102, %v4104
    %v4106 = vrot.slane %v4084, %v4105
    %v4108 = vunpack.c.l.s4 1966171168
    %v4109 = vunpack.c.0.s8 %v4108
    %v4110 = vlaneseq
    %v4111 = vshrl.u32 %v4110, 7
    %v4112 = vsub.s32 %v4109, %v4111
    %v4113 = vrot.slane %v4085, %v4112
    %v4114 = vcombine.low %v4092, %v4099
    %v4115 = vcombine.low %v4106, %v4113
    %v4117 = vunpack.c.l.s4 1966171168
    %v4118 = vunpack.c.0.s8 %v4117
    %v4119 = vlaneseq
    %v4120 = vshrl.u32 %v4119, 7
    %v4121 = vsub.s32 %v4118, %v4120
    %v4122 = vrot.slane %v4114, %v4121
    %v4124 = vunpack.c.l.s4 1966171168
    %v4125 = vunpack.c.0.s8 %v4124
    %v4126 = vlaneseq
    %v4127 = vshrl.u32 %v4126, 7
    %v4128 = vsub.s32 %v4125, %v4127
    %v4129 = vrot.slane %v4115, %v4128
    %v4130 = vcombine.low %v4122, %v4129
    %v4131 = vcombine.low %v1814, %v1818
    %v4132 = vcombine.low %v1822, %v1826
    %v4133 = vcombine.low %v1830, %v1834
    %v4134 = vcombine.low %v1838, %v1842
    %v4136 = vunpack.c.l.s4 1966171168
    %v4137 = vunpack.c.0.s8 %v4136
    %v4138 = vlaneseq
    %v4139 = vshrl.u32 %v4138, 7
    %v4140 = vsub.s32 %v4137, %v4139
    %v4141 = vrot.slane %v4131, %v4140
    %v4143 = vunpack.c.l.s4 1966171168
    %v4144 = vunpack.c.0.s8 %v4143
    %v4145 = vlaneseq
    %v4146 = vshrl.u32 %v4145, 7
    %v4147 = vsub.s32 %v4144, %v4146
    %v4148 = vrot.slane %v4132, %v4147
    %v4150 = vunpack.c.l.s4 1966171168
    %v4151 = vunpack.c.0.s8 %v4150
    %v4152 = vlaneseq
    %v4153 = vshrl.u32 %v4152, 7
    %v4154 = vsub.s32 %v4151, %v4153
    %v4155 = vrot.slane %v4133, %v4154
    %v4157 = vunpack.c.l.s4 1966171168
    %v4158 = vunpack.c.0.s8 %v4157
    %v4159 = vlaneseq
    %v4160 = vshrl.u32 %v4159, 7
    %v4161 = vsub.s32 %v4158, %v4160
    %v4162 = vrot.slane %v4134, %v4161
    %v4163 = vcombine.low %v4141, %v4148
    %v4164 = vcombine.low %v4155, %v4162
    %v4166 = vunpack.c.l.s4 1966171168
    %v4167 = vunpack.c.0.s8 %v4166
    %v4168 = vlaneseq
    %v4169 = vshrl.u32 %v4168, 7
    %v4170 = vsub.s32 %v4167, %v4169
    %v4171 = vrot.slane %v4163, %v4170
    %v4173 = vunpack.c.l.s4 1966171168
    %v4174 = vunpack.c.0.s8 %v4173
    %v4175 = vlaneseq
    %v4176 = vshrl.u32 %v4175, 7
    %v4177 = vsub.s32 %v4174, %v4176
    %v4178 = vrot.slane %v4164, %v4177
    %v4179 = vcombine.low %v4171, %v4178
    %v4180 = vcombine.low %v1846, %v1850
    %v4181 = vcombine.low %v1854, %v1858
    %v4182 = vcombine.low %v1862, %v1866
    %v4183 = vcombine.low %v1870, %v1874
    %v4185 = vunpack.c.l.s4 1966171168
    %v4186 = vunpack.c.0.s8 %v4185
    %v4187 = vlaneseq
    %v4188 = vshrl.u32 %v4187, 7
    %v4189 = vsub.s32 %v4186, %v4188
    %v4190 = vrot.slane %v4180, %v4189
    %v4192 = vunpack.c.l.s4 1966171168
    %v4193 = vunpack.c.0.s8 %v4192
    %v4194 = vlaneseq
    %v4195 = vshrl.u32 %v4194, 7
    %v4196 = vsub.s32 %v4193, %v4195
    %v4197 = vrot.slane %v4181, %v4196
    %v4199 = vunpack.c.l.s4 1966171168
    %v4200 = vunpack.c.0.s8 %v4199
    %v4201 = vlaneseq
    %v4202 = vshrl.u32 %v4201, 7
    %v4203 = vsub.s32 %v4200, %v4202
    %v4204 = vrot.slane %v4182, %v4203
    %v4206 = vunpack.c.l.s4 1966171168
    %v4207 = vunpack.c.0.s8 %v4206
    %v4208 = vlaneseq
    %v4209 = vshrl.u32 %v4208, 7
    %v4210 = vsub.s32 %v4207, %v4209
    %v4211 = vrot.slane %v4183, %v4210
    %v4212 = vcombine.low %v4190, %v4197
    %v4213 = vcombine.low %v4204, %v4211
    %v4215 = vunpack.c.l.s4 1966171168
    %v4216 = vunpack.c.0.s8 %v4215
    %v4217 = vlaneseq
    %v4218 = vshrl.u32 %v4217, 7
    %v4219 = vsub.s32 %v4216, %v4218
    %v4220 = vrot.slane %v4212, %v4219
    %v4222 = vunpack.c.l.s4 1966171168
    %v4223 = vunpack.c.0.s8 %v4222
    %v4224 = vlaneseq
    %v4225 = vshrl.u32 %v4224, 7
    %v4226 = vsub.s32 %v4223, %v4225
    %v4227 = vrot.slane %v4213, %v4226
    %v4228 = vcombine.low %v4220, %v4227
    %v4229 = vcombine.low %v1878, %v1882
    %v4230 = vcombine.low %v1886, %v1890
    %v4231 = vcombine.low %v1894, %v1898
    %v4232 = vcombine.low %v1902, %v1906
    %v4234 = vunpack.c.l.s4 1966171168
    %v4235 = vunpack.c.0.s8 %v4234
    %v4236 = vlaneseq
    %v4237 = vshrl.u32 %v4236, 7
    %v4238 = vsub.s32 %v4235, %v4237
    %v4239 = vrot.slane %v4229, %v4238
    %v4241 = vunpack.c.l.s4 1966171168
    %v4242 = vunpack.c.0.s8 %v4241
    %v4243 = vlaneseq
    %v4244 = vshrl.u32 %v4243, 7
    %v4245 = vsub.s32 %v4242, %v4244
    %v4246 = vrot.slane %v4230, %v4245
    %v4248 = vunpack.c.l.s4 1966171168
    %v4249 = vunpack.c.0.s8 %v4248
    %v4250 = vlaneseq
    %v4251 = vshrl.u32 %v4250, 7
    %v4252 = vsub.s32 %v4249, %v4251
    %v4253 = vrot.slane %v4231, %v4252
    %v4255 = vunpack.c.l.s4 1966171168
    %v4256 = vunpack.c.0.s8 %v4255
    %v4257 = vlaneseq
    %v4258 = vshrl.u32 %v4257, 7
    %v4259 = vsub.s32 %v4256, %v4258
    %v4260 = vrot.slane %v4232, %v4259
    %v4261 = vcombine.low %v4239, %v4246
    %v4262 = vcombine.low %v4253, %v4260
    %v4264 = vunpack.c.l.s4 1966171168
    %v4265 = vunpack.c.0.s8 %v4264
    %v4266 = vlaneseq
    %v4267 = vshrl.u32 %v4266, 7
    %v4268 = vsub.s32 %v4265, %v4267
    %v4269 = vrot.slane %v4261, %v4268
    %v4271 = vunpack.c.l.s4 1966171168
    %v4272 = vunpack.c.0.s8 %v4271
    %v4273 = vlaneseq
    %v4274 = vshrl.u32 %v4273, 7
    %v4275 = vsub.s32 %v4272, %v4274
    %v4276 = vrot.slane %v4262, %v4275
    %v4277 = vcombine.low %v4269, %v4276
    %v4278 = vcombine.low %v1910, %v1914
    %v4279 = vcombine.low %v1918, %v1922
    %v4280 = vcombine.low %v1926, %v1930
    %v4281 = vcombine.low %v1934, %v1938
    %v4283 = vunpack.c.l.s4 1966171168
    %v4284 = vunpack.c.0.s8 %v4283
    %v4285 = vlaneseq
    %v4286 = vshrl.u32 %v4285, 7
    %v4287 = vsub.s32 %v4284, %v4286
    %v4288 = vrot.slane %v4278, %v4287
    %v4290 = vunpack.c.l.s4 1966171168
    %v4291 = vunpack.c.0.s8 %v4290
    %v4292 = vlaneseq
    %v4293 = vshrl.u32 %v4292, 7
    %v4294 = vsub.s32 %v4291, %v4293
    %v4295 = vrot.slane %v4279, %v4294
    %v4297 = vunpack.c.l.s4 1966171168
    %v4298 = vunpack.c.0.s8 %v4297
    %v4299 = vlaneseq
    %v4300 = vshrl.u32 %v4299, 7
    %v4301 = vsub.s32 %v4298, %v4300
    %v4302 = vrot.slane %v4280, %v4301
    %v4304 = vunpack.c.l.s4 1966171168
    %v4305 = vunpack.c.0.s8 %v4304
    %v4306 = vlaneseq
    %v4307 = vshrl.u32 %v4306, 7
    %v4308 = vsub.s32 %v4305, %v4307
    %v4309 = vrot.slane %v4281, %v4308
    %v4310 = vcombine.low %v4288, %v4295
    %v4311 = vcombine.low %v4302, %v4309
    %v4313 = vunpack.c.l.s4 1966171168
    %v4314 = vunpack.c.0.s8 %v4313
    %v4315 = vlaneseq
    %v4316 = vshrl.u32 %v4315, 7
    %v4317 = vsub.s32 %v4314, %v4316
    %v4318 = vrot.slane %v4310, %v4317
    %v4320 = vunpack.c.l.s4 1966171168
    %v4321 = vunpack.c.0.s8 %v4320
    %v4322 = vlaneseq
    %v4323 = vshrl.u32 %v4322, 7
    %v4324 = vsub.s32 %v4321, %v4323
    %v4325 = vrot.slane %v4311, %v4324
    %v4326 = vcombine.low %v4318, %v4325
    %v4327 = vcombine.low %v1942, %v1946
    %v4328 = vcombine.low %v1950, %v1954
    %v4329 = vcombine.low %v1958, %v1962
    %v4330 = vcombine.low %v1966, %v1970
    %v4332 = vunpack.c.l.s4 1966171168
    %v4333 = vunpack.c.0.s8 %v4332
    %v4334 = vlaneseq
    %v4335 = vshrl.u32 %v4334, 7
    %v4336 = vsub.s32 %v4333, %v4335
    %v4337 = vrot.slane %v4327, %v4336
    %v4339 = vunpack.c.l.s4 1966171168
    %v4340 = vunpack.c.0.s8 %v4339
    %v4341 = vlaneseq
    %v4342 = vshrl.u32 %v4341, 7
    %v4343 = vsub.s32 %v4340, %v4342
    %v4344 = vrot.slane %v4328, %v4343
    %v4346 = vunpack.c.l.s4 1966171168
    %v4347 = vunpack.c.0.s8 %v4346
    %v4348 = vlaneseq
    %v4349 = vshrl.u32 %v4348, 7
    %v4350 = vsub.s32 %v4347, %v4349
    %v4351 = vrot.slane %v4329, %v4350
    %v4353 = vunpack.c.l.s4 1966171168
    %v4354 = vunpack.c.0.s8 %v4353
    %v4355 = vlaneseq
    %v4356 = vshrl.u32 %v4355, 7
    %v4357 = vsub.s32 %v4354, %v4356
    %v4358 = vrot.slane %v4330, %v4357
    %v4359 = vcombine.low %v4337, %v4344
    %v4360 = vcombine.low %v4351, %v4358
    %v4362 = vunpack.c.l.s4 1966171168
    %v4363 = vunpack.c.0.s8 %v4362
    %v4364 = vlaneseq
    %v4365 = vshrl.u32 %v4364, 7
    %v4366 = vsub.s32 %v4363, %v4365
    %v4367 = vrot.slane %v4359, %v4366
    %v4369 = vunpack.c.l.s4 1966171168
    %v4370 = vunpack.c.0.s8 %v4369
    %v4371 = vlaneseq
    %v4372 = vshrl.u32 %v4371, 7
    %v4373 = vsub.s32 %v4370, %v4372
    %v4374 = vrot.slane %v4360, %v4373
    %v4375 = vcombine.low %v4367, %v4374
    %v4376 = vcombine.low %v1974, %v1978
    %v4377 = vcombine.low %v1982, %v1986
    %v4378 = vcombine.low %v1990, %v1994
    %v4379 = vcombine.low %v1998, %v2002
    %v4381 = vunpack.c.l.s4 1966171168
    %v4382 = vunpack.c.0.s8 %v4381
    %v4383 = vlaneseq
    %v4384 = vshrl.u32 %v4383, 7
    %v4385 = vsub.s32 %v4382, %v4384
    %v4386 = vrot.slane %v4376, %v4385
    %v4388 = vunpack.c.l.s4 1966171168
    %v4389 = vunpack.c.0.s8 %v4388
    %v4390 = vlaneseq
    %v4391 = vshrl.u32 %v4390, 7
    %v4392 = vsub.s32 %v4389, %v4391
    %v4393 = vrot.slane %v4377, %v4392
    %v4395 = vunpack.c.l.s4 1966171168
    %v4396 = vunpack.c.0.s8 %v4395
    %v4397 = vlaneseq
    %v4398 = vshrl.u32 %v4397, 7
    %v4399 = vsub.s32 %v4396, %v4398
    %v4400 = vrot.slane %v4378, %v4399
    %v4402 = vunpack.c.l.s4 1966171168
    %v4403 = vunpack.c.0.s8 %v4402
    %v4404 = vlaneseq
    %v4405 = vshrl.u32 %v4404, 7
    %v4406 = vsub.s32 %v4403, %v4405
    %v4407 = vrot.slane %v4379, %v4406
    %v4408 = vcombine.low %v4386, %v4393
    %v4409 = vcombine.low %v4400, %v4407
    %v4411 = vunpack.c.l.s4 1966171168
    %v4412 = vunpack.c.0.s8 %v4411
    %v4413 = vlaneseq
    %v4414 = vshrl.u32 %v4413, 7
    %v4415 = vsub.s32 %v4412, %v4414
    %v4416 = vrot.slane %v4408, %v4415
    %v4418 = vunpack.c.l.s4 1966171168
    %v4419 = vunpack.c.0.s8 %v4418
    %v4420 = vlaneseq
    %v4421 = vshrl.u32 %v4420, 7
    %v4422 = vsub.s32 %v4419, %v4421
    %v4423 = vrot.slane %v4409, %v4422
    %v4424 = vcombine.low %v4416, %v4423
    %v4425 = vcombine.low %v2006, %v2010
    %v4426 = vcombine.low %v2014, %v2018
    %v4427 = vcombine.low %v2022, %v2026
    %v4428 = vcombine.low %v2030, %v2034
    %v4430 = vunpack.c.l.s4 1966171168
    %v4431 = vunpack.c.0.s8 %v4430
    %v4432 = vlaneseq
    %v4433 = vshrl.u32 %v4432, 7
    %v4434 = vsub.s32 %v4431, %v4433
    %v4435 = vrot.slane %v4425, %v4434
    %v4437 = vunpack.c.l.s4 1966171168
    %v4438 = vunpack.c.0.s8 %v4437
    %v4439 = vlaneseq
    %v4440 = vshrl.u32 %v4439, 7
    %v4441 = vsub.s32 %v4438, %v4440
    %v4442 = vrot.slane %v4426, %v4441
    %v4444 = vunpack.c.l.s4 1966171168
    %v4445 = vunpack.c.0.s8 %v4444
    %v4446 = vlaneseq
    %v4447 = vshrl.u32 %v4446, 7
    %v4448 = vsub.s32 %v4445, %v4447
    %v4449 = vrot.slane %v4427, %v4448
    %v4451 = vunpack.c.l.s4 1966171168
    %v4452 = vunpack.c.0.s8 %v4451
    %v4453 = vlaneseq
    %v4454 = vshrl.u32 %v4453, 7
    %v4455 = vsub.s32 %v4452, %v4454
    %v4456 = vrot.slane %v4428, %v4455
    %v4457 = vcombine.low %v4435, %v4442
    %v4458 = vcombine.low %v4449, %v4456
    %v4460 = vunpack.c.l.s4 1966171168
    %v4461 = vunpack.c.0.s8 %v4460
    %v4462 = vlaneseq
    %v4463 = vshrl.u32 %v4462, 7
    %v4464 = vsub.s32 %v4461, %v4463
    %v4465 = vrot.slane %v4457, %v4464
    %v4467 = vunpack.c.l.s4 1966171168
    %v4468 = vunpack.c.0.s8 %v4467
    %v4469 = vlaneseq
    %v4470 = vshrl.u32 %v4469, 7
    %v4471 = vsub.s32 %v4468, %v4470
    %v4472 = vrot.slane %v4458, %v4471
    %v4473 = vcombine.low %v4465, %v4472
    %v4474 = vcombine.low %v2038, %v2042
    %v4475 = vcombine.low %v2046, %v2050
    %v4476 = vcombine.low %v2054, %v2058
    %v4477 = vcombine.low %v2062, %v2066
    %v4479 = vunpack.c.l.s4 1966171168
    %v4480 = vunpack.c.0.s8 %v4479
    %v4481 = vlaneseq
    %v4482 = vshrl.u32 %v4481, 7
    %v4483 = vsub.s32 %v4480, %v4482
    %v4484 = vrot.slane %v4474, %v4483
    %v4486 = vunpack.c.l.s4 1966171168
    %v4487 = vunpack.c.0.s8 %v4486
    %v4488 = vlaneseq
    %v4489 = vshrl.u32 %v4488, 7
    %v4490 = vsub.s32 %v4487, %v4489
    %v4491 = vrot.slane %v4475, %v4490
    %v4493 = vunpack.c.l.s4 1966171168
    %v4494 = vunpack.c.0.s8 %v4493
    %v4495 = vlaneseq
    %v4496 = vshrl.u32 %v4495, 7
    %v4497 = vsub.s32 %v4494, %v4496
    %v4498 = vrot.slane %v4476, %v4497
    %v4500 = vunpack.c.l.s4 1966171168
    %v4501 = vunpack.c.0.s8 %v4500
    %v4502 = vlaneseq
    %v4503 = vshrl.u32 %v4502, 7
    %v4504 = vsub.s32 %v4501, %v4503
    %v4505 = vrot.slane %v4477, %v4504
    %v4506 = vcombine.low %v4484, %v4491
    %v4507 = vcombine.low %v4498, %v4505
    %v4509 = vunpack.c.l.s4 1966171168
    %v4510 = vunpack.c.0.s8 %v4509
    %v4511 = vlaneseq
    %v4512 = vshrl.u32 %v4511, 7
    %v4513 = vsub.s32 %v4510, %v4512
    %v4514 = vrot.slane %v4506, %v4513
    %v4516 = vunpack.c.l.s4 1966171168
    %v4517 = vunpack.c.0.s8 %v4516
    %v4518 = vlaneseq
    %v4519 = vshrl.u32 %v4518, 7
    %v4520 = vsub.s32 %v4517, %v4519
    %v4521 = vrot.slane %v4507, %v4520
    %v4522 = vcombine.low %v4514, %v4521
    %v4523 = vcombine.low %v2070, %v2074
    %v4524 = vcombine.low %v2078, %v2082
    %v4525 = vcombine.low %v2086, %v2090
    %v4526 = vcombine.low %v2094, %v2098
    %v4528 = vunpack.c.l.s4 1966171168
    %v4529 = vunpack.c.0.s8 %v4528
    %v4530 = vlaneseq
    %v4531 = vshrl.u32 %v4530, 7
    %v4532 = vsub.s32 %v4529, %v4531
    %v4533 = vrot.slane %v4523, %v4532
    %v4535 = vunpack.c.l.s4 1966171168
    %v4536 = vunpack.c.0.s8 %v4535
    %v4537 = vlaneseq
    %v4538 = vshrl.u32 %v4537, 7
    %v4539 = vsub.s32 %v4536, %v4538
    %v4540 = vrot.slane %v4524, %v4539
    %v4542 = vunpack.c.l.s4 1966171168
    %v4543 = vunpack.c.0.s8 %v4542
    %v4544 = vlaneseq
    %v4545 = vshrl.u32 %v4544, 7
    %v4546 = vsub.s32 %v4543, %v4545
    %v4547 = vrot.slane %v4525, %v4546
    %v4549 = vunpack.c.l.s4 1966171168
    %v4550 = vunpack.c.0.s8 %v4549
    %v4551 = vlaneseq
    %v4552 = vshrl.u32 %v4551, 7
    %v4553 = vsub.s32 %v4550, %v4552
    %v4554 = vrot.slane %v4526, %v4553
    %v4555 = vcombine.low %v4533, %v4540
    %v4556 = vcombine.low %v4547, %v4554
    %v4558 = vunpack.c.l.s4 1966171168
    %v4559 = vunpack.c.0.s8 %v4558
    %v4560 = vlaneseq
    %v4561 = vshrl.u32 %v4560, 7
    %v4562 = vsub.s32 %v4559, %v4561
    %v4563 = vrot.slane %v4555, %v4562
    %v4565 = vunpack.c.l.s4 1966171168
    %v4566 = vunpack.c.0.s8 %v4565
    %v4567 = vlaneseq
    %v4568 = vshrl.u32 %v4567, 7
    %v4569 = vsub.s32 %v4566, %v4568
    %v4570 = vrot.slane %v4556, %v4569
    %v4571 = vcombine.low %v4563, %v4570
    %v4572 = vcombine.low %v2102, %v2106
    %v4573 = vcombine.low %v2110, %v2114
    %v4574 = vcombine.low %v2118, %v2122
    %v4575 = vcombine.low %v2126, %v2130
    %v4577 = vunpack.c.l.s4 1966171168
    %v4578 = vunpack.c.0.s8 %v4577
    %v4579 = vlaneseq
    %v4580 = vshrl.u32 %v4579, 7
    %v4581 = vsub.s32 %v4578, %v4580
    %v4582 = vrot.slane %v4572, %v4581
    %v4584 = vunpack.c.l.s4 1966171168
    %v4585 = vunpack.c.0.s8 %v4584
    %v4586 = vlaneseq
    %v4587 = vshrl.u32 %v4586, 7
    %v4588 = vsub.s32 %v4585, %v4587
    %v4589 = vrot.slane %v4573, %v4588
    %v4591 = vunpack.c.l.s4 1966171168
    %v4592 = vunpack.c.0.s8 %v4591
    %v4593 = vlaneseq
    %v4594 = vshrl.u32 %v4593, 7
    %v4595 = vsub.s32 %v4592, %v4594
    %v4596 = vrot.slane %v4574, %v4595
    %v4598 = vunpack.c.l.s4 1966171168
    %v4599 = vunpack.c.0.s8 %v4598
    %v4600 = vlaneseq
    %v4601 = vshrl.u32 %v4600, 7
    %v4602 = vsub.s32 %v4599, %v4601
    %v4603 = vrot.slane %v4575, %v4602
    %v4604 = vcombine.low %v4582, %v4589
    %v4605 = vcombine.low %v4596, %v4603
    %v4607 = vunpack.c.l.s4 1966171168
    %v4608 = vunpack.c.0.s8 %v4607
    %v4609 = vlaneseq
    %v4610 = vshrl.u32 %v4609, 7
    %v4611 = vsub.s32 %v4608, %v4610
    %v4612 = vrot.slane %v4604, %v4611
    %v4614 = vunpack.c.l.s4 1966171168
    %v4615 = vunpack.c.0.s8 %v4614
    %v4616 = vlaneseq
    %v4617 = vshrl.u32 %v4616, 7
    %v4618 = vsub.s32 %v4615, %v4617
    %v4619 = vrot.slane %v4605, %v4618
    %v4620 = vcombine.low %v4612, %v4619
    %v4621 = vcombine.low %v2134, %v2138
    %v4622 = vcombine.low %v2142, %v2146
    %v4623 = vcombine.low %v2150, %v2154
    %v4624 = vcombine.low %v2158, %v2162
    %v4626 = vunpack.c.l.s4 1966171168
    %v4627 = vunpack.c.0.s8 %v4626
    %v4628 = vlaneseq
    %v4629 = vshrl.u32 %v4628, 7
    %v4630 = vsub.s32 %v4627, %v4629
    %v4631 = vrot.slane %v4621, %v4630
    %v4633 = vunpack.c.l.s4 1966171168
    %v4634 = vunpack.c.0.s8 %v4633
    %v4635 = vlaneseq
    %v4636 = vshrl.u32 %v4635, 7
    %v4637 = vsub.s32 %v4634, %v4636
    %v4638 = vrot.slane %v4622, %v4637
    %v4640 = vunpack.c.l.s4 1966171168
    %v4641 = vunpack.c.0.s8 %v4640
    %v4642 = vlaneseq
    %v4643 = vshrl.u32 %v4642, 7
    %v4644 = vsub.s32 %v4641, %v4643
    %v4645 = vrot.slane %v4623, %v4644
    %v4647 = vunpack.c.l.s4 1966171168
    %v4648 = vunpack.c.0.s8 %v4647
    %v4649 = vlaneseq
    %v4650 = vshrl.u32 %v4649, 7
    %v4651 = vsub.s32 %v4648, %v4650
    %v4652 = vrot.slane %v4624, %v4651
    %v4653 = vcombine.low %v4631, %v4638
    %v4654 = vcombine.low %v4645, %v4652
    %v4656 = vunpack.c.l.s4 1966171168
    %v4657 = vunpack.c.0.s8 %v4656
    %v4658 = vlaneseq
    %v4659 = vshrl.u32 %v4658, 7
    %v4660 = vsub.s32 %v4657, %v4659
    %v4661 = vrot.slane %v4653, %v4660
    %v4663 = vunpack.c.l.s4 1966171168
    %v4664 = vunpack.c.0.s8 %v4663
    %v4665 = vlaneseq
    %v4666 = vshrl.u32 %v4665, 7
    %v4667 = vsub.s32 %v4664, %v4666
    %v4668 = vrot.slane %v4654, %v4667
    %v4669 = vcombine.low %v4661, %v4668
    %v4670 = vcombine.low %v2166, %v2170
    %v4671 = vcombine.low %v2174, %v2178
    %v4672 = vcombine.low %v2182, %v2186
    %v4673 = vcombine.low %v2190, %v2194
    %v4675 = vunpack.c.l.s4 1966171168
    %v4676 = vunpack.c.0.s8 %v4675
    %v4677 = vlaneseq
    %v4678 = vshrl.u32 %v4677, 7
    %v4679 = vsub.s32 %v4676, %v4678
    %v4680 = vrot.slane %v4670, %v4679
    %v4682 = vunpack.c.l.s4 1966171168
    %v4683 = vunpack.c.0.s8 %v4682
    %v4684 = vlaneseq
    %v4685 = vshrl.u32 %v4684, 7
    %v4686 = vsub.s32 %v4683, %v4685
    %v4687 = vrot.slane %v4671, %v4686
    %v4689 = vunpack.c.l.s4 1966171168
    %v4690 = vunpack.c.0.s8 %v4689
    %v4691 = vlaneseq
    %v4692 = vshrl.u32 %v4691, 7
    %v4693 = vsub.s32 %v4690, %v4692
    %v4694 = vrot.slane %v4672, %v4693
    %v4696 = vunpack.c.l.s4 1966171168
    %v4697 = vunpack.c.0.s8 %v4696
    %v4698 = vlaneseq
    %v4699 = vshrl.u32 %v4698, 7
    %v4700 = vsub.s32 %v4697, %v4699
    %v4701 = vrot.slane %v4673, %v4700
    %v4702 = vcombine.low %v4680, %v4687
    %v4703 = vcombine.low %v4694, %v4701
    %v4705 = vunpack.c.l.s4 1966171168
    %v4706 = vunpack.c.0.s8 %v4705
    %v4707 = vlaneseq
    %v4708 = vshrl.u32 %v4707, 7
    %v4709 = vsub.s32 %v4706, %v4708
    %v4710 = vrot.slane %v4702, %v4709
    %v4712 = vunpack.c.l.s4 1966171168
    %v4713 = vunpack.c.0.s8 %v4712
    %v4714 = vlaneseq
    %v4715 = vshrl.u32 %v4714, 7
    %v4716 = vsub.s32 %v4713, %v4715
    %v4717 = vrot.slane %v4703, %v4716
    %v4718 = vcombine.low %v4710, %v4717
    %v4719 = vcombine.low %v2198, %v2202
    %v4720 = vcombine.low %v2206, %v2210
    %v4721 = vcombine.low %v2214, %v2218
    %v4722 = vcombine.low %v2222, %v2226
    %v4724 = vunpack.c.l.s4 1966171168
    %v4725 = vunpack.c.0.s8 %v4724
    %v4726 = vlaneseq
    %v4727 = vshrl.u32 %v4726, 7
    %v4728 = vsub.s32 %v4725, %v4727
    %v4729 = vrot.slane %v4719, %v4728
    %v4731 = vunpack.c.l.s4 1966171168
    %v4732 = vunpack.c.0.s8 %v4731
    %v4733 = vlaneseq
    %v4734 = vshrl.u32 %v4733, 7
    %v4735 = vsub.s32 %v4732, %v4734
    %v4736 = vrot.slane %v4720, %v4735
    %v4738 = vunpack.c.l.s4 1966171168
    %v4739 = vunpack.c.0.s8 %v4738
    %v4740 = vlaneseq
    %v4741 = vshrl.u32 %v4740, 7
    %v4742 = vsub.s32 %v4739, %v4741
    %v4743 = vrot.slane %v4721, %v4742
    %v4745 = vunpack.c.l.s4 1966171168
    %v4746 = vunpack.c.0.s8 %v4745
    %v4747 = vlaneseq
    %v4748 = vshrl.u32 %v4747, 7
    %v4749 = vsub.s32 %v4746, %v4748
    %v4750 = vrot.slane %v4722, %v4749
    %v4751 = vcombine.low %v4729, %v4736
    %v4752 = vcombine.low %v4743, %v4750
    %v4754 = vunpack.c.l.s4 1966171168
    %v4755 = vunpack.c.0.s8 %v4754
    %v4756 = vlaneseq
    %v4757 = vshrl.u32 %v4756, 7
    %v4758 = vsub.s32 %v4755, %v4757
    %v4759 = vrot.slane %v4751, %v4758
    %v4761 = vunpack.c.l.s4 1966171168
    %v4762 = vunpack.c.0.s8 %v4761
    %v4763 = vlaneseq
    %v4764 = vshrl.u32 %v4763, 7
    %v4765 = vsub.s32 %v4762, %v4764
    %v4766 = vrot.slane %v4752, %v4765
    %v4767 = vcombine.low %v4759, %v4766
    %v4768 = vcombine.low %v2230, %v2234
    %v4769 = vcombine.low %v2238, %v2242
    %v4770 = vcombine.low %v2246, %v2250
    %v4771 = vcombine.low %v2254, %v2258
    %v4773 = vunpack.c.l.s4 1966171168
    %v4774 = vunpack.c.0.s8 %v4773
    %v4775 = vlaneseq
    %v4776 = vshrl.u32 %v4775, 7
    %v4777 = vsub.s32 %v4774, %v4776
    %v4778 = vrot.slane %v4768, %v4777
    %v4780 = vunpack.c.l.s4 1966171168
    %v4781 = vunpack.c.0.s8 %v4780
    %v4782 = vlaneseq
    %v4783 = vshrl.u32 %v4782, 7
    %v4784 = vsub.s32 %v4781, %v4783
    %v4785 = vrot.slane %v4769, %v4784
    %v4787 = vunpack.c.l.s4 1966171168
    %v4788 = vunpack.c.0.s8 %v4787
    %v4789 = vlaneseq
    %v4790 = vshrl.u32 %v4789, 7
    %v4791 = vsub.s32 %v4788, %v4790
    %v4792 = vrot.slane %v4770, %v4791
    %v4794 = vunpack.c.l.s4 1966171168
    %v4795 = vunpack.c.0.s8 %v4794
    %v4796 = vlaneseq
    %v4797 = vshrl.u32 %v4796, 7
    %v4798 = vsub.s32 %v4795, %v4797
    %v4799 = vrot.slane %v4771, %v4798
    %v4800 = vcombine.low %v4778, %v4785
    %v4801 = vcombine.low %v4792, %v4799
    %v4803 = vunpack.c.l.s4 1966171168
    %v4804 = vunpack.c.0.s8 %v4803
    %v4805 = vlaneseq
    %v4806 = vshrl.u32 %v4805, 7
    %v4807 = vsub.s32 %v4804, %v4806
    %v4808 = vrot.slane %v4800, %v4807
    %v4810 = vunpack.c.l.s4 1966171168
    %v4811 = vunpack.c.0.s8 %v4810
    %v4812 = vlaneseq
    %v4813 = vshrl.u32 %v4812, 7
    %v4814 = vsub.s32 %v4811, %v4813
    %v4815 = vrot.slane %v4801, %v4814
    %v4816 = vcombine.low %v4808, %v4815
    %v4817 = vcombine.low %v2262, %v2266
    %v4818 = vcombine.low %v2270, %v2274
    %v4819 = vcombine.low %v2278, %v2282
    %v4820 = vcombine.low %v2286, %v2290
    %v4822 = vunpack.c.l.s4 1966171168
    %v4823 = vunpack.c.0.s8 %v4822
    %v4824 = vlaneseq
    %v4825 = vshrl.u32 %v4824, 7
    %v4826 = vsub.s32 %v4823, %v4825
    %v4827 = vrot.slane %v4817, %v4826
    %v4829 = vunpack.c.l.s4 1966171168
    %v4830 = vunpack.c.0.s8 %v4829
    %v4831 = vlaneseq
    %v4832 = vshrl.u32 %v4831, 7
    %v4833 = vsub.s32 %v4830, %v4832
    %v4834 = vrot.slane %v4818, %v4833
    %v4836 = vunpack.c.l.s4 1966171168
    %v4837 = vunpack.c.0.s8 %v4836
    %v4838 = vlaneseq
    %v4839 = vshrl.u32 %v4838, 7
    %v4840 = vsub.s32 %v4837, %v4839
    %v4841 = vrot.slane %v4819, %v4840
    %v4843 = vunpack.c.l.s4 1966171168
    %v4844 = vunpack.c.0.s8 %v4843
    %v4845 = vlaneseq
    %v4846 = vshrl.u32 %v4845, 7
    %v4847 = vsub.s32 %v4844, %v4846
    %v4848 = vrot.slane %v4820, %v4847
    %v4849 = vcombine.low %v4827, %v4834
    %v4850 = vcombine.low %v4841, %v4848
    %v4852 = vunpack.c.l.s4 1966171168
    %v4853 = vunpack.c.0.s8 %v4852
    %v4854 = vlaneseq
    %v4855 = vshrl.u32 %v4854, 7
    %v4856 = vsub.s32 %v4853, %v4855
    %v4857 = vrot.slane %v4849, %v4856
    %v4859 = vunpack.c.l.s4 1966171168
    %v4860 = vunpack.c.0.s8 %v4859
    %v4861 = vlaneseq
    %v4862 = vshrl.u32 %v4861, 7
    %v4863 = vsub.s32 %v4860, %v4862
    %v4864 = vrot.slane %v4850, %v4863
    %v4865 = vcombine.low %v4857, %v4864
    %v4866 = vcombine.low %v2294, %v2298
    %v4867 = vcombine.low %v2302, %v2306
    %v4868 = vcombine.low %v2310, %v2314
    %v4869 = vcombine.low %v2318, %v2322
    %v4871 = vunpack.c.l.s4 1966171168
    %v4872 = vunpack.c.0.s8 %v4871
    %v4873 = vlaneseq
    %v4874 = vshrl.u32 %v4873, 7
    %v4875 = vsub.s32 %v4872, %v4874
    %v4876 = vrot.slane %v4866, %v4875
    %v4878 = vunpack.c.l.s4 1966171168
    %v4879 = vunpack.c.0.s8 %v4878
    %v4880 = vlaneseq
    %v4881 = vshrl.u32 %v4880, 7
    %v4882 = vsub.s32 %v4879, %v4881
    %v4883 = vrot.slane %v4867, %v4882
    %v4885 = vunpack.c.l.s4 1966171168
    %v4886 = vunpack.c.0.s8 %v4885
    %v4887 = vlaneseq
    %v4888 = vshrl.u32 %v4887, 7
    %v4889 = vsub.s32 %v4886, %v4888
    %v4890 = vrot.slane %v4868, %v4889
    %v4892 = vunpack.c.l.s4 1966171168
    %v4893 = vunpack.c.0.s8 %v4892
    %v4894 = vlaneseq
    %v4895 = vshrl.u32 %v4894, 7
    %v4896 = vsub.s32 %v4893, %v4895
    %v4897 = vrot.slane %v4869, %v4896
    %v4898 = vcombine.low %v4876, %v4883
    %v4899 = vcombine.low %v4890, %v4897
    %v4901 = vunpack.c.l.s4 1966171168
    %v4902 = vunpack.c.0.s8 %v4901
    %v4903 = vlaneseq
    %v4904 = vshrl.u32 %v4903, 7
    %v4905 = vsub.s32 %v4902, %v4904
    %v4906 = vrot.slane %v4898, %v4905
    %v4908 = vunpack.c.l.s4 1966171168
    %v4909 = vunpack.c.0.s8 %v4908
    %v4910 = vlaneseq
    %v4911 = vshrl.u32 %v4910, 7
    %v4912 = vsub.s32 %v4909, %v4911
    %v4913 = vrot.slane %v4899, %v4912
    %v4914 = vcombine.low %v4906, %v4913
    %v4915 = vcombine.low %v2326, %v2330
    %v4916 = vcombine.low %v2334, %v2338
    %v4917 = vcombine.low %v2342, %v2346
    %v4918 = vcombine.low %v2350, %v2354
    %v4920 = vunpack.c.l.s4 1966171168
    %v4921 = vunpack.c.0.s8 %v4920
    %v4922 = vlaneseq
    %v4923 = vshrl.u32 %v4922, 7
    %v4924 = vsub.s32 %v4921, %v4923
    %v4925 = vrot.slane %v4915, %v4924
    %v4927 = vunpack.c.l.s4 1966171168
    %v4928 = vunpack.c.0.s8 %v4927
    %v4929 = vlaneseq
    %v4930 = vshrl.u32 %v4929, 7
    %v4931 = vsub.s32 %v4928, %v4930
    %v4932 = vrot.slane %v4916, %v4931
    %v4934 = vunpack.c.l.s4 1966171168
    %v4935 = vunpack.c.0.s8 %v4934
    %v4936 = vlaneseq
    %v4937 = vshrl.u32 %v4936, 7
    %v4938 = vsub.s32 %v4935, %v4937
    %v4939 = vrot.slane %v4917, %v4938
    %v4941 = vunpack.c.l.s4 1966171168
    %v4942 = vunpack.c.0.s8 %v4941
    %v4943 = vlaneseq
    %v4944 = vshrl.u32 %v4943, 7
    %v4945 = vsub.s32 %v4942, %v4944
    %v4946 = vrot.slane %v4918, %v4945
    %v4947 = vcombine.low %v4925, %v4932
    %v4948 = vcombine.low %v4939, %v4946
    %v4950 = vunpack.c.l.s4 1966171168
    %v4951 = vunpack.c.0.s8 %v4950
    %v4952 = vlaneseq
    %v4953 = vshrl.u32 %v4952, 7
    %v4954 = vsub.s32 %v4951, %v4953
    %v4955 = vrot.slane %v4947, %v4954
    %v4957 = vunpack.c.l.s4 1966171168
    %v4958 = vunpack.c.0.s8 %v4957
    %v4959 = vlaneseq
    %v4960 = vshrl.u32 %v4959, 7
    %v4961 = vsub.s32 %v4958, %v4960
    %v4962 = vrot.slane %v4948, %v4961
    %v4963 = vcombine.low %v4955, %v4962
    %v4964 = vcombine.low %v2358, %v2362
    %v4965 = vcombine.low %v2366, %v2370
    %v4966 = vcombine.low %v2374, %v2378
    %v4967 = vcombine.low %v2382, %v2386
    %v4969 = vunpack.c.l.s4 1966171168
    %v4970 = vunpack.c.0.s8 %v4969
    %v4971 = vlaneseq
    %v4972 = vshrl.u32 %v4971, 7
    %v4973 = vsub.s32 %v4970, %v4972
    %v4974 = vrot.slane %v4964, %v4973
    %v4976 = vunpack.c.l.s4 1966171168
    %v4977 = vunpack.c.0.s8 %v4976
    %v4978 = vlaneseq
    %v4979 = vshrl.u32 %v4978, 7
    %v4980 = vsub.s32 %v4977, %v4979
    %v4981 = vrot.slane %v4965, %v4980
    %v4983 = vunpack.c.l.s4 1966171168
    %v4984 = vunpack.c.0.s8 %v4983
    %v4985 = vlaneseq
    %v4986 = vshrl.u32 %v4985, 7
    %v4987 = vsub.s32 %v4984, %v4986
    %v4988 = vrot.slane %v4966, %v4987
    %v4990 = vunpack.c.l.s4 1966171168
    %v4991 = vunpack.c.0.s8 %v4990
    %v4992 = vlaneseq
    %v4993 = vshrl.u32 %v4992, 7
    %v4994 = vsub.s32 %v4991, %v4993
    %v4995 = vrot.slane %v4967, %v4994
    %v4996 = vcombine.low %v4974, %v4981
    %v4997 = vcombine.low %v4988, %v4995
    %v4999 = vunpack.c.l.s4 1966171168
    %v5000 = vunpack.c.0.s8 %v4999
    %v5001 = vlaneseq
    %v5002 = vshrl.u32 %v5001, 7
    %v5003 = vsub.s32 %v5000, %v5002
    %v5004 = vrot.slane %v4996, %v5003
    %v5006 = vunpack.c.l.s4 1966171168
    %v5007 = vunpack.c.0.s8 %v5006
    %v5008 = vlaneseq
    %v5009 = vshrl.u32 %v5008, 7
    %v5010 = vsub.s32 %v5007, %v5009
    %v5011 = vrot.slane %v4997, %v5010
    %v5012 = vcombine.low %v5004, %v5011
    %v5013 = vcombine.low %v2390, %v2394
    %v5014 = vcombine.low %v2398, %v2402
    %v5015 = vcombine.low %v2406, %v2410
    %v5016 = vcombine.low %v2414, %v2418
    %v5018 = vunpack.c.l.s4 1966171168
    %v5019 = vunpack.c.0.s8 %v5018
    %v5020 = vlaneseq
    %v5021 = vshrl.u32 %v5020, 7
    %v5022 = vsub.s32 %v5019, %v5021
    %v5023 = vrot.slane %v5013, %v5022
    %v5025 = vunpack.c.l.s4 1966171168
    %v5026 = vunpack.c.0.s8 %v5025
    %v5027 = vlaneseq
    %v5028 = vshrl.u32 %v5027, 7
    %v5029 = vsub.s32 %v5026, %v5028
    %v5030 = vrot.slane %v5014, %v5029
    %v5032 = vunpack.c.l.s4 1966171168
    %v5033 = vunpack.c.0.s8 %v5032
    %v5034 = vlaneseq
    %v5035 = vshrl.u32 %v5034, 7
    %v5036 = vsub.s32 %v5033, %v5035
    %v5037 = vrot.slane %v5015, %v5036
    %v5039 = vunpack.c.l.s4 1966171168
    %v5040 = vunpack.c.0.s8 %v5039
    %v5041 = vlaneseq
    %v5042 = vshrl.u32 %v5041, 7
    %v5043 = vsub.s32 %v5040, %v5042
    %v5044 = vrot.slane %v5016, %v5043
    %v5045 = vcombine.low %v5023, %v5030
    %v5046 = vcombine.low %v5037, %v5044
    %v5048 = vunpack.c.l.s4 1966171168
    %v5049 = vunpack.c.0.s8 %v5048
    %v5050 = vlaneseq
    %v5051 = vshrl.u32 %v5050, 7
    %v5052 = vsub.s32 %v5049, %v5051
    %v5053 = vrot.slane %v5045, %v5052
    %v5055 = vunpack.c.l.s4 1966171168
    %v5056 = vunpack.c.0.s8 %v5055
    %v5057 = vlaneseq
    %v5058 = vshrl.u32 %v5057, 7
    %v5059 = vsub.s32 %v5056, %v5058
    %v5060 = vrot.slane %v5046, %v5059
    %v5061 = vcombine.low %v5053, %v5060
    %v5062 = vcombine.low %v2422, %v2426
    %v5063 = vcombine.low %v2430, %v2434
    %v5064 = vcombine.low %v2438, %v2442
    %v5065 = vcombine.low %v2446, %v2450
    %v5067 = vunpack.c.l.s4 1966171168
    %v5068 = vunpack.c.0.s8 %v5067
    %v5069 = vlaneseq
    %v5070 = vshrl.u32 %v5069, 7
    %v5071 = vsub.s32 %v5068, %v5070
    %v5072 = vrot.slane %v5062, %v5071
    %v5074 = vunpack.c.l.s4 1966171168
    %v5075 = vunpack.c.0.s8 %v5074
    %v5076 = vlaneseq
    %v5077 = vshrl.u32 %v5076, 7
    %v5078 = vsub.s32 %v5075, %v5077
    %v5079 = vrot.slane %v5063, %v5078
    %v5081 = vunpack.c.l.s4 1966171168
    %v5082 = vunpack.c.0.s8 %v5081
    %v5083 = vlaneseq
    %v5084 = vshrl.u32 %v5083, 7
    %v5085 = vsub.s32 %v5082, %v5084
    %v5086 = vrot.slane %v5064, %v5085
    %v5088 = vunpack.c.l.s4 1966171168
    %v5089 = vunpack.c.0.s8 %v5088
    %v5090 = vlaneseq
    %v5091 = vshrl.u32 %v5090, 7
    %v5092 = vsub.s32 %v5089, %v5091
    %v5093 = vrot.slane %v5065, %v5092
    %v5094 = vcombine.low %v5072, %v5079
    %v5095 = vcombine.low %v5086, %v5093
    %v5097 = vunpack.c.l.s4 1966171168
    %v5098 = vunpack.c.0.s8 %v5097
    %v5099 = vlaneseq
    %v5100 = vshrl.u32 %v5099, 7
    %v5101 = vsub.s32 %v5098, %v5100
    %v5102 = vrot.slane %v5094, %v5101
    %v5104 = vunpack.c.l.s4 1966171168
    %v5105 = vunpack.c.0.s8 %v5104
    %v5106 = vlaneseq
    %v5107 = vshrl.u32 %v5106, 7
    %v5108 = vsub.s32 %v5105, %v5107
    %v5109 = vrot.slane %v5095, %v5108
    %v5110 = vcombine.low %v5102, %v5109
    %v5111 = vcombine.low %v2454, %v2458
    %v5112 = vcombine.low %v2462, %v2466
    %v5113 = vcombine.low %v2470, %v2474
    %v5114 = vcombine.low %v2478, %v2482
    %v5116 = vunpack.c.l.s4 1966171168
    %v5117 = vunpack.c.0.s8 %v5116
    %v5118 = vlaneseq
    %v5119 = vshrl.u32 %v5118, 7
    %v5120 = vsub.s32 %v5117, %v5119
    %v5121 = vrot.slane %v5111, %v5120
    %v5123 = vunpack.c.l.s4 1966171168
    %v5124 = vunpack.c.0.s8 %v5123
    %v5125 = vlaneseq
    %v5126 = vshrl.u32 %v5125, 7
    %v5127 = vsub.s32 %v5124, %v5126
    %v5128 = vrot.slane %v5112, %v5127
    %v5130 = vunpack.c.l.s4 1966171168
    %v5131 = vunpack.c.0.s8 %v5130
    %v5132 = vlaneseq
    %v5133 = vshrl.u32 %v5132, 7
    %v5134 = vsub.s32 %v5131, %v5133
    %v5135 = vrot.slane %v5113, %v5134
    %v5137 = vunpack.c.l.s4 1966171168
    %v5138 = vunpack.c.0.s8 %v5137
    %v5139 = vlaneseq
    %v5140 = vshrl.u32 %v5139, 7
    %v5141 = vsub.s32 %v5138, %v5140
    %v5142 = vrot.slane %v5114, %v5141
    %v5143 = vcombine.low %v5121, %v5128
    %v5144 = vcombine.low %v5135, %v5142
    %v5146 = vunpack.c.l.s4 1966171168
    %v5147 = vunpack.c.0.s8 %v5146
    %v5148 = vlaneseq
    %v5149 = vshrl.u32 %v5148, 7
    %v5150 = vsub.s32 %v5147, %v5149
    %v5151 = vrot.slane %v5143, %v5150
    %v5153 = vunpack.c.l.s4 1966171168
    %v5154 = vunpack.c.0.s8 %v5153
    %v5155 = vlaneseq
    %v5156 = vshrl.u32 %v5155, 7
    %v5157 = vsub.s32 %v5154, %v5156
    %v5158 = vrot.slane %v5144, %v5157
    %v5159 = vcombine.low %v5151, %v5158
    %v5160 = vcombine.low %v2486, %v2490
    %v5161 = vcombine.low %v2494, %v2498
    %v5162 = vcombine.low %v2502, %v2506
    %v5163 = vcombine.low %v2510, %v2514
    %v5165 = vunpack.c.l.s4 1966171168
    %v5166 = vunpack.c.0.s8 %v5165
    %v5167 = vlaneseq
    %v5168 = vshrl.u32 %v5167, 7
    %v5169 = vsub.s32 %v5166, %v5168
    %v5170 = vrot.slane %v5160, %v5169
    %v5172 = vunpack.c.l.s4 1966171168
    %v5173 = vunpack.c.0.s8 %v5172
    %v5174 = vlaneseq
    %v5175 = vshrl.u32 %v5174, 7
    %v5176 = vsub.s32 %v5173, %v5175
    %v5177 = vrot.slane %v5161, %v5176
    %v5179 = vunpack.c.l.s4 1966171168
    %v5180 = vunpack.c.0.s8 %v5179
    %v5181 = vlaneseq
    %v5182 = vshrl.u32 %v5181, 7
    %v5183 = vsub.s32 %v5180, %v5182
    %v5184 = vrot.slane %v5162, %v5183
    %v5186 = vunpack.c.l.s4 1966171168
    %v5187 = vunpack.c.0.s8 %v5186
    %v5188 = vlaneseq
    %v5189 = vshrl.u32 %v5188, 7
    %v5190 = vsub.s32 %v5187, %v5189
    %v5191 = vrot.slane %v5163, %v5190
    %v5192 = vcombine.low %v5170, %v5177
    %v5193 = vcombine.low %v5184, %v5191
    %v5195 = vunpack.c.l.s4 1966171168
    %v5196 = vunpack.c.0.s8 %v5195
    %v5197 = vlaneseq
    %v5198 = vshrl.u32 %v5197, 7
    %v5199 = vsub.s32 %v5196, %v5198
    %v5200 = vrot.slane %v5192, %v5199
    %v5202 = vunpack.c.l.s4 1966171168
    %v5203 = vunpack.c.0.s8 %v5202
    %v5204 = vlaneseq
    %v5205 = vshrl.u32 %v5204, 7
    %v5206 = vsub.s32 %v5203, %v5205
    %v5207 = vrot.slane %v5193, %v5206
    %v5208 = vcombine.low %v5200, %v5207
    %v5209 = vcombine.low %v2518, %v2522
    %v5210 = vcombine.low %v2526, %v2530
    %v5211 = vcombine.low %v2534, %v2538
    %v5212 = vcombine.low %v2542, %v2546
    %v5214 = vunpack.c.l.s4 1966171168
    %v5215 = vunpack.c.0.s8 %v5214
    %v5216 = vlaneseq
    %v5217 = vshrl.u32 %v5216, 7
    %v5218 = vsub.s32 %v5215, %v5217
    %v5219 = vrot.slane %v5209, %v5218
    %v5221 = vunpack.c.l.s4 1966171168
    %v5222 = vunpack.c.0.s8 %v5221
    %v5223 = vlaneseq
    %v5224 = vshrl.u32 %v5223, 7
    %v5225 = vsub.s32 %v5222, %v5224
    %v5226 = vrot.slane %v5210, %v5225
    %v5228 = vunpack.c.l.s4 1966171168
    %v5229 = vunpack.c.0.s8 %v5228
    %v5230 = vlaneseq
    %v5231 = vshrl.u32 %v5230, 7
    %v5232 = vsub.s32 %v5229, %v5231
    %v5233 = vrot.slane %v5211, %v5232
    %v5235 = vunpack.c.l.s4 1966171168
    %v5236 = vunpack.c.0.s8 %v5235
    %v5237 = vlaneseq
    %v5238 = vshrl.u32 %v5237, 7
    %v5239 = vsub.s32 %v5236, %v5238
    %v5240 = vrot.slane %v5212, %v5239
    %v5241 = vcombine.low %v5219, %v5226
    %v5242 = vcombine.low %v5233, %v5240
    %v5244 = vunpack.c.l.s4 1966171168
    %v5245 = vunpack.c.0.s8 %v5244
    %v5246 = vlaneseq
    %v5247 = vshrl.u32 %v5246, 7
    %v5248 = vsub.s32 %v5245, %v5247
    %v5249 = vrot.slane %v5241, %v5248
    %v5251 = vunpack.c.l.s4 1966171168
    %v5252 = vunpack.c.0.s8 %v5251
    %v5253 = vlaneseq
    %v5254 = vshrl.u32 %v5253, 7
    %v5255 = vsub.s32 %v5252, %v5254
    %v5256 = vrot.slane %v5242, %v5255
    %v5257 = vcombine.low %v5249, %v5256
    %v5258 = vcombine.low %v2550, %v2554
    %v5259 = vcombine.low %v2558, %v2562
    %v5260 = vcombine.low %v2566, %v2570
    %v5261 = vcombine.low %v2574, %v2578
    %v5263 = vunpack.c.l.s4 1966171168
    %v5264 = vunpack.c.0.s8 %v5263
    %v5265 = vlaneseq
    %v5266 = vshrl.u32 %v5265, 7
    %v5267 = vsub.s32 %v5264, %v5266
    %v5268 = vrot.slane %v5258, %v5267
    %v5270 = vunpack.c.l.s4 1966171168
    %v5271 = vunpack.c.0.s8 %v5270
    %v5272 = vlaneseq
    %v5273 = vshrl.u32 %v5272, 7
    %v5274 = vsub.s32 %v5271, %v5273
    %v5275 = vrot.slane %v5259, %v5274
    %v5277 = vunpack.c.l.s4 1966171168
    %v5278 = vunpack.c.0.s8 %v5277
    %v5279 = vlaneseq
    %v5280 = vshrl.u32 %v5279, 7
    %v5281 = vsub.s32 %v5278, %v5280
    %v5282 = vrot.slane %v5260, %v5281
    %v5284 = vunpack.c.l.s4 1966171168
    %v5285 = vunpack.c.0.s8 %v5284
    %v5286 = vlaneseq
    %v5287 = vshrl.u32 %v5286, 7
    %v5288 = vsub.s32 %v5285, %v5287
    %v5289 = vrot.slane %v5261, %v5288
    %v5290 = vcombine.low %v5268, %v5275
    %v5291 = vcombine.low %v5282, %v5289
    %v5293 = vunpack.c.l.s4 1966171168
    %v5294 = vunpack.c.0.s8 %v5293
    %v5295 = vlaneseq
    %v5296 = vshrl.u32 %v5295, 7
    %v5297 = vsub.s32 %v5294, %v5296
    %v5298 = vrot.slane %v5290, %v5297
    %v5300 = vunpack.c.l.s4 1966171168
    %v5301 = vunpack.c.0.s8 %v5300
    %v5302 = vlaneseq
    %v5303 = vshrl.u32 %v5302, 7
    %v5304 = vsub.s32 %v5301, %v5303
    %v5305 = vrot.slane %v5291, %v5304
    %v5306 = vcombine.low %v5298, %v5305
    %v5307 = vcombine.low %v2582, %v2586
    %v5308 = vcombine.low %v2590, %v2594
    %v5309 = vcombine.low %v2598, %v2602
    %v5310 = vcombine.low %v2606, %v2610
    %v5312 = vunpack.c.l.s4 1966171168
    %v5313 = vunpack.c.0.s8 %v5312
    %v5314 = vlaneseq
    %v5315 = vshrl.u32 %v5314, 7
    %v5316 = vsub.s32 %v5313, %v5315
    %v5317 = vrot.slane %v5307, %v5316
    %v5319 = vunpack.c.l.s4 1966171168
    %v5320 = vunpack.c.0.s8 %v5319
    %v5321 = vlaneseq
    %v5322 = vshrl.u32 %v5321, 7
    %v5323 = vsub.s32 %v5320, %v5322
    %v5324 = vrot.slane %v5308, %v5323
    %v5326 = vunpack.c.l.s4 1966171168
    %v5327 = vunpack.c.0.s8 %v5326
    %v5328 = vlaneseq
    %v5329 = vshrl.u32 %v5328, 7
    %v5330 = vsub.s32 %v5327, %v5329
    %v5331 = vrot.slane %v5309, %v5330
    %v5333 = vunpack.c.l.s4 1966171168
    %v5334 = vunpack.c.0.s8 %v5333
    %v5335 = vlaneseq
    %v5336 = vshrl.u32 %v5335, 7
    %v5337 = vsub.s32 %v5334, %v5336
    %v5338 = vrot.slane %v5310, %v5337
    %v5339 = vcombine.low %v5317, %v5324
    %v5340 = vcombine.low %v5331, %v5338
    %v5342 = vunpack.c.l.s4 1966171168
    %v5343 = vunpack.c.0.s8 %v5342
    %v5344 = vlaneseq
    %v5345 = vshrl.u32 %v5344, 7
    %v5346 = vsub.s32 %v5343, %v5345
    %v5347 = vrot.slane %v5339, %v5346
    %v5349 = vunpack.c.l.s4 1966171168
    %v5350 = vunpack.c.0.s8 %v5349
    %v5351 = vlaneseq
    %v5352 = vshrl.u32 %v5351, 7
    %v5353 = vsub.s32 %v5350, %v5352
    %v5354 = vrot.slane %v5340, %v5353
    %v5355 = vcombine.low %v5347, %v5354
    %v5356 = vcombine.low %v2614, %v2618
    %v5357 = vcombine.low %v2622, %v2626
    %v5358 = vcombine.low %v2630, %v2634
    %v5359 = vcombine.low %v2638, %v2642
    %v5361 = vunpack.c.l.s4 1966171168
    %v5362 = vunpack.c.0.s8 %v5361
    %v5363 = vlaneseq
    %v5364 = vshrl.u32 %v5363, 7
    %v5365 = vsub.s32 %v5362, %v5364
    %v5366 = vrot.slane %v5356, %v5365
    %v5368 = vunpack.c.l.s4 1966171168
    %v5369 = vunpack.c.0.s8 %v5368
    %v5370 = vlaneseq
    %v5371 = vshrl.u32 %v5370, 7
    %v5372 = vsub.s32 %v5369, %v5371
    %v5373 = vrot.slane %v5357, %v5372
    %v5375 = vunpack.c.l.s4 1966171168
    %v5376 = vunpack.c.0.s8 %v5375
    %v5377 = vlaneseq
    %v5378 = vshrl.u32 %v5377, 7
    %v5379 = vsub.s32 %v5376, %v5378
    %v5380 = vrot.slane %v5358, %v5379
    %v5382 = vunpack.c.l.s4 1966171168
    %v5383 = vunpack.c.0.s8 %v5382
    %v5384 = vlaneseq
    %v5385 = vshrl.u32 %v5384, 7
    %v5386 = vsub.s32 %v5383, %v5385
    %v5387 = vrot.slane %v5359, %v5386
    %v5388 = vcombine.low %v5366, %v5373
    %v5389 = vcombine.low %v5380, %v5387
    %v5391 = vunpack.c.l.s4 1966171168
    %v5392 = vunpack.c.0.s8 %v5391
    %v5393 = vlaneseq
    %v5394 = vshrl.u32 %v5393, 7
    %v5395 = vsub.s32 %v5392, %v5394
    %v5396 = vrot.slane %v5388, %v5395
    %v5398 = vunpack.c.l.s4 1966171168
    %v5399 = vunpack.c.0.s8 %v5398
    %v5400 = vlaneseq
    %v5401 = vshrl.u32 %v5400, 7
    %v5402 = vsub.s32 %v5399, %v5401
    %v5403 = vrot.slane %v5389, %v5402
    %v5404 = vcombine.low %v5396, %v5403
    %v5405 = vcombine.low %v2646, %v2650
    %v5406 = vcombine.low %v2654, %v2658
    %v5407 = vcombine.low %v2662, %v2666
    %v5408 = vcombine.low %v2670, %v2674
    %v5410 = vunpack.c.l.s4 1966171168
    %v5411 = vunpack.c.0.s8 %v5410
    %v5412 = vlaneseq
    %v5413 = vshrl.u32 %v5412, 7
    %v5414 = vsub.s32 %v5411, %v5413
    %v5415 = vrot.slane %v5405, %v5414
    %v5417 = vunpack.c.l.s4 1966171168
    %v5418 = vunpack.c.0.s8 %v5417
    %v5419 = vlaneseq
    %v5420 = vshrl.u32 %v5419, 7
    %v5421 = vsub.s32 %v5418, %v5420
    %v5422 = vrot.slane %v5406, %v5421
    %v5424 = vunpack.c.l.s4 1966171168
    %v5425 = vunpack.c.0.s8 %v5424
    %v5426 = vlaneseq
    %v5427 = vshrl.u32 %v5426, 7
    %v5428 = vsub.s32 %v5425, %v5427
    %v5429 = vrot.slane %v5407, %v5428
    %v5431 = vunpack.c.l.s4 1966171168
    %v5432 = vunpack.c.0.s8 %v5431
    %v5433 = vlaneseq
    %v5434 = vshrl.u32 %v5433, 7
    %v5435 = vsub.s32 %v5432, %v5434
    %v5436 = vrot.slane %v5408, %v5435
    %v5437 = vcombine.low %v5415, %v5422
    %v5438 = vcombine.low %v5429, %v5436
    %v5440 = vunpack.c.l.s4 1966171168
    %v5441 = vunpack.c.0.s8 %v5440
    %v5442 = vlaneseq
    %v5443 = vshrl.u32 %v5442, 7
    %v5444 = vsub.s32 %v5441, %v5443
    %v5445 = vrot.slane %v5437, %v5444
    %v5447 = vunpack.c.l.s4 1966171168
    %v5448 = vunpack.c.0.s8 %v5447
    %v5449 = vlaneseq
    %v5450 = vshrl.u32 %v5449, 7
    %v5451 = vsub.s32 %v5448, %v5450
    %v5452 = vrot.slane %v5438, %v5451
    %v5453 = vcombine.low %v5445, %v5452
    %v5454 = vcombine.low %v2678, %v2682
    %v5455 = vcombine.low %v2686, %v2690
    %v5456 = vcombine.low %v2694, %v2698
    %v5457 = vcombine.low %v2702, %v2706
    %v5459 = vunpack.c.l.s4 1966171168
    %v5460 = vunpack.c.0.s8 %v5459
    %v5461 = vlaneseq
    %v5462 = vshrl.u32 %v5461, 7
    %v5463 = vsub.s32 %v5460, %v5462
    %v5464 = vrot.slane %v5454, %v5463
    %v5466 = vunpack.c.l.s4 1966171168
    %v5467 = vunpack.c.0.s8 %v5466
    %v5468 = vlaneseq
    %v5469 = vshrl.u32 %v5468, 7
    %v5470 = vsub.s32 %v5467, %v5469
    %v5471 = vrot.slane %v5455, %v5470
    %v5473 = vunpack.c.l.s4 1966171168
    %v5474 = vunpack.c.0.s8 %v5473
    %v5475 = vlaneseq
    %v5476 = vshrl.u32 %v5475, 7
    %v5477 = vsub.s32 %v5474, %v5476
    %v5478 = vrot.slane %v5456, %v5477
    %v5480 = vunpack.c.l.s4 1966171168
    %v5481 = vunpack.c.0.s8 %v5480
    %v5482 = vlaneseq
    %v5483 = vshrl.u32 %v5482, 7
    %v5484 = vsub.s32 %v5481, %v5483
    %v5485 = vrot.slane %v5457, %v5484
    %v5486 = vcombine.low %v5464, %v5471
    %v5487 = vcombine.low %v5478, %v5485
    %v5489 = vunpack.c.l.s4 1966171168
    %v5490 = vunpack.c.0.s8 %v5489
    %v5491 = vlaneseq
    %v5492 = vshrl.u32 %v5491, 7
    %v5493 = vsub.s32 %v5490, %v5492
    %v5494 = vrot.slane %v5486, %v5493
    %v5496 = vunpack.c.l.s4 1966171168
    %v5497 = vunpack.c.0.s8 %v5496
    %v5498 = vlaneseq
    %v5499 = vshrl.u32 %v5498, 7
    %v5500 = vsub.s32 %v5497, %v5499
    %v5501 = vrot.slane %v5487, %v5500
    %v5502 = vcombine.low %v5494, %v5501
    %v5503 = vcombine.low %v2710, %v2714
    %v5504 = vcombine.low %v2718, %v2722
    %v5505 = vcombine.low %v2726, %v2730
    %v5506 = vcombine.low %v2734, %v2738
    %v5508 = vunpack.c.l.s4 1966171168
    %v5509 = vunpack.c.0.s8 %v5508
    %v5510 = vlaneseq
    %v5511 = vshrl.u32 %v5510, 7
    %v5512 = vsub.s32 %v5509, %v5511
    %v5513 = vrot.slane %v5503, %v5512
    %v5515 = vunpack.c.l.s4 1966171168
    %v5516 = vunpack.c.0.s8 %v5515
    %v5517 = vlaneseq
    %v5518 = vshrl.u32 %v5517, 7
    %v5519 = vsub.s32 %v5516, %v5518
    %v5520 = vrot.slane %v5504, %v5519
    %v5522 = vunpack.c.l.s4 1966171168
    %v5523 = vunpack.c.0.s8 %v5522
    %v5524 = vlaneseq
    %v5525 = vshrl.u32 %v5524, 7
    %v5526 = vsub.s32 %v5523, %v5525
    %v5527 = vrot.slane %v5505, %v5526
    %v5529 = vunpack.c.l.s4 1966171168
    %v5530 = vunpack.c.0.s8 %v5529
    %v5531 = vlaneseq
    %v5532 = vshrl.u32 %v5531, 7
    %v5533 = vsub.s32 %v5530, %v5532
    %v5534 = vrot.slane %v5506, %v5533
    %v5535 = vcombine.low %v5513, %v5520
    %v5536 = vcombine.low %v5527, %v5534
    %v5538 = vunpack.c.l.s4 1966171168
    %v5539 = vunpack.c.0.s8 %v5538
    %v5540 = vlaneseq
    %v5541 = vshrl.u32 %v5540, 7
    %v5542 = vsub.s32 %v5539, %v5541
    %v5543 = vrot.slane %v5535, %v5542
    %v5545 = vunpack.c.l.s4 1966171168
    %v5546 = vunpack.c.0.s8 %v5545
    %v5547 = vlaneseq
    %v5548 = vshrl.u32 %v5547, 7
    %v5549 = vsub.s32 %v5546, %v5548
    %v5550 = vrot.slane %v5536, %v5549
    %v5551 = vcombine.low %v5543, %v5550
    %v5552 = vcombine.low %v2742, %v2746
    %v5553 = vcombine.low %v2750, %v2754
    %v5554 = vcombine.low %v2758, %v2762
    %v5555 = vcombine.low %v2766, %v2770
    %v5557 = vunpack.c.l.s4 1966171168
    %v5558 = vunpack.c.0.s8 %v5557
    %v5559 = vlaneseq
    %v5560 = vshrl.u32 %v5559, 7
    %v5561 = vsub.s32 %v5558, %v5560
    %v5562 = vrot.slane %v5552, %v5561
    %v5564 = vunpack.c.l.s4 1966171168
    %v5565 = vunpack.c.0.s8 %v5564
    %v5566 = vlaneseq
    %v5567 = vshrl.u32 %v5566, 7
    %v5568 = vsub.s32 %v5565, %v5567
    %v5569 = vrot.slane %v5553, %v5568
    %v5571 = vunpack.c.l.s4 1966171168
    %v5572 = vunpack.c.0.s8 %v5571
    %v5573 = vlaneseq
    %v5574 = vshrl.u32 %v5573, 7
    %v5575 = vsub.s32 %v5572, %v5574
    %v5576 = vrot.slane %v5554, %v5575
    %v5578 = vunpack.c.l.s4 1966171168
    %v5579 = vunpack.c.0.s8 %v5578
    %v5580 = vlaneseq
    %v5581 = vshrl.u32 %v5580, 7
    %v5582 = vsub.s32 %v5579, %v5581
    %v5583 = vrot.slane %v5555, %v5582
    %v5584 = vcombine.low %v5562, %v5569
    %v5585 = vcombine.low %v5576, %v5583
    %v5587 = vunpack.c.l.s4 1966171168
    %v5588 = vunpack.c.0.s8 %v5587
    %v5589 = vlaneseq
    %v5590 = vshrl.u32 %v5589, 7
    %v5591 = vsub.s32 %v5588, %v5590
    %v5592 = vrot.slane %v5584, %v5591
    %v5594 = vunpack.c.l.s4 1966171168
    %v5595 = vunpack.c.0.s8 %v5594
    %v5596 = vlaneseq
    %v5597 = vshrl.u32 %v5596, 7
    %v5598 = vsub.s32 %v5595, %v5597
    %v5599 = vrot.slane %v5585, %v5598
    %v5600 = vcombine.low %v5592, %v5599
    %v5601 = vcombine.low %v2774, %v2778
    %v5602 = vcombine.low %v2782, %v2786
    %v5603 = vcombine.low %v2790, %v2794
    %v5604 = vcombine.low %v2798, %v2802
    %v5606 = vunpack.c.l.s4 1966171168
    %v5607 = vunpack.c.0.s8 %v5606
    %v5608 = vlaneseq
    %v5609 = vshrl.u32 %v5608, 7
    %v5610 = vsub.s32 %v5607, %v5609
    %v5611 = vrot.slane %v5601, %v5610
    %v5613 = vunpack.c.l.s4 1966171168
    %v5614 = vunpack.c.0.s8 %v5613
    %v5615 = vlaneseq
    %v5616 = vshrl.u32 %v5615, 7
    %v5617 = vsub.s32 %v5614, %v5616
    %v5618 = vrot.slane %v5602, %v5617
    %v5620 = vunpack.c.l.s4 1966171168
    %v5621 = vunpack.c.0.s8 %v5620
    %v5622 = vlaneseq
    %v5623 = vshrl.u32 %v5622, 7
    %v5624 = vsub.s32 %v5621, %v5623
    %v5625 = vrot.slane %v5603, %v5624
    %v5627 = vunpack.c.l.s4 1966171168
    %v5628 = vunpack.c.0.s8 %v5627
    %v5629 = vlaneseq
    %v5630 = vshrl.u32 %v5629, 7
    %v5631 = vsub.s32 %v5628, %v5630
    %v5632 = vrot.slane %v5604, %v5631
    %v5633 = vcombine.low %v5611, %v5618
    %v5634 = vcombine.low %v5625, %v5632
    %v5636 = vunpack.c.l.s4 1966171168
    %v5637 = vunpack.c.0.s8 %v5636
    %v5638 = vlaneseq
    %v5639 = vshrl.u32 %v5638, 7
    %v5640 = vsub.s32 %v5637, %v5639
    %v5641 = vrot.slane %v5633, %v5640
    %v5643 = vunpack.c.l.s4 1966171168
    %v5644 = vunpack.c.0.s8 %v5643
    %v5645 = vlaneseq
    %v5646 = vshrl.u32 %v5645, 7
    %v5647 = vsub.s32 %v5644, %v5646
    %v5648 = vrot.slane %v5634, %v5647
    %v5649 = vcombine.low %v5641, %v5648
    %v5650 = vcombine.low %v2806, %v2810
    %v5651 = vcombine.low %v2814, %v2818
    %v5652 = vcombine.low %v2822, %v2826
    %v5653 = vcombine.low %v2830, %v2834
    %v5655 = vunpack.c.l.s4 1966171168
    %v5656 = vunpack.c.0.s8 %v5655
    %v5657 = vlaneseq
    %v5658 = vshrl.u32 %v5657, 7
    %v5659 = vsub.s32 %v5656, %v5658
    %v5660 = vrot.slane %v5650, %v5659
    %v5662 = vunpack.c.l.s4 1966171168
    %v5663 = vunpack.c.0.s8 %v5662
    %v5664 = vlaneseq
    %v5665 = vshrl.u32 %v5664, 7
    %v5666 = vsub.s32 %v5663, %v5665
    %v5667 = vrot.slane %v5651, %v5666
    %v5669 = vunpack.c.l.s4 1966171168
    %v5670 = vunpack.c.0.s8 %v5669
    %v5671 = vlaneseq
    %v5672 = vshrl.u32 %v5671, 7
    %v5673 = vsub.s32 %v5670, %v5672
    %v5674 = vrot.slane %v5652, %v5673
    %v5676 = vunpack.c.l.s4 1966171168
    %v5677 = vunpack.c.0.s8 %v5676
    %v5678 = vlaneseq
    %v5679 = vshrl.u32 %v5678, 7
    %v5680 = vsub.s32 %v5677, %v5679
    %v5681 = vrot.slane %v5653, %v5680
    %v5682 = vcombine.low %v5660, %v5667
    %v5683 = vcombine.low %v5674, %v5681
    %v5685 = vunpack.c.l.s4 1966171168
    %v5686 = vunpack.c.0.s8 %v5685
    %v5687 = vlaneseq
    %v5688 = vshrl.u32 %v5687, 7
    %v5689 = vsub.s32 %v5686, %v5688
    %v5690 = vrot.slane %v5682, %v5689
    %v5692 = vunpack.c.l.s4 1966171168
    %v5693 = vunpack.c.0.s8 %v5692
    %v5694 = vlaneseq
    %v5695 = vshrl.u32 %v5694, 7
    %v5696 = vsub.s32 %v5693, %v5695
    %v5697 = vrot.slane %v5683, %v5696
    %v5698 = vcombine.low %v5690, %v5697
    %v5699 = vcombine.low %v2838, %v2842
    %v5700 = vcombine.low %v2846, %v2850
    %v5701 = vcombine.low %v2854, %v2858
    %v5702 = vcombine.low %v2862, %v2866
    %v5704 = vunpack.c.l.s4 1966171168
    %v5705 = vunpack.c.0.s8 %v5704
    %v5706 = vlaneseq
    %v5707 = vshrl.u32 %v5706, 7
    %v5708 = vsub.s32 %v5705, %v5707
    %v5709 = vrot.slane %v5699, %v5708
    %v5711 = vunpack.c.l.s4 1966171168
    %v5712 = vunpack.c.0.s8 %v5711
    %v5713 = vlaneseq
    %v5714 = vshrl.u32 %v5713, 7
    %v5715 = vsub.s32 %v5712, %v5714
    %v5716 = vrot.slane %v5700, %v5715
    %v5718 = vunpack.c.l.s4 1966171168
    %v5719 = vunpack.c.0.s8 %v5718
    %v5720 = vlaneseq
    %v5721 = vshrl.u32 %v5720, 7
    %v5722 = vsub.s32 %v5719, %v5721
    %v5723 = vrot.slane %v5701, %v5722
    %v5725 = vunpack.c.l.s4 1966171168
    %v5726 = vunpack.c.0.s8 %v5725
    %v5727 = vlaneseq
    %v5728 = vshrl.u32 %v5727, 7
    %v5729 = vsub.s32 %v5726, %v5728
    %v5730 = vrot.slane %v5702, %v5729
    %v5731 = vcombine.low %v5709, %v5716
    %v5732 = vcombine.low %v5723, %v5730
    %v5734 = vunpack.c.l.s4 1966171168
    %v5735 = vunpack.c.0.s8 %v5734
    %v5736 = vlaneseq
    %v5737 = vshrl.u32 %v5736, 7
    %v5738 = vsub.s32 %v5735, %v5737
    %v5739 = vrot.slane %v5731, %v5738
    %v5741 = vunpack.c.l.s4 1966171168
    %v5742 = vunpack.c.0.s8 %v5741
    %v5743 = vlaneseq
    %v5744 = vshrl.u32 %v5743, 7
    %v5745 = vsub.s32 %v5742, %v5744
    %v5746 = vrot.slane %v5732, %v5745
    %v5747 = vcombine.low %v5739, %v5746
    %v5748 = vcombine.low %v2870, %v2874
    %v5749 = vcombine.low %v2878, %v2882
    %v5750 = vcombine.low %v2886, %v2890
    %v5751 = vcombine.low %v2894, %v2898
    %v5753 = vunpack.c.l.s4 1966171168
    %v5754 = vunpack.c.0.s8 %v5753
    %v5755 = vlaneseq
    %v5756 = vshrl.u32 %v5755, 7
    %v5757 = vsub.s32 %v5754, %v5756
    %v5758 = vrot.slane %v5748, %v5757
    %v5760 = vunpack.c.l.s4 1966171168
    %v5761 = vunpack.c.0.s8 %v5760
    %v5762 = vlaneseq
    %v5763 = vshrl.u32 %v5762, 7
    %v5764 = vsub.s32 %v5761, %v5763
    %v5765 = vrot.slane %v5749, %v5764
    %v5767 = vunpack.c.l.s4 1966171168
    %v5768 = vunpack.c.0.s8 %v5767
    %v5769 = vlaneseq
    %v5770 = vshrl.u32 %v5769, 7
    %v5771 = vsub.s32 %v5768, %v5770
    %v5772 = vrot.slane %v5750, %v5771
    %v5774 = vunpack.c.l.s4 1966171168
    %v5775 = vunpack.c.0.s8 %v5774
    %v5776 = vlaneseq
    %v5777 = vshrl.u32 %v5776, 7
    %v5778 = vsub.s32 %v5775, %v5777
    %v5779 = vrot.slane %v5751, %v5778
    %v5780 = vcombine.low %v5758, %v5765
    %v5781 = vcombine.low %v5772, %v5779
    %v5783 = vunpack.c.l.s4 1966171168
    %v5784 = vunpack.c.0.s8 %v5783
    %v5785 = vlaneseq
    %v5786 = vshrl.u32 %v5785, 7
    %v5787 = vsub.s32 %v5784, %v5786
    %v5788 = vrot.slane %v5780, %v5787
    %v5790 = vunpack.c.l.s4 1966171168
    %v5791 = vunpack.c.0.s8 %v5790
    %v5792 = vlaneseq
    %v5793 = vshrl.u32 %v5792, 7
    %v5794 = vsub.s32 %v5791, %v5793
    %v5795 = vrot.slane %v5781, %v5794
    %v5796 = vcombine.low %v5788, %v5795
    %v5797 = vcombine.low %v2902, %v2906
    %v5798 = vcombine.low %v2910, %v2914
    %v5799 = vcombine.low %v2918, %v2922
    %v5800 = vcombine.low %v2926, %v2930
    %v5802 = vunpack.c.l.s4 1966171168
    %v5803 = vunpack.c.0.s8 %v5802
    %v5804 = vlaneseq
    %v5805 = vshrl.u32 %v5804, 7
    %v5806 = vsub.s32 %v5803, %v5805
    %v5807 = vrot.slane %v5797, %v5806
    %v5809 = vunpack.c.l.s4 1966171168
    %v5810 = vunpack.c.0.s8 %v5809
    %v5811 = vlaneseq
    %v5812 = vshrl.u32 %v5811, 7
    %v5813 = vsub.s32 %v5810, %v5812
    %v5814 = vrot.slane %v5798, %v5813
    %v5816 = vunpack.c.l.s4 1966171168
    %v5817 = vunpack.c.0.s8 %v5816
    %v5818 = vlaneseq
    %v5819 = vshrl.u32 %v5818, 7
    %v5820 = vsub.s32 %v5817, %v5819
    %v5821 = vrot.slane %v5799, %v5820
    %v5823 = vunpack.c.l.s4 1966171168
    %v5824 = vunpack.c.0.s8 %v5823
    %v5825 = vlaneseq
    %v5826 = vshrl.u32 %v5825, 7
    %v5827 = vsub.s32 %v5824, %v5826
    %v5828 = vrot.slane %v5800, %v5827
    %v5829 = vcombine.low %v5807, %v5814
    %v5830 = vcombine.low %v5821, %v5828
    %v5832 = vunpack.c.l.s4 1966171168
    %v5833 = vunpack.c.0.s8 %v5832
    %v5834 = vlaneseq
    %v5835 = vshrl.u32 %v5834, 7
    %v5836 = vsub.s32 %v5833, %v5835
    %v5837 = vrot.slane %v5829, %v5836
    %v5839 = vunpack.c.l.s4 1966171168
    %v5840 = vunpack.c.0.s8 %v5839
    %v5841 = vlaneseq
    %v5842 = vshrl.u32 %v5841, 7
    %v5843 = vsub.s32 %v5840, %v5842
    %v5844 = vrot.slane %v5830, %v5843
    %v5845 = vcombine.low %v5837, %v5844
    %v5846 = vcombine.low %v2934, %v2938
    %v5847 = vcombine.low %v2942, %v2946
    %v5848 = vcombine.low %v2950, %v2954
    %v5849 = vcombine.low %v2958, %v2962
    %v5851 = vunpack.c.l.s4 1966171168
    %v5852 = vunpack.c.0.s8 %v5851
    %v5853 = vlaneseq
    %v5854 = vshrl.u32 %v5853, 7
    %v5855 = vsub.s32 %v5852, %v5854
    %v5856 = vrot.slane %v5846, %v5855
    %v5858 = vunpack.c.l.s4 1966171168
    %v5859 = vunpack.c.0.s8 %v5858
    %v5860 = vlaneseq
    %v5861 = vshrl.u32 %v5860, 7
    %v5862 = vsub.s32 %v5859, %v5861
    %v5863 = vrot.slane %v5847, %v5862
    %v5865 = vunpack.c.l.s4 1966171168
    %v5866 = vunpack.c.0.s8 %v5865
    %v5867 = vlaneseq
    %v5868 = vshrl.u32 %v5867, 7
    %v5869 = vsub.s32 %v5866, %v5868
    %v5870 = vrot.slane %v5848, %v5869
    %v5872 = vunpack.c.l.s4 1966171168
    %v5873 = vunpack.c.0.s8 %v5872
    %v5874 = vlaneseq
    %v5875 = vshrl.u32 %v5874, 7
    %v5876 = vsub.s32 %v5873, %v5875
    %v5877 = vrot.slane %v5849, %v5876
    %v5878 = vcombine.low %v5856, %v5863
    %v5879 = vcombine.low %v5870, %v5877
    %v5881 = vunpack.c.l.s4 1966171168
    %v5882 = vunpack.c.0.s8 %v5881
    %v5883 = vlaneseq
    %v5884 = vshrl.u32 %v5883, 7
    %v5885 = vsub.s32 %v5882, %v5884
    %v5886 = vrot.slane %v5878, %v5885
    %v5888 = vunpack.c.l.s4 1966171168
    %v5889 = vunpack.c.0.s8 %v5888
    %v5890 = vlaneseq
    %v5891 = vshrl.u32 %v5890, 7
    %v5892 = vsub.s32 %v5889, %v5891
    %v5893 = vrot.slane %v5879, %v5892
    %v5894 = vcombine.low %v5886, %v5893
    %v5895 = vcombine.low %v2966, %v2970
    %v5896 = vcombine.low %v2974, %v2978
    %v5897 = vcombine.low %v2982, %v2986
    %v5898 = vcombine.low %v2990, %v2994
    %v5900 = vunpack.c.l.s4 1966171168
    %v5901 = vunpack.c.0.s8 %v5900
    %v5902 = vlaneseq
    %v5903 = vshrl.u32 %v5902, 7
    %v5904 = vsub.s32 %v5901, %v5903
    %v5905 = vrot.slane %v5895, %v5904
    %v5907 = vunpack.c.l.s4 1966171168
    %v5908 = vunpack.c.0.s8 %v5907
    %v5909 = vlaneseq
    %v5910 = vshrl.u32 %v5909, 7
    %v5911 = vsub.s32 %v5908, %v5910
    %v5912 = vrot.slane %v5896, %v5911
    %v5914 = vunpack.c.l.s4 1966171168
    %v5915 = vunpack.c.0.s8 %v5914
    %v5916 = vlaneseq
    %v5917 = vshrl.u32 %v5916, 7
    %v5918 = vsub.s32 %v5915, %v5917
    %v5919 = vrot.slane %v5897, %v5918
    %v5921 = vunpack.c.l.s4 1966171168
    %v5922 = vunpack.c.0.s8 %v5921
    %v5923 = vlaneseq
    %v5924 = vshrl.u32 %v5923, 7
    %v5925 = vsub.s32 %v5922, %v5924
    %v5926 = vrot.slane %v5898, %v5925
    %v5927 = vcombine.low %v5905, %v5912
    %v5928 = vcombine.low %v5919, %v5926
    %v5930 = vunpack.c.l.s4 1966171168
    %v5931 = vunpack.c.0.s8 %v5930
    %v5932 = vlaneseq
    %v5933 = vshrl.u32 %v5932, 7
    %v5934 = vsub.s32 %v5931, %v5933
    %v5935 = vrot.slane %v5927, %v5934
    %v5937 = vunpack.c.l.s4 1966171168
    %v5938 = vunpack.c.0.s8 %v5937
    %v5939 = vlaneseq
    %v5940 = vshrl.u32 %v5939, 7
    %v5941 = vsub.s32 %v5938, %v5940
    %v5942 = vrot.slane %v5928, %v5941
    %v5943 = vcombine.low %v5935, %v5942
    %v5944 = vcombine.low %v2998, %v3002
    %v5945 = vcombine.low %v3006, %v3010
    %v5946 = vcombine.low %v3014, %v3018
    %v5947 = vcombine.low %v3022, %v3026
    %v5949 = vunpack.c.l.s4 1966171168
    %v5950 = vunpack.c.0.s8 %v5949
    %v5951 = vlaneseq
    %v5952 = vshrl.u32 %v5951, 7
    %v5953 = vsub.s32 %v5950, %v5952
    %v5954 = vrot.slane %v5944, %v5953
    %v5956 = vunpack.c.l.s4 1966171168
    %v5957 = vunpack.c.0.s8 %v5956
    %v5958 = vlaneseq
    %v5959 = vshrl.u32 %v5958, 7
    %v5960 = vsub.s32 %v5957, %v5959
    %v5961 = vrot.slane %v5945, %v5960
    %v5963 = vunpack.c.l.s4 1966171168
    %v5964 = vunpack.c.0.s8 %v5963
    %v5965 = vlaneseq
    %v5966 = vshrl.u32 %v5965, 7
    %v5967 = vsub.s32 %v5964, %v5966
    %v5968 = vrot.slane %v5946, %v5967
    %v5970 = vunpack.c.l.s4 1966171168
    %v5971 = vunpack.c.0.s8 %v5970
    %v5972 = vlaneseq
    %v5973 = vshrl.u32 %v5972, 7
    %v5974 = vsub.s32 %v5971, %v5973
    %v5975 = vrot.slane %v5947, %v5974
    %v5976 = vcombine.low %v5954, %v5961
    %v5977 = vcombine.low %v5968, %v5975
    %v5979 = vunpack.c.l.s4 1966171168
    %v5980 = vunpack.c.0.s8 %v5979
    %v5981 = vlaneseq
    %v5982 = vshrl.u32 %v5981, 7
    %v5983 = vsub.s32 %v5980, %v5982
    %v5984 = vrot.slane %v5976, %v5983
    %v5986 = vunpack.c.l.s4 1966171168
    %v5987 = vunpack.c.0.s8 %v5986
    %v5988 = vlaneseq
    %v5989 = vshrl.u32 %v5988, 7
    %v5990 = vsub.s32 %v5987, %v5989
    %v5991 = vrot.slane %v5977, %v5990
    %v5992 = vcombine.low %v5984, %v5991
    %v5993 = vcombine.low %v3030, %v3034
    %v5994 = vcombine.low %v3038, %v3042
    %v5995 = vcombine.low %v3046, %v3050
    %v5996 = vcombine.low %v3054, %v3058
    %v5998 = vunpack.c.l.s4 1966171168
    %v5999 = vunpack.c.0.s8 %v5998
    %v6000 = vlaneseq
    %v6001 = vshrl.u32 %v6000, 7
    %v6002 = vsub.s32 %v5999, %v6001
    %v6003 = vrot.slane %v5993, %v6002
    %v6005 = vunpack.c.l.s4 1966171168
    %v6006 = vunpack.c.0.s8 %v6005
    %v6007 = vlaneseq
    %v6008 = vshrl.u32 %v6007, 7
    %v6009 = vsub.s32 %v6006, %v6008
    %v6010 = vrot.slane %v5994, %v6009
    %v6012 = vunpack.c.l.s4 1966171168
    %v6013 = vunpack.c.0.s8 %v6012
    %v6014 = vlaneseq
    %v6015 = vshrl.u32 %v6014, 7
    %v6016 = vsub.s32 %v6013, %v6015
    %v6017 = vrot.slane %v5995, %v6016
    %v6019 = vunpack.c.l.s4 1966171168
    %v6020 = vunpack.c.0.s8 %v6019
    %v6021 = vlaneseq
    %v6022 = vshrl.u32 %v6021, 7
    %v6023 = vsub.s32 %v6020, %v6022
    %v6024 = vrot.slane %v5996, %v6023
    %v6025 = vcombine.low %v6003, %v6010
    %v6026 = vcombine.low %v6017, %v6024
    %v6028 = vunpack.c.l.s4 1966171168
    %v6029 = vunpack.c.0.s8 %v6028
    %v6030 = vlaneseq
    %v6031 = vshrl.u32 %v6030, 7
    %v6032 = vsub.s32 %v6029, %v6031
    %v6033 = vrot.slane %v6025, %v6032
    %v6035 = vunpack.c.l.s4 1966171168
    %v6036 = vunpack.c.0.s8 %v6035
    %v6037 = vlaneseq
    %v6038 = vshrl.u32 %v6037, 7
    %v6039 = vsub.s32 %v6036, %v6038
    %v6040 = vrot.slane %v6026, %v6039
    %v6041 = vcombine.low %v6033, %v6040
    %v6042 = vcombine.low %v3062, %v3066
    %v6043 = vcombine.low %v3070, %v3074
    %v6044 = vcombine.low %v3078, %v3082
    %v6045 = vcombine.low %v3086, %v3090
    %v6047 = vunpack.c.l.s4 1966171168
    %v6048 = vunpack.c.0.s8 %v6047
    %v6049 = vlaneseq
    %v6050 = vshrl.u32 %v6049, 7
    %v6051 = vsub.s32 %v6048, %v6050
    %v6052 = vrot.slane %v6042, %v6051
    %v6054 = vunpack.c.l.s4 1966171168
    %v6055 = vunpack.c.0.s8 %v6054
    %v6056 = vlaneseq
    %v6057 = vshrl.u32 %v6056, 7
    %v6058 = vsub.s32 %v6055, %v6057
    %v6059 = vrot.slane %v6043, %v6058
    %v6061 = vunpack.c.l.s4 1966171168
    %v6062 = vunpack.c.0.s8 %v6061
    %v6063 = vlaneseq
    %v6064 = vshrl.u32 %v6063, 7
    %v6065 = vsub.s32 %v6062, %v6064
    %v6066 = vrot.slane %v6044, %v6065
    %v6068 = vunpack.c.l.s4 1966171168
    %v6069 = vunpack.c.0.s8 %v6068
    %v6070 = vlaneseq
    %v6071 = vshrl.u32 %v6070, 7
    %v6072 = vsub.s32 %v6069, %v6071
    %v6073 = vrot.slane %v6045, %v6072
    %v6074 = vcombine.low %v6052, %v6059
    %v6075 = vcombine.low %v6066, %v6073
    %v6077 = vunpack.c.l.s4 1966171168
    %v6078 = vunpack.c.0.s8 %v6077
    %v6079 = vlaneseq
    %v6080 = vshrl.u32 %v6079, 7
    %v6081 = vsub.s32 %v6078, %v6080
    %v6082 = vrot.slane %v6074, %v6081
    %v6084 = vunpack.c.l.s4 1966171168
    %v6085 = vunpack.c.0.s8 %v6084
    %v6086 = vlaneseq
    %v6087 = vshrl.u32 %v6086, 7
    %v6088 = vsub.s32 %v6085, %v6087
    %v6089 = vrot.slane %v6075, %v6088
    %v6090 = vcombine.low %v6082, %v6089
    %v6091 = vcombine.low %v3094, %v3098
    %v6092 = vcombine.low %v3102, %v3106
    %v6093 = vcombine.low %v3110, %v3114
    %v6094 = vcombine.low %v3118, %v3122
    %v6096 = vunpack.c.l.s4 1966171168
    %v6097 = vunpack.c.0.s8 %v6096
    %v6098 = vlaneseq
    %v6099 = vshrl.u32 %v6098, 7
    %v6100 = vsub.s32 %v6097, %v6099
    %v6101 = vrot.slane %v6091, %v6100
    %v6103 = vunpack.c.l.s4 1966171168
    %v6104 = vunpack.c.0.s8 %v6103
    %v6105 = vlaneseq
    %v6106 = vshrl.u32 %v6105, 7
    %v6107 = vsub.s32 %v6104, %v6106
    %v6108 = vrot.slane %v6092, %v6107
    %v6110 = vunpack.c.l.s4 1966171168
    %v6111 = vunpack.c.0.s8 %v6110
    %v6112 = vlaneseq
    %v6113 = vshrl.u32 %v6112, 7
    %v6114 = vsub.s32 %v6111, %v6113
    %v6115 = vrot.slane %v6093, %v6114
    %v6117 = vunpack.c.l.s4 1966171168
    %v6118 = vunpack.c.0.s8 %v6117
    %v6119 = vlaneseq
    %v6120 = vshrl.u32 %v6119, 7
    %v6121 = vsub.s32 %v6118, %v6120
    %v6122 = vrot.slane %v6094, %v6121
    %v6123 = vcombine.low %v6101, %v6108
    %v6124 = vcombine.low %v6115, %v6122
    %v6126 = vunpack.c.l.s4 1966171168
    %v6127 = vunpack.c.0.s8 %v6126
    %v6128 = vlaneseq
    %v6129 = vshrl.u32 %v6128, 7
    %v6130 = vsub.s32 %v6127, %v6129
    %v6131 = vrot.slane %v6123, %v6130
    %v6133 = vunpack.c.l.s4 1966171168
    %v6134 = vunpack.c.0.s8 %v6133
    %v6135 = vlaneseq
    %v6136 = vshrl.u32 %v6135, 7
    %v6137 = vsub.s32 %v6134, %v6136
    %v6138 = vrot.slane %v6124, %v6137
    %v6139 = vcombine.low %v6131, %v6138
    %v6140 = vcombine.low %v3126, %v3130
    %v6141 = vcombine.low %v3134, %v3138
    %v6142 = vcombine.low %v3142, %v3146
    %v6143 = vcombine.low %v3150, %v3154
    %v6145 = vunpack.c.l.s4 1966171168
    %v6146 = vunpack.c.0.s8 %v6145
    %v6147 = vlaneseq
    %v6148 = vshrl.u32 %v6147, 7
    %v6149 = vsub.s32 %v6146, %v6148
    %v6150 = vrot.slane %v6140, %v6149
    %v6152 = vunpack.c.l.s4 1966171168
    %v6153 = vunpack.c.0.s8 %v6152
    %v6154 = vlaneseq
    %v6155 = vshrl.u32 %v6154, 7
    %v6156 = vsub.s32 %v6153, %v6155
    %v6157 = vrot.slane %v6141, %v6156
    %v6159 = vunpack.c.l.s4 1966171168
    %v6160 = vunpack.c.0.s8 %v6159
    %v6161 = vlaneseq
    %v6162 = vshrl.u32 %v6161, 7
    %v6163 = vsub.s32 %v6160, %v6162
    %v6164 = vrot.slane %v6142, %v6163
    %v6166 = vunpack.c.l.s4 1966171168
    %v6167 = vunpack.c.0.s8 %v6166
    %v6168 = vlaneseq
    %v6169 = vshrl.u32 %v6168, 7
    %v6170 = vsub.s32 %v6167, %v6169
    %v6171 = vrot.slane %v6143, %v6170
    %v6172 = vcombine.low %v6150, %v6157
    %v6173 = vcombine.low %v6164, %v6171
    %v6175 = vunpack.c.l.s4 1966171168
    %v6176 = vunpack.c.0.s8 %v6175
    %v6177 = vlaneseq
    %v6178 = vshrl.u32 %v6177, 7
    %v6179 = vsub.s32 %v6176, %v6178
    %v6180 = vrot.slane %v6172, %v6179
    %v6182 = vunpack.c.l.s4 1966171168
    %v6183 = vunpack.c.0.s8 %v6182
    %v6184 = vlaneseq
    %v6185 = vshrl.u32 %v6184, 7
    %v6186 = vsub.s32 %v6183, %v6185
    %v6187 = vrot.slane %v6173, %v6186
    %v6188 = vcombine.low %v6180, %v6187
    %v6189 = vcombine.low %v3158, %v3162
    %v6190 = vcombine.low %v3166, %v3170
    %v6191 = vcombine.low %v3174, %v3178
    %v6192 = vcombine.low %v3182, %v3186
    %v6194 = vunpack.c.l.s4 1966171168
    %v6195 = vunpack.c.0.s8 %v6194
    %v6196 = vlaneseq
    %v6197 = vshrl.u32 %v6196, 7
    %v6198 = vsub.s32 %v6195, %v6197
    %v6199 = vrot.slane %v6189, %v6198
    %v6201 = vunpack.c.l.s4 1966171168
    %v6202 = vunpack.c.0.s8 %v6201
    %v6203 = vlaneseq
    %v6204 = vshrl.u32 %v6203, 7
    %v6205 = vsub.s32 %v6202, %v6204
    %v6206 = vrot.slane %v6190, %v6205
    %v6208 = vunpack.c.l.s4 1966171168
    %v6209 = vunpack.c.0.s8 %v6208
    %v6210 = vlaneseq
    %v6211 = vshrl.u32 %v6210, 7
    %v6212 = vsub.s32 %v6209, %v6211
    %v6213 = vrot.slane %v6191, %v6212
    %v6215 = vunpack.c.l.s4 1966171168
    %v6216 = vunpack.c.0.s8 %v6215
    %v6217 = vlaneseq
    %v6218 = vshrl.u32 %v6217, 7
    %v6219 = vsub.s32 %v6216, %v6218
    %v6220 = vrot.slane %v6192, %v6219
    %v6221 = vcombine.low %v6199, %v6206
    %v6222 = vcombine.low %v6213, %v6220
    %v6224 = vunpack.c.l.s4 1966171168
    %v6225 = vunpack.c.0.s8 %v6224
    %v6226 = vlaneseq
    %v6227 = vshrl.u32 %v6226, 7
    %v6228 = vsub.s32 %v6225, %v6227
    %v6229 = vrot.slane %v6221, %v6228
    %v6231 = vunpack.c.l.s4 1966171168
    %v6232 = vunpack.c.0.s8 %v6231
    %v6233 = vlaneseq
    %v6234 = vshrl.u32 %v6233, 7
    %v6235 = vsub.s32 %v6232, %v6234
    %v6236 = vrot.slane %v6222, %v6235
    %v6237 = vcombine.low %v6229, %v6236
    %v6238 = vcombine.low %v3190, %v3194
    %v6239 = vcombine.low %v3198, %v3202
    %v6240 = vcombine.low %v3206, %v3210
    %v6241 = vcombine.low %v3214, %v3218
    %v6243 = vunpack.c.l.s4 1966171168
    %v6244 = vunpack.c.0.s8 %v6243
    %v6245 = vlaneseq
    %v6246 = vshrl.u32 %v6245, 7
    %v6247 = vsub.s32 %v6244, %v6246
    %v6248 = vrot.slane %v6238, %v6247
    %v6250 = vunpack.c.l.s4 1966171168
    %v6251 = vunpack.c.0.s8 %v6250
    %v6252 = vlaneseq
    %v6253 = vshrl.u32 %v6252, 7
    %v6254 = vsub.s32 %v6251, %v6253
    %v6255 = vrot.slane %v6239, %v6254
    %v6257 = vunpack.c.l.s4 1966171168
    %v6258 = vunpack.c.0.s8 %v6257
    %v6259 = vlaneseq
    %v6260 = vshrl.u32 %v6259, 7
    %v6261 = vsub.s32 %v6258, %v6260
    %v6262 = vrot.slane %v6240, %v6261
    %v6264 = vunpack.c.l.s4 1966171168
    %v6265 = vunpack.c.0.s8 %v6264
    %v6266 = vlaneseq
    %v6267 = vshrl.u32 %v6266, 7
    %v6268 = vsub.s32 %v6265, %v6267
    %v6269 = vrot.slane %v6241, %v6268
    %v6270 = vcombine.low %v6248, %v6255
    %v6271 = vcombine.low %v6262, %v6269
    %v6273 = vunpack.c.l.s4 1966171168
    %v6274 = vunpack.c.0.s8 %v6273
    %v6275 = vlaneseq
    %v6276 = vshrl.u32 %v6275, 7
    %v6277 = vsub.s32 %v6274, %v6276
    %v6278 = vrot.slane %v6270, %v6277
    %v6280 = vunpack.c.l.s4 1966171168
    %v6281 = vunpack.c.0.s8 %v6280
    %v6282 = vlaneseq
    %v6283 = vshrl.u32 %v6282, 7
    %v6284 = vsub.s32 %v6281, %v6283
    %v6285 = vrot.slane %v6271, %v6284
    %v6286 = vcombine.low %v6278, %v6285
    %v6287 = vcombine.low %v3222, %v3226
    %v6288 = vcombine.low %v3230, %v3234
    %v6289 = vcombine.low %v3238, %v3242
    %v6290 = vcombine.low %v3246, %v3250
    %v6292 = vunpack.c.l.s4 1966171168
    %v6293 = vunpack.c.0.s8 %v6292
    %v6294 = vlaneseq
    %v6295 = vshrl.u32 %v6294, 7
    %v6296 = vsub.s32 %v6293, %v6295
    %v6297 = vrot.slane %v6287, %v6296
    %v6299 = vunpack.c.l.s4 1966171168
    %v6300 = vunpack.c.0.s8 %v6299
    %v6301 = vlaneseq
    %v6302 = vshrl.u32 %v6301, 7
    %v6303 = vsub.s32 %v6300, %v6302
    %v6304 = vrot.slane %v6288, %v6303
    %v6306 = vunpack.c.l.s4 1966171168
    %v6307 = vunpack.c.0.s8 %v6306
    %v6308 = vlaneseq
    %v6309 = vshrl.u32 %v6308, 7
    %v6310 = vsub.s32 %v6307, %v6309
    %v6311 = vrot.slane %v6289, %v6310
    %v6313 = vunpack.c.l.s4 1966171168
    %v6314 = vunpack.c.0.s8 %v6313
    %v6315 = vlaneseq
    %v6316 = vshrl.u32 %v6315, 7
    %v6317 = vsub.s32 %v6314, %v6316
    %v6318 = vrot.slane %v6290, %v6317
    %v6319 = vcombine.low %v6297, %v6304
    %v6320 = vcombine.low %v6311, %v6318
    %v6322 = vunpack.c.l.s4 1966171168
    %v6323 = vunpack.c.0.s8 %v6322
    %v6324 = vlaneseq
    %v6325 = vshrl.u32 %v6324, 7
    %v6326 = vsub.s32 %v6323, %v6325
    %v6327 = vrot.slane %v6319, %v6326
    %v6329 = vunpack.c.l.s4 1966171168
    %v6330 = vunpack.c.0.s8 %v6329
    %v6331 = vlaneseq
    %v6332 = vshrl.u32 %v6331, 7
    %v6333 = vsub.s32 %v6330, %v6332
    %v6334 = vrot.slane %v6320, %v6333
    %v6335 = vcombine.low %v6327, %v6334
    %v6336 = vcombine.low %v3254, %v3258
    %v6337 = vcombine.low %v3262, %v3266
    %v6338 = vcombine.low %v3270, %v3274
    %v6339 = vcombine.low %v3278, %v3282
    %v6341 = vunpack.c.l.s4 1966171168
    %v6342 = vunpack.c.0.s8 %v6341
    %v6343 = vlaneseq
    %v6344 = vshrl.u32 %v6343, 7
    %v6345 = vsub.s32 %v6342, %v6344
    %v6346 = vrot.slane %v6336, %v6345
    %v6348 = vunpack.c.l.s4 1966171168
    %v6349 = vunpack.c.0.s8 %v6348
    %v6350 = vlaneseq
    %v6351 = vshrl.u32 %v6350, 7
    %v6352 = vsub.s32 %v6349, %v6351
    %v6353 = vrot.slane %v6337, %v6352
    %v6355 = vunpack.c.l.s4 1966171168
    %v6356 = vunpack.c.0.s8 %v6355
    %v6357 = vlaneseq
    %v6358 = vshrl.u32 %v6357, 7
    %v6359 = vsub.s32 %v6356, %v6358
    %v6360 = vrot.slane %v6338, %v6359
    %v6362 = vunpack.c.l.s4 1966171168
    %v6363 = vunpack.c.0.s8 %v6362
    %v6364 = vlaneseq
    %v6365 = vshrl.u32 %v6364, 7
    %v6366 = vsub.s32 %v6363, %v6365
    %v6367 = vrot.slane %v6339, %v6366
    %v6368 = vcombine.low %v6346, %v6353
    %v6369 = vcombine.low %v6360, %v6367
    %v6371 = vunpack.c.l.s4 1966171168
    %v6372 = vunpack.c.0.s8 %v6371
    %v6373 = vlaneseq
    %v6374 = vshrl.u32 %v6373, 7
    %v6375 = vsub.s32 %v6372, %v6374
    %v6376 = vrot.slane %v6368, %v6375
    %v6378 = vunpack.c.l.s4 1966171168
    %v6379 = vunpack.c.0.s8 %v6378
    %v6380 = vlaneseq
    %v6381 = vshrl.u32 %v6380, 7
    %v6382 = vsub.s32 %v6379, %v6381
    %v6383 = vrot.slane %v6369, %v6382
    %v6384 = vcombine.low %v6376, %v6383
    %v6385 = vcombine.low %v3286, %v3290
    %v6386 = vcombine.low %v3294, %v3298
    %v6387 = vcombine.low %v3302, %v3306
    %v6388 = vcombine.low %v3310, %v3314
    %v6390 = vunpack.c.l.s4 1966171168
    %v6391 = vunpack.c.0.s8 %v6390
    %v6392 = vlaneseq
    %v6393 = vshrl.u32 %v6392, 7
    %v6394 = vsub.s32 %v6391, %v6393
    %v6395 = vrot.slane %v6385, %v6394
    %v6397 = vunpack.c.l.s4 1966171168
    %v6398 = vunpack.c.0.s8 %v6397
    %v6399 = vlaneseq
    %v6400 = vshrl.u32 %v6399, 7
    %v6401 = vsub.s32 %v6398, %v6400
    %v6402 = vrot.slane %v6386, %v6401
    %v6404 = vunpack.c.l.s4 1966171168
    %v6405 = vunpack.c.0.s8 %v6404
    %v6406 = vlaneseq
    %v6407 = vshrl.u32 %v6406, 7
    %v6408 = vsub.s32 %v6405, %v6407
    %v6409 = vrot.slane %v6387, %v6408
    %v6411 = vunpack.c.l.s4 1966171168
    %v6412 = vunpack.c.0.s8 %v6411
    %v6413 = vlaneseq
    %v6414 = vshrl.u32 %v6413, 7
    %v6415 = vsub.s32 %v6412, %v6414
    %v6416 = vrot.slane %v6388, %v6415
    %v6417 = vcombine.low %v6395, %v6402
    %v6418 = vcombine.low %v6409, %v6416
    %v6420 = vunpack.c.l.s4 1966171168
    %v6421 = vunpack.c.0.s8 %v6420
    %v6422 = vlaneseq
    %v6423 = vshrl.u32 %v6422, 7
    %v6424 = vsub.s32 %v6421, %v6423
    %v6425 = vrot.slane %v6417, %v6424
    %v6427 = vunpack.c.l.s4 1966171168
    %v6428 = vunpack.c.0.s8 %v6427
    %v6429 = vlaneseq
    %v6430 = vshrl.u32 %v6429, 7
    %v6431 = vsub.s32 %v6428, %v6430
    %v6432 = vrot.slane %v6418, %v6431
    %v6433 = vcombine.low %v6425, %v6432
    %v6434 = vcombine.low %v3318, %v3322
    %v6435 = vcombine.low %v3326, %v3330
    %v6436 = vcombine.low %v3334, %v3338
    %v6437 = vcombine.low %v3342, %v3346
    %v6439 = vunpack.c.l.s4 1966171168
    %v6440 = vunpack.c.0.s8 %v6439
    %v6441 = vlaneseq
    %v6442 = vshrl.u32 %v6441, 7
    %v6443 = vsub.s32 %v6440, %v6442
    %v6444 = vrot.slane %v6434, %v6443
    %v6446 = vunpack.c.l.s4 1966171168
    %v6447 = vunpack.c.0.s8 %v6446
    %v6448 = vlaneseq
    %v6449 = vshrl.u32 %v6448, 7
    %v6450 = vsub.s32 %v6447, %v6449
    %v6451 = vrot.slane %v6435, %v6450
    %v6453 = vunpack.c.l.s4 1966171168
    %v6454 = vunpack.c.0.s8 %v6453
    %v6455 = vlaneseq
    %v6456 = vshrl.u32 %v6455, 7
    %v6457 = vsub.s32 %v6454, %v6456
    %v6458 = vrot.slane %v6436, %v6457
    %v6460 = vunpack.c.l.s4 1966171168
    %v6461 = vunpack.c.0.s8 %v6460
    %v6462 = vlaneseq
    %v6463 = vshrl.u32 %v6462, 7
    %v6464 = vsub.s32 %v6461, %v6463
    %v6465 = vrot.slane %v6437, %v6464
    %v6466 = vcombine.low %v6444, %v6451
    %v6467 = vcombine.low %v6458, %v6465
    %v6469 = vunpack.c.l.s4 1966171168
    %v6470 = vunpack.c.0.s8 %v6469
    %v6471 = vlaneseq
    %v6472 = vshrl.u32 %v6471, 7
    %v6473 = vsub.s32 %v6470, %v6472
    %v6474 = vrot.slane %v6466, %v6473
    %v6476 = vunpack.c.l.s4 1966171168
    %v6477 = vunpack.c.0.s8 %v6476
    %v6478 = vlaneseq
    %v6479 = vshrl.u32 %v6478, 7
    %v6480 = vsub.s32 %v6477, %v6479
    %v6481 = vrot.slane %v6467, %v6480
    %v6482 = vcombine.low %v6474, %v6481
    %6483 = vset.pattern.permute.xlu0 0
    %6484 = vperm.xlu0 %6483, %v3395
    %v6485 = vpop.permute.xlu0 %6484
    %6486 = vset.pattern.permute.xlu0 0
    %6487 = vperm.xlu0 %6486, %v3444
    %v6488 = vpop.permute.xlu0 %6487
    %6489 = vset.pattern.permute.xlu0 0
    %6490 = vperm.xlu0 %6489, %v3493
    %v6491 = vpop.permute.xlu0 %6490
    %6492 = vset.pattern.permute.xlu0 0
    %6493 = vperm.xlu0 %6492, %v3542
    %v6494 = vpop.permute.xlu0 %6493
    %6495 = vset.pattern.permute.xlu0 0
    %6496 = vperm.xlu0 %6495, %v3591
    %v6497 = vpop.permute.xlu0 %6496
    %6498 = vset.pattern.permute.xlu0 0
    %6499 = vperm.xlu0 %6498, %v3640
    %v6500 = vpop.permute.xlu0 %6499
    %6501 = vset.pattern.permute.xlu0 0
    %6502 = vperm.xlu0 %6501, %v3689
    %v6503 = vpop.permute.xlu0 %6502
    %6504 = vset.pattern.permute.xlu0 0
    %6505 = vperm.xlu0 %6504, %v3738
    %v6506 = vpop.permute.xlu0 %6505
    %6507 = vset.pattern.permute.xlu0 0
    %6508 = vperm.xlu0 %6507, %v3787
    %v6509 = vpop.permute.xlu0 %6508
    %6510 = vset.pattern.permute.xlu0 0
    %6511 = vperm.xlu0 %6510, %v3836
    %v6512 = vpop.permute.xlu0 %6511
    %6513 = vset.pattern.permute.xlu0 0
    %6514 = vperm.xlu0 %6513, %v3885
    %v6515 = vpop.permute.xlu0 %6514
    %6516 = vset.pattern.permute.xlu0 0
    %6517 = vperm.xlu0 %6516, %v3934
    %v6518 = vpop.permute.xlu0 %6517
    %6519 = vset.pattern.permute.xlu0 0
    %6520 = vperm.xlu0 %6519, %v3983
    %v6521 = vpop.permute.xlu0 %6520
    %6522 = vset.pattern.permute.xlu0 0
    %6523 = vperm.xlu0 %6522, %v4032
    %v6524 = vpop.permute.xlu0 %6523
    %6525 = vset.pattern.permute.xlu0 0
    %6526 = vperm.xlu0 %6525, %v4081
    %v6527 = vpop.permute.xlu0 %6526
    %6528 = vset.pattern.permute.xlu0 0
    %6529 = vperm.xlu0 %6528, %v4130
    %v6530 = vpop.permute.xlu0 %6529
    %6531 = vset.pattern.permute.xlu0 0
    %6532 = vperm.xlu0 %6531, %v4179
    %v6533 = vpop.permute.xlu0 %6532
    %6534 = vset.pattern.permute.xlu0 0
    %6535 = vperm.xlu0 %6534, %v4228
    %v6536 = vpop.permute.xlu0 %6535
    %6537 = vset.pattern.permute.xlu0 0
    %6538 = vperm.xlu0 %6537, %v4277
    %v6539 = vpop.permute.xlu0 %6538
    %6540 = vset.pattern.permute.xlu0 0
    %6541 = vperm.xlu0 %6540, %v4326
    %v6542 = vpop.permute.xlu0 %6541
    %6543 = vset.pattern.permute.xlu0 0
    %6544 = vperm.xlu0 %6543, %v4375
    %v6545 = vpop.permute.xlu0 %6544
    %6546 = vset.pattern.permute.xlu0 0
    %6547 = vperm.xlu0 %6546, %v4424
    %v6548 = vpop.permute.xlu0 %6547
    %6549 = vset.pattern.permute.xlu0 0
    %6550 = vperm.xlu0 %6549, %v4473
    %v6551 = vpop.permute.xlu0 %6550
    %6552 = vset.pattern.permute.xlu0 0
    %6553 = vperm.xlu0 %6552, %v4522
    %v6554 = vpop.permute.xlu0 %6553
    %6555 = vset.pattern.permute.xlu0 0
    %6556 = vperm.xlu0 %6555, %v4571
    %v6557 = vpop.permute.xlu0 %6556
    %6558 = vset.pattern.permute.xlu0 0
    %6559 = vperm.xlu0 %6558, %v4620
    %v6560 = vpop.permute.xlu0 %6559
    %6561 = vset.pattern.permute.xlu0 0
    %6562 = vperm.xlu0 %6561, %v4669
    %v6563 = vpop.permute.xlu0 %6562
    %6564 = vset.pattern.permute.xlu0 0
    %6565 = vperm.xlu0 %6564, %v4718
    %v6566 = vpop.permute.xlu0 %6565
    %6567 = vset.pattern.permute.xlu0 0
    %6568 = vperm.xlu0 %6567, %v4767
    %v6569 = vpop.permute.xlu0 %6568
    %6570 = vset.pattern.permute.xlu0 0
    %6571 = vperm.xlu0 %6570, %v4816
    %v6572 = vpop.permute.xlu0 %6571
    %6573 = vset.pattern.permute.xlu0 0
    %6574 = vperm.xlu0 %6573, %v4865
    %v6575 = vpop.permute.xlu0 %6574
    %6576 = vset.pattern.permute.xlu0 0
    %6577 = vperm.xlu0 %6576, %v4914
    %v6578 = vpop.permute.xlu0 %6577
    %6579 = vset.pattern.permute.xlu0 0
    %6580 = vperm.xlu0 %6579, %v4963
    %v6581 = vpop.permute.xlu0 %6580
    %6582 = vset.pattern.permute.xlu0 0
    %6583 = vperm.xlu0 %6582, %v5012
    %v6584 = vpop.permute.xlu0 %6583
    %6585 = vset.pattern.permute.xlu0 0
    %6586 = vperm.xlu0 %6585, %v5061
    %v6587 = vpop.permute.xlu0 %6586
    %6588 = vset.pattern.permute.xlu0 0
    %6589 = vperm.xlu0 %6588, %v5110
    %v6590 = vpop.permute.xlu0 %6589
    %6591 = vset.pattern.permute.xlu0 0
    %6592 = vperm.xlu0 %6591, %v5159
    %v6593 = vpop.permute.xlu0 %6592
    %6594 = vset.pattern.permute.xlu0 0
    %6595 = vperm.xlu0 %6594, %v5208
    %v6596 = vpop.permute.xlu0 %6595
    %6597 = vset.pattern.permute.xlu0 0
    %6598 = vperm.xlu0 %6597, %v5257
    %v6599 = vpop.permute.xlu0 %6598
    %6600 = vset.pattern.permute.xlu0 0
    %6601 = vperm.xlu0 %6600, %v5306
    %v6602 = vpop.permute.xlu0 %6601
    %6603 = vset.pattern.permute.xlu0 0
    %6604 = vperm.xlu0 %6603, %v5355
    %v6605 = vpop.permute.xlu0 %6604
    %6606 = vset.pattern.permute.xlu0 0
    %6607 = vperm.xlu0 %6606, %v5404
    %v6608 = vpop.permute.xlu0 %6607
    %6609 = vset.pattern.permute.xlu0 0
    %6610 = vperm.xlu0 %6609, %v5453
    %v6611 = vpop.permute.xlu0 %6610
    %6612 = vset.pattern.permute.xlu0 0
    %6613 = vperm.xlu0 %6612, %v5502
    %v6614 = vpop.permute.xlu0 %6613
    %6615 = vset.pattern.permute.xlu0 0
    %6616 = vperm.xlu0 %6615, %v5551
    %v6617 = vpop.permute.xlu0 %6616
    %6618 = vset.pattern.permute.xlu0 0
    %6619 = vperm.xlu0 %6618, %v5600
    %v6620 = vpop.permute.xlu0 %6619
    %6621 = vset.pattern.permute.xlu0 0
    %6622 = vperm.xlu0 %6621, %v5649
    %v6623 = vpop.permute.xlu0 %6622
    %6624 = vset.pattern.permute.xlu0 0
    %6625 = vperm.xlu0 %6624, %v5698
    %v6626 = vpop.permute.xlu0 %6625
    %6627 = vset.pattern.permute.xlu0 0
    %6628 = vperm.xlu0 %6627, %v5747
    %v6629 = vpop.permute.xlu0 %6628
    %6630 = vset.pattern.permute.xlu0 0
    %6631 = vperm.xlu0 %6630, %v5796
    %v6632 = vpop.permute.xlu0 %6631
    %6633 = vset.pattern.permute.xlu0 0
    %6634 = vperm.xlu0 %6633, %v5845
    %v6635 = vpop.permute.xlu0 %6634
    %6636 = vset.pattern.permute.xlu0 0
    %6637 = vperm.xlu0 %6636, %v5894
    %v6638 = vpop.permute.xlu0 %6637
    %6639 = vset.pattern.permute.xlu0 0
    %6640 = vperm.xlu0 %6639, %v5943
    %v6641 = vpop.permute.xlu0 %6640
    %6642 = vset.pattern.permute.xlu0 0
    %6643 = vperm.xlu0 %6642, %v5992
    %v6644 = vpop.permute.xlu0 %6643
    %6645 = vset.pattern.permute.xlu0 0
    %6646 = vperm.xlu0 %6645, %v6041
    %v6647 = vpop.permute.xlu0 %6646
    %6648 = vset.pattern.permute.xlu0 0
    %6649 = vperm.xlu0 %6648, %v6090
    %v6650 = vpop.permute.xlu0 %6649
    %6651 = vset.pattern.permute.xlu0 0
    %6652 = vperm.xlu0 %6651, %v6139
    %v6653 = vpop.permute.xlu0 %6652
    %6654 = vset.pattern.permute.xlu0 0
    %6655 = vperm.xlu0 %6654, %v6188
    %v6656 = vpop.permute.xlu0 %6655
    %6657 = vset.pattern.permute.xlu0 0
    %6658 = vperm.xlu0 %6657, %v6237
    %v6659 = vpop.permute.xlu0 %6658
    %6660 = vset.pattern.permute.xlu0 0
    %6661 = vperm.xlu0 %6660, %v6286
    %v6662 = vpop.permute.xlu0 %6661
    %6663 = vset.pattern.permute.xlu0 0
    %6664 = vperm.xlu0 %6663, %v6335
    %v6665 = vpop.permute.xlu0 %6664
    %6666 = vset.pattern.permute.xlu0 0
    %6667 = vperm.xlu0 %6666, %v6384
    %v6668 = vpop.permute.xlu0 %6667
    %6669 = vset.pattern.permute.xlu0 0
    %6670 = vperm.xlu0 %6669, %v6433
    %v6671 = vpop.permute.xlu0 %6670
    %6672 = vset.pattern.permute.xlu0 0
    %6673 = vperm.xlu0 %6672, %v6482
    %v6674 = vpop.permute.xlu0 %6673
    %v6675 = vlaneseq
    %v6676 = vand.u32 %v6675, 127
    %v6677 = vlaneseq
    %v6678 = vshrl.u32 %v6677, 7
    %v6679 = vsub.s32 %v6676, %v6678
    %v6680 = vrot.slane %v6485, %v6679
    %v6681 = vadd.s32 %v6676, 4294967288
    %v6682 = vlaneseq
    %v6683 = vshrl.u32 %v6682, 7
    %v6684 = vsub.s32 %v6681, %v6683
    %v6685 = vrot.slane %v6488, %v6684
    %vm6686 = vcmask 130112
    %v6687 = vsel %vm6686, %v6685, %v6680
    %v6688 = vadd.s32 %v6676, 4294967280
    %v6689 = vlaneseq
    %v6690 = vshrl.u32 %v6689, 7
    %v6691 = vsub.s32 %v6688, %v6690
    %v6692 = vrot.slane %v6491, %v6691
    %vm6693 = vcmask 195712
    %v6694 = vsel %vm6693, %v6692, %v6687
    %v6695 = vadd.s32 %v6676, 4294967272
    %v6696 = vlaneseq
    %v6697 = vshrl.u32 %v6696, 7
    %v6698 = vsub.s32 %v6695, %v6697
    %v6699 = vrot.slane %v6494, %v6698
    %vm6700 = vcmask 261312
    %v6701 = vsel %vm6700, %v6699, %v6694
    %v6702 = vadd.s32 %v6676, 4294967264
    %v6703 = vlaneseq
    %v6704 = vshrl.u32 %v6703, 7
    %v6705 = vsub.s32 %v6702, %v6704
    %v6706 = vrot.slane %v6497, %v6705
    %vm6707 = vcmask 326912
    %v6708 = vsel %vm6707, %v6706, %v6701
    %v6709 = vadd.s32 %v6676, 4294967256
    %v6710 = vlaneseq
    %v6711 = vshrl.u32 %v6710, 7
    %v6712 = vsub.s32 %v6709, %v6711
    %v6713 = vrot.slane %v6500, %v6712
    %vm6714 = vcmask 392512
    %v6715 = vsel %vm6714, %v6713, %v6708
    %v6716 = vadd.s32 %v6676, 4294967248
    %v6717 = vlaneseq
    %v6718 = vshrl.u32 %v6717, 7
    %v6719 = vsub.s32 %v6716, %v6718
    %v6720 = vrot.slane %v6503, %v6719
    %vm6721 = vcmask 458112
    %v6722 = vsel %vm6721, %v6720, %v6715
    %v6723 = vadd.s32 %v6676, 4294967240
    %v6724 = vlaneseq
    %v6725 = vshrl.u32 %v6724, 7
    %v6726 = vsub.s32 %v6723, %v6725
    %v6727 = vrot.slane %v6506, %v6726
    %vm6728 = vcmask 523712
    %v6729 = vsel %vm6728, %v6727, %v6722
    %v6730 = vadd.s32 %v6676, 4294967232
    %v6731 = vlaneseq
    %v6732 = vshrl.u32 %v6731, 7
    %v6733 = vsub.s32 %v6730, %v6732
    %v6734 = vrot.slane %v6509, %v6733
    %vm6735 = vcmask 589312
    %v6736 = vsel %vm6735, %v6734, %v6729
    %v6737 = vadd.s32 %v6676, 4294967224
    %v6738 = vlaneseq
    %v6739 = vshrl.u32 %v6738, 7
    %v6740 = vsub.s32 %v6737, %v6739
    %v6741 = vrot.slane %v6512, %v6740
    %vm6742 = vcmask 654912
    %v6743 = vsel %vm6742, %v6741, %v6736
    %v6744 = vadd.s32 %v6676, 4294967216
    %v6745 = vlaneseq
    %v6746 = vshrl.u32 %v6745, 7
    %v6747 = vsub.s32 %v6744, %v6746
    %v6748 = vrot.slane %v6515, %v6747
    %vm6749 = vcmask 720512
    %v6750 = vsel %vm6749, %v6748, %v6743
    %v6751 = vadd.s32 %v6676, 4294967208
    %v6752 = vlaneseq
    %v6753 = vshrl.u32 %v6752, 7
    %v6754 = vsub.s32 %v6751, %v6753
    %v6755 = vrot.slane %v6518, %v6754
    %vm6756 = vcmask 786112
    %v6757 = vsel %vm6756, %v6755, %v6750
    %v6758 = vadd.s32 %v6676, 4294967200
    %v6759 = vlaneseq
    %v6760 = vshrl.u32 %v6759, 7
    %v6761 = vsub.s32 %v6758, %v6760
    %v6762 = vrot.slane %v6521, %v6761
    %vm6763 = vcmask 851712
    %v6764 = vsel %vm6763, %v6762, %v6757
    %v6765 = vadd.s32 %v6676, 4294967192
    %v6766 = vlaneseq
    %v6767 = vshrl.u32 %v6766, 7
    %v6768 = vsub.s32 %v6765, %v6767
    %v6769 = vrot.slane %v6524, %v6768
    %vm6770 = vcmask 917312
    %v6771 = vsel %vm6770, %v6769, %v6764
    %v6772 = vadd.s32 %v6676, 4294967184
    %v6773 = vlaneseq
    %v6774 = vshrl.u32 %v6773, 7
    %v6775 = vsub.s32 %v6772, %v6774
    %v6776 = vrot.slane %v6527, %v6775
    %vm6777 = vcmask 982912
    %v6778 = vsel %vm6777, %v6776, %v6771
    %v6779 = vadd.s32 %v6676, 4294967176
    %v6780 = vlaneseq
    %v6781 = vshrl.u32 %v6780, 7
    %v6782 = vsub.s32 %v6779, %v6781
    %v6783 = vrot.slane %v6530, %v6782
    %vm6784 = vcmask 1048512
    %v6785 = vsel %vm6784, %v6783, %v6778
    %v6786 = vlaneseq
    %v6787 = vshrl.u32 %v6786, 7
    %v6788 = vsub.s32 %v6676, %v6787
    %v6789 = vrot.slane %v6533, %v6788
    %v6790 = vlaneseq
    %v6791 = vshrl.u32 %v6790, 7
    %v6792 = vsub.s32 %v6681, %v6791
    %v6793 = vrot.slane %v6536, %v6792
    %v6794 = vsel %vm6686, %v6793, %v6789
    %v6795 = vlaneseq
    %v6796 = vshrl.u32 %v6795, 7
    %v6797 = vsub.s32 %v6688, %v6796
    %v6798 = vrot.slane %v6539, %v6797
    %v6799 = vsel %vm6693, %v6798, %v6794
    %v6800 = vlaneseq
    %v6801 = vshrl.u32 %v6800, 7
    %v6802 = vsub.s32 %v6695, %v6801
    %v6803 = vrot.slane %v6542, %v6802
    %v6804 = vsel %vm6700, %v6803, %v6799
    %v6805 = vlaneseq
    %v6806 = vshrl.u32 %v6805, 7
    %v6807 = vsub.s32 %v6702, %v6806
    %v6808 = vrot.slane %v6545, %v6807
    %v6809 = vsel %vm6707, %v6808, %v6804
    %v6810 = vlaneseq
    %v6811 = vshrl.u32 %v6810, 7
    %v6812 = vsub.s32 %v6709, %v6811
    %v6813 = vrot.slane %v6548, %v6812
    %v6814 = vsel %vm6714, %v6813, %v6809
    %v6815 = vlaneseq
    %v6816 = vshrl.u32 %v6815, 7
    %v6817 = vsub.s32 %v6716, %v6816
    %v6818 = vrot.slane %v6551, %v6817
    %v6819 = vsel %vm6721, %v6818, %v6814
    %v6820 = vlaneseq
    %v6821 = vshrl.u32 %v6820, 7
    %v6822 = vsub.s32 %v6723, %v6821
    %v6823 = vrot.slane %v6554, %v6822
    %v6824 = vsel %vm6728, %v6823, %v6819
    %v6825 = vlaneseq
    %v6826 = vshrl.u32 %v6825, 7
    %v6827 = vsub.s32 %v6730, %v6826
    %v6828 = vrot.slane %v6557, %v6827
    %v6829 = vsel %vm6735, %v6828, %v6824
    %v6830 = vlaneseq
    %v6831 = vshrl.u32 %v6830, 7
    %v6832 = vsub.s32 %v6737, %v6831
    %v6833 = vrot.slane %v6560, %v6832
    %v6834 = vsel %vm6742, %v6833, %v6829
    %v6835 = vlaneseq
    %v6836 = vshrl.u32 %v6835, 7
    %v6837 = vsub.s32 %v6744, %v6836
    %v6838 = vrot.slane %v6563, %v6837
    %v6839 = vsel %vm6749, %v6838, %v6834
    %v6840 = vlaneseq
    %v6841 = vshrl.u32 %v6840, 7
    %v6842 = vsub.s32 %v6751, %v6841
    %v6843 = vrot.slane %v6566, %v6842
    %v6844 = vsel %vm6756, %v6843, %v6839
    %v6845 = vlaneseq
    %v6846 = vshrl.u32 %v6845, 7
    %v6847 = vsub.s32 %v6758, %v6846
    %v6848 = vrot.slane %v6569, %v6847
    %v6849 = vsel %vm6763, %v6848, %v6844
    %v6850 = vlaneseq
    %v6851 = vshrl.u32 %v6850, 7
    %v6852 = vsub.s32 %v6765, %v6851
    %v6853 = vrot.slane %v6572, %v6852
    %v6854 = vsel %vm6770, %v6853, %v6849
    %v6855 = vlaneseq
    %v6856 = vshrl.u32 %v6855, 7
    %v6857 = vsub.s32 %v6772, %v6856
    %v6858 = vrot.slane %v6575, %v6857
    %v6859 = vsel %vm6777, %v6858, %v6854
    %v6860 = vlaneseq
    %v6861 = vshrl.u32 %v6860, 7
    %v6862 = vsub.s32 %v6779, %v6861
    %v6863 = vrot.slane %v6578, %v6862
    %v6864 = vsel %vm6784, %v6863, %v6859
    %v6865 = vlaneseq
    %v6866 = vshrl.u32 %v6865, 7
    %v6867 = vsub.s32 %v6676, %v6866
    %v6868 = vrot.slane %v6581, %v6867
    %v6869 = vlaneseq
    %v6870 = vshrl.u32 %v6869, 7
    %v6871 = vsub.s32 %v6681, %v6870
    %v6872 = vrot.slane %v6584, %v6871
    %v6873 = vsel %vm6686, %v6872, %v6868
    %v6874 = vlaneseq
    %v6875 = vshrl.u32 %v6874, 7
    %v6876 = vsub.s32 %v6688, %v6875
    %v6877 = vrot.slane %v6587, %v6876
    %v6878 = vsel %vm6693, %v6877, %v6873
    %v6879 = vlaneseq
    %v6880 = vshrl.u32 %v6879, 7
    %v6881 = vsub.s32 %v6695, %v6880
    %v6882 = vrot.slane %v6590, %v6881
    %v6883 = vsel %vm6700, %v6882, %v6878
    %v6884 = vlaneseq
    %v6885 = vshrl.u32 %v6884, 7
    %v6886 = vsub.s32 %v6702, %v6885
    %v6887 = vrot.slane %v6593, %v6886
    %v6888 = vsel %vm6707, %v6887, %v6883
    %v6889 = vlaneseq
    %v6890 = vshrl.u32 %v6889, 7
    %v6891 = vsub.s32 %v6709, %v6890
    %v6892 = vrot.slane %v6596, %v6891
    %v6893 = vsel %vm6714, %v6892, %v6888
    %v6894 = vlaneseq
    %v6895 = vshrl.u32 %v6894, 7
    %v6896 = vsub.s32 %v6716, %v6895
    %v6897 = vrot.slane %v6599, %v6896
    %v6898 = vsel %vm6721, %v6897, %v6893
    %v6899 = vlaneseq
    %v6900 = vshrl.u32 %v6899, 7
    %v6901 = vsub.s32 %v6723, %v6900
    %v6902 = vrot.slane %v6602, %v6901
    %v6903 = vsel %vm6728, %v6902, %v6898
    %v6904 = vlaneseq
    %v6905 = vshrl.u32 %v6904, 7
    %v6906 = vsub.s32 %v6730, %v6905
    %v6907 = vrot.slane %v6605, %v6906
    %v6908 = vsel %vm6735, %v6907, %v6903
    %v6909 = vlaneseq
    %v6910 = vshrl.u32 %v6909, 7
    %v6911 = vsub.s32 %v6737, %v6910
    %v6912 = vrot.slane %v6608, %v6911
    %v6913 = vsel %vm6742, %v6912, %v6908
    %v6914 = vlaneseq
    %v6915 = vshrl.u32 %v6914, 7
    %v6916 = vsub.s32 %v6744, %v6915
    %v6917 = vrot.slane %v6611, %v6916
    %v6918 = vsel %vm6749, %v6917, %v6913
    %v6919 = vlaneseq
    %v6920 = vshrl.u32 %v6919, 7
    %v6921 = vsub.s32 %v6751, %v6920
    %v6922 = vrot.slane %v6614, %v6921
    %v6923 = vsel %vm6756, %v6922, %v6918
    %v6924 = vlaneseq
    %v6925 = vshrl.u32 %v6924, 7
    %v6926 = vsub.s32 %v6758, %v6925
    %v6927 = vrot.slane %v6617, %v6926
    %v6928 = vsel %vm6763, %v6927, %v6923
    %v6929 = vlaneseq
    %v6930 = vshrl.u32 %v6929, 7
    %v6931 = vsub.s32 %v6765, %v6930
    %v6932 = vrot.slane %v6620, %v6931
    %v6933 = vsel %vm6770, %v6932, %v6928
    %v6934 = vlaneseq
    %v6935 = vshrl.u32 %v6934, 7
    %v6936 = vsub.s32 %v6772, %v6935
    %v6937 = vrot.slane %v6623, %v6936
    %v6938 = vsel %vm6777, %v6937, %v6933
    %v6939 = vlaneseq
    %v6940 = vshrl.u32 %v6939, 7
    %v6941 = vsub.s32 %v6779, %v6940
    %v6942 = vrot.slane %v6626, %v6941
    %v6943 = vsel %vm6784, %v6942, %v6938
    %v6944 = vlaneseq
    %v6945 = vshrl.u32 %v6944, 7
    %v6946 = vsub.s32 %v6676, %v6945
    %v6947 = vrot.slane %v6629, %v6946
    %v6948 = vlaneseq
    %v6949 = vshrl.u32 %v6948, 7
    %v6950 = vsub.s32 %v6681, %v6949
    %v6951 = vrot.slane %v6632, %v6950
    %v6952 = vsel %vm6686, %v6951, %v6947
    %v6953 = vlaneseq
    %v6954 = vshrl.u32 %v6953, 7
    %v6955 = vsub.s32 %v6688, %v6954
    %v6956 = vrot.slane %v6635, %v6955
    %v6957 = vsel %vm6693, %v6956, %v6952
    %v6958 = vlaneseq
    %v6959 = vshrl.u32 %v6958, 7
    %v6960 = vsub.s32 %v6695, %v6959
    %v6961 = vrot.slane %v6638, %v6960
    %v6962 = vsel %vm6700, %v6961, %v6957
    %v6963 = vlaneseq
    %v6964 = vshrl.u32 %v6963, 7
    %v6965 = vsub.s32 %v6702, %v6964
    %v6966 = vrot.slane %v6641, %v6965
    %v6967 = vsel %vm6707, %v6966, %v6962
    %v6968 = vlaneseq
    %v6969 = vshrl.u32 %v6968, 7
    %v6970 = vsub.s32 %v6709, %v6969
    %v6971 = vrot.slane %v6644, %v6970
    %v6972 = vsel %vm6714, %v6971, %v6967
    %v6973 = vlaneseq
    %v6974 = vshrl.u32 %v6973, 7
    %v6975 = vsub.s32 %v6716, %v6974
    %v6976 = vrot.slane %v6647, %v6975
    %v6977 = vsel %vm6721, %v6976, %v6972
    %v6978 = vlaneseq
    %v6979 = vshrl.u32 %v6978, 7
    %v6980 = vsub.s32 %v6723, %v6979
    %v6981 = vrot.slane %v6650, %v6980
    %v6982 = vsel %vm6728, %v6981, %v6977
    %v6983 = vlaneseq
    %v6984 = vshrl.u32 %v6983, 7
    %v6985 = vsub.s32 %v6730, %v6984
    %v6986 = vrot.slane %v6653, %v6985
    %v6987 = vsel %vm6735, %v6986, %v6982
    %v6988 = vlaneseq
    %v6989 = vshrl.u32 %v6988, 7
    %v6990 = vsub.s32 %v6737, %v6989
    %v6991 = vrot.slane %v6656, %v6990
    %v6992 = vsel %vm6742, %v6991, %v6987
    %v6993 = vlaneseq
    %v6994 = vshrl.u32 %v6993, 7
    %v6995 = vsub.s32 %v6744, %v6994
    %v6996 = vrot.slane %v6659, %v6995
    %v6997 = vsel %vm6749, %v6996, %v6992
    %v6998 = vlaneseq
    %v6999 = vshrl.u32 %v6998, 7
    %v7000 = vsub.s32 %v6751, %v6999
    %v7001 = vrot.slane %v6662, %v7000
    %v7002 = vsel %vm6756, %v7001, %v6997
    %v7003 = vlaneseq
    %v7004 = vshrl.u32 %v7003, 7
    %v7005 = vsub.s32 %v6758, %v7004
    %v7006 = vrot.slane %v6665, %v7005
    %v7007 = vsel %vm6763, %v7006, %v7002
    %v7008 = vlaneseq
    %v7009 = vshrl.u32 %v7008, 7
    %v7010 = vsub.s32 %v6765, %v7009
    %v7011 = vrot.slane %v6668, %v7010
    %v7012 = vsel %vm6770, %v7011, %v7007
    %v7013 = vlaneseq
    %v7014 = vshrl.u32 %v7013, 7
    %v7015 = vsub.s32 %v6772, %v7014
    %v7016 = vrot.slane %v6671, %v7015
    %v7017 = vsel %vm6777, %v7016, %v7012
    %v7018 = vlaneseq
    %v7019 = vshrl.u32 %v7018, 7
    %v7020 = vsub.s32 %v6779, %v7019
    %v7021 = vrot.slane %v6674, %v7020
    %v7022 = vsel %vm6784, %v7021, %v7017
    %v7023 = vcombine.low %v6785, %v6864
    %v7024 = vcombine.low %v6943, %v7022
    %v7026 = vunpack.c.l.s4 1966171168
    %v7027 = vunpack.c.0.s8 %v7026
    %v7028 = vlaneseq
    %v7029 = vshrl.u32 %v7028, 7
    %v7030 = vsub.s32 %v7027, %v7029
    %v7031 = vrot.slane %v7023, %v7030
    %v7033 = vunpack.c.l.s4 1966171168
    %v7034 = vunpack.c.0.s8 %v7033
    %v7035 = vlaneseq
    %v7036 = vshrl.u32 %v7035, 7
    %v7037 = vsub.s32 %v7034, %v7036
    %v7038 = vrot.slane %v7024, %v7037
    %v7039 = vcombine.low %v7031, %v7038
    %v7041 = vunpack.c.l.s4 1966171168
    %v7042 = vunpack.c.0.s8 %v7041
    %v7043 = vlaneseq
    %v7044 = vshrl.u32 %v7043, 7
    %v7045 = vsub.s32 %v7042, %v7044
    %v7046 = vrot.slane %v7039, %v7045
    %v7048 = vlaneseq
    %vm7049 = vcmp.ge.s32.totalorder %v7048, 0
    %vm7050 = vcmp.lt.s32.totalorder %v7048, 512
    %vm7051 = vmand %vm7049, %vm7050
    %7052 = vst.msk [vmem:[#allocation8] sm:$0xf] %vm7051, %v7046
    // Predicated region
    $region30: #{tpu_custom_call.1} parent=1 // pred_check
      _
    $region31: #{tpu_custom_call.1} parent=1 // pred_check_branch
      %7054 = sbr.rel (0) target = $region33
    $region32: #{tpu_custom_call.1} parent=1 // pred_region
      %s7056 = ssub.s32 64, 64
      %7057 = vsyncadd [#allocation5], %s7056
      %s7059 = sshll.u32 [#allocation8], 4
      %s7060 = int_to_ptr.vmem [resolvable:$true] %s7059
      %7062 = dma.vmem_to_hbm [thread:$0]  %s7060, 64, %s5, [#allocation5]
    $region33: #{tpu_custom_call.1} parent=1 // pred_fallthru
      _
    // Predicated region
    $region34: #{tpu_custom_call.1} parent=1 // pred_check
      _
    $region35: #{tpu_custom_call.1} parent=1 // pred_check_branch
      %7064 = sbr.rel (0) target = $region37
    $region36: #{tpu_custom_call.1} parent=1 // pred_region
      %7065 = dma.done [#allocation5], 64
    $region37: #{tpu_custom_call.1} parent=1 // pred_fallthru
      _
    %7066 = vsyncpa [#allocation4], 1
    %7067 = vsyncpa [#allocation7], 1
    %7068 = vsyncpa [#allocation5], 1

</llo_original>
